<compile_context>
chip_gen: v5e
topology: v5e:2x2
jax: 0.10.0
libtpu: 0.0.40
codegen_flags: <defaults>
</compile_context>

<pallas_src>
import functools
import math

import jax
import jax.numpy as jnp
from jax.experimental import pallas as pl
from jax.experimental.pallas import tpu as pltpu


def _round_up(v, m):
    return (v + m - 1) // m * m


def _sigmoid(v):
    # sigmoid(x) == 0.5 * (tanh(x/2) + 1): single EUP push instead of exp+recip.
    return 0.5 * jnp.tanh(0.5 * v) + 0.5


def hyperedge_kernel(x_ref, wih_ref, whh_ref, b_ref, watt_ref, out_ref,
                     xp_scr, lstm_scr, sc_scr):
    """One grid step processes a tile of tb flattened (batch*edge) sequences.

    x_ref    : (T, tb, D)    bf16  time-major input tile
    wih_ref  : (D, 4*Hp)     bf16  input->gate weights (per-gate padded, i|f|g|o)
    whh_ref  : (Hp, 4*Hp)    bf16  hidden->gate weights
    b_ref    : (1, 4*Hp)     f32   combined bias (b_ih + b_hh), per-gate padded
    watt_ref : (Hp, Ap)      bf16  [ones column | attention weights.T | 0-pad]
    out_ref  : (tb, Ap)      f32   pooled edge vectors (col 0 + pad = garbage)
    xp_scr   : (T*tb, 4*Hp)  bf16  hoisted input projection (+bias), time-major
    lstm_scr : (T*tb, Hp)    bf16  per-timestep hidden states, time-major
    sc_scr   : (T*tb, Ap)    f32   attention scores (col 0 = per-row sum of h)
    """
    tb, a_pad = out_ref.shape
    h_pad = lstm_scr.shape[1]
    T = lstm_scr.shape[0] // tb
    D = x_ref.shape[-1]

    # ---- hoisted input projection: one big MXU matmul for all timesteps ----
    x_flat = x_ref[...].reshape(T * tb, D)                      # tile-aligned merge
    xp_scr[...] = (jnp.dot(x_flat, wih_ref[...],
                           preferred_element_type=jnp.float32)
                   + b_ref[...]).astype(xp_scr.dtype)           # (T*tb, 4*Hp) bf16

    # ---- LSTM recurrence: h/c carried in registers ----
    # Gate blocks are produced/consumed one at a time (4 separate N=Hp
    # matmuls) so at most one (tb, 4Hp/4) f32 gate value is live.
    def step(t, carry):
        h, c = carry                                            # (tb, Hp) f32
        row = pl.multiple_of(t * tb, tb)
        h_bf = h.astype(jnp.bfloat16)

        def gate(g):                                            # g is static
            lo = g * h_pad
            xg = xp_scr[pl.ds(row, tb), lo:lo + h_pad].astype(jnp.float32)
            return xg + jnp.dot(h_bf, whh_ref[:, lo:lo + h_pad],
                                preferred_element_type=jnp.float32)

        # gate order in the padded weights: i | f | g | o
        c_new = _sigmoid(gate(1)) * c + _sigmoid(gate(0)) * jnp.tanh(gate(2))
        h_new = _sigmoid(gate(3)) * jnp.tanh(c_new)
        lstm_scr[pl.ds(row, tb), :] = h_new.astype(lstm_scr.dtype)
        return h_new, c_new

    h0 = jnp.zeros((tb, h_pad), jnp.float32)
    c0 = jnp.zeros((tb, h_pad), jnp.float32)
    unroll = T if T <= 16 else 4
    jax.lax.fori_loop(0, T, step, (h0, c0), unroll=unroll)

    # ---- attention pooling ----
    # Pass 1: per-timestep scores into the VMEM scratch + running max over time.
    # Column 0 of watt is all-ones, so sc[:, 0] == sum_j h[:, j] (free on MXU).
    m = None
    for t in range(T):
        row = t * tb
        s_t = jnp.dot(lstm_scr[row:row + tb, :], watt_ref[...],
                      preferred_element_type=jnp.float32)       # (tb, Ap) f32
        sc_scr[row:row + tb, :] = s_t
        m = s_t if m is None else jnp.maximum(m, s_t)

    # Pass 2: softmax over time fused with einsum('bti,btj->bti') == attn *
    # row_sum and the time-mean; reads tb-row slices back from the scratch.
    denom = jnp.zeros((tb, a_pad), jnp.float32)
    acc = jnp.zeros((tb, a_pad), jnp.float32)
    for t in range(T):
        row = t * tb
        s_t = sc_scr[row:row + tb, :]
        e = jnp.exp(s_t - m)
        denom = denom + e
        acc = acc + e * s_t[:, 0:1]                             # row_sum column

    out_ref[...] = (acc * pl.reciprocal(denom, approx=True)
                    * (1.0 / T)).astype(out_ref.dtype)


@functools.partial(jax.jit, static_argnames=("tb",))
def hyperedge_embedding(x, w_ih, w_hh, b_ih, b_hh, w_att, *, tb=128):
    """x: (batch, num_edges, T, D) -> (batch, num_edges, attention_dim)."""
    batch, num_edges, T, D = x.shape
    B = batch * num_edges
    H = w_hh.shape[1]
    A = w_att.shape[0]
    Hp = _round_up(H, 128)             # lane-dense gate slices
    Ap = _round_up(A + 1, 128)         # +1 lane reserved for the ones column
    # tb must be a multiple of 16 (bf16 sublane packing of the scratch tiles);
    # clamp to the padded flattened batch so tiny inputs don't pad to 128 rows.
    # For large B on v6e/v7x, tb=256 fills the 256-wide MXU better.
    tb = max(16, min(tb, _round_up(B, 16)))
    Bp = _round_up(B, tb)

    def pad_gates(w):                  # (4H, ...) -> (4*Hp, ...), zero-pad per gate
        parts = jnp.split(w, 4, axis=0)
        pads = ((0, Hp - H),) + ((0, 0),) * (w.ndim - 1)
        return jnp.concatenate([jnp.pad(p, pads) for p in parts], axis=0)

    wih_p = pad_gates(w_ih).T.astype(jnp.bfloat16)                        # (D, 4Hp)
    whh_p = jnp.pad(pad_gates(w_hh),
                    ((0, 0), (0, Hp - H))).T.astype(jnp.bfloat16)         # (Hp, 4Hp)
    bias_p = pad_gates((b_ih + b_hh).reshape(4 * H, 1))
    bias_p = bias_p.reshape(1, 4 * Hp).astype(jnp.float32)                # (1, 4Hp)

    # Attention weights transposed + a ones column at lane 0: the attention
    # matmul then also produces the per-row hidden-state sum for free on the
    # MXU (no f32 copy of L, no XLU lane reduction in the kernel).
    watt_t = jnp.zeros((Hp, Ap), jnp.float32)
    watt_t = watt_t.at[:H, 0].set(1.0)
    watt_t = watt_t.at[:H, 1:1 + A].set(w_att.T.astype(jnp.float32))
    watt_p = watt_t.astype(jnp.bfloat16)                                  # (Hp, Ap)

    # Cast to bf16 *before* the host-side pad/transpose (halves HBM traffic of
    # the relayout); time-major so each timestep's rows are contiguous.
    xf = jnp.pad(x.reshape(B, T, D).astype(jnp.bfloat16),
                 ((0, Bp - B), (0, 0), (0, 0)))
    xf = jnp.transpose(xf, (1, 0, 2))                                     # (T, Bp, D)

    # Derived VMEM budget: double-buffered pipeline blocks + scratch + 50%.
    bf, f32 = 2, 4
    need = 2 * (T * tb * D * bf            # x tile
                + D * 4 * Hp * bf          # w_ih
                + Hp * 4 * Hp * bf         # w_hh
                + 4 * Hp * f32             # bias
                + Hp * Ap * bf             # w_att
                + tb * Ap * f32)           # out tile
    need += T * tb * (4 * Hp * bf + Hp * bf + Ap * f32)   # xp / lstm / scores
    vmem_limit = min(128 << 20,
                     max(8 << 20, _round_up(need + need // 2, 1 << 20)))

    out = pl.pallas_call(
        hyperedge_kernel,
        out_shape=jax.ShapeDtypeStruct((Bp, Ap), jnp.float32),
        grid_spec=pltpu.PrefetchScalarGridSpec(
            num_scalar_prefetch=0,
            grid=(Bp // tb,),
            in_specs=[
                pl.BlockSpec((T, tb, D), lambda i: (0, i, 0)),
                pl.BlockSpec((D, 4 * Hp), lambda i: (0, 0)),
                pl.BlockSpec((Hp, 4 * Hp), lambda i: (0, 0)),
                pl.BlockSpec((1, 4 * Hp), lambda i: (0, 0)),
                pl.BlockSpec((Hp, Ap), lambda i: (0, 0)),
            ],
            out_specs=pl.BlockSpec((tb, Ap), lambda i: (i, 0)),
            scratch_shapes=[
                pltpu.VMEM((T * tb, 4 * Hp), jnp.bfloat16),   # hoisted x-projection
                pltpu.VMEM((T * tb, Hp), jnp.bfloat16),       # lstm hidden states
                pltpu.VMEM((T * tb, Ap), jnp.float32),        # attention scores
            ],
        ),
        compiler_params=pltpu.CompilerParams(
            dimension_semantics=("parallel",),
            vmem_limit_bytes=vmem_limit,
        ),
    )(xf, wih_p, whh_p, bias_p, watt_p)

    # Column 0 carries the row-sum helper; attention dims live in columns 1..A.
    return out[:B, 1:1 + A].reshape(batch, num_edges, A)


def reference(x, w_ih, w_hh, b_ih, b_hh, w_att):
    """Pure-JAX f32 reference matching the (intended) PyTorch forward."""
    batch, num_edges, T, D = x.shape
    B = batch * num_edges
    H = w_hh.shape[1]
    xf = x.reshape(B, T, D)

    def step(carry, x_t):
        h, c = carry
        gates = x_t @ w_ih.T + h @ w_hh.T + b_ih + b_hh
        i, f, g, o = jnp.split(gates, 4, axis=-1)
        c = jax.nn.sigmoid(f) * c + jax.nn.sigmoid(i) * jnp.tanh(g)
        h = jax.nn.sigmoid(o) * jnp.tanh(c)
        return (h, c), h

    h0 = jnp.zeros((B, H), jnp.float32)
    c0 = jnp.zeros((B, H), jnp.float32)
    _, hs = jax.lax.scan(step, (h0, c0), jnp.swapaxes(xf, 0, 1))
    L = jnp.swapaxes(hs, 0, 1)                          # (B, T, H)
    scores = L @ w_att.T                                # (B, T, A)
    attn = jax.nn.softmax(scores, axis=1)
    weighted = attn * jnp.sum(L, axis=-1, keepdims=True)
    edge = jnp.mean(weighted, axis=1)                   # (B, A)
    return edge.reshape(batch, num_edges, -1)


if __name__ == "__main__":
    # Small shapes: batch=2, num_edges=4, time_series_len=8,
    # time_series_dim=16, lstm_hidden_dim=32, attention_dim=32.
    batch, num_edges, T, D, H, A = 2, 4, 8, 16, 32, 32

    key = jax.random.PRNGKey(0)
    kx, k1, k2, k3, k4, k5 = jax.random.split(key, 6)
    scale = 1.0 / math.sqrt(H)

    x = jax.random.normal(kx, (batch, num_edges, T, D), jnp.float32)
    w_ih = jax.random.uniform(k1, (4 * H, D), jnp.float32, -scale, scale)
    w_hh = jax.random.uniform(k2, (4 * H, H), jnp.float32, -scale, scale)
    b_ih = jax.random.uniform(k3, (4 * H,), jnp.float32, -scale, scale)
    b_hh = jax.random.uniform(k4, (4 * H,), jnp.float32, -scale, scale)
    w_att = jax.random.normal(k5, (A, H), jnp.float32)

    out = hyperedge_embedding(x, w_ih, w_hh, b_ih, b_hh, w_att)
    out = jax.block_until_ready(out)

    ref = reference(x, w_ih, w_hh, b_ih, b_hh, w_att)
    assert out.shape == (batch, num_edges, A), out.shape
    # bf16 MXU operands / bf16 scratch (f32 accumulation) -> loosened tolerance.
    err = float(jnp.max(jnp.abs(out - ref)))
    assert jnp.allclose(out, ref, atol=5e-2, rtol=5e-2), f"max abs err {err}"

    print("KERNEL_OK")
</pallas_src>

<mosaic_0001>
module attributes {stable_mosaic.version = 11 : i64} {
  func.func @hyperedge_kernel(%arg0: i32, %arg1: memref<8x16x16xbf16, #tpu.memory_space<vmem>>, %arg2: memref<16x512xbf16, #tpu.memory_space<vmem>>, %arg3: memref<128x512xbf16, #tpu.memory_space<vmem>>, %arg4: memref<1x512xf32, #tpu.memory_space<vmem>>, %arg5: memref<128x128xbf16, #tpu.memory_space<vmem>>, %arg6: memref<16x128xf32, #tpu.memory_space<vmem>>, %arg7: memref<128x512xbf16, #tpu.memory_space<vmem>>, %arg8: memref<128x128xbf16, #tpu.memory_space<vmem>>, %arg9: memref<128x128xf32, #tpu.memory_space<vmem>>) attributes {dimension_semantics = [#tpu.dimension_semantics<parallel>], iteration_bounds = array<i64: 1>, scalar_prefetch = 0 : i64, scratch_operands = 3 : i64, tpu.core_type = #tpu.core_type<tc>, window_params = [{transform_indices = @transform_0, window_bounds = array<i64: 8, 16, 16>}, {pipeline_mode = #tpu.pipeline_mode<synchronous>, transform_indices = @transform_1, window_bounds = array<i64: 16, 512>}, {pipeline_mode = #tpu.pipeline_mode<synchronous>, transform_indices = @transform_2, window_bounds = array<i64: 128, 512>}, {pipeline_mode = #tpu.pipeline_mode<synchronous>, transform_indices = @transform_3, window_bounds = array<i64: 1, 512>}, {pipeline_mode = #tpu.pipeline_mode<synchronous>, transform_indices = @transform_4, window_bounds = array<i64: 128, 128>}, {transform_indices = @transform_5, window_bounds = array<i64: 16, 128>}]} {
    %c0 = arith.constant 0 : index
    %c0_0 = arith.constant 0 : index
    %c0_1 = arith.constant 0 : index
    %0 = vector.load %arg1[%c0, %c0_0, %c0_1] : memref<8x16x16xbf16, #tpu.memory_space<vmem>>, vector<8x16x16xbf16>
    %1 = vector.shape_cast %0 : vector<8x16x16xbf16> to vector<128x16xbf16>
    %c0_2 = arith.constant 0 : index
    %c0_3 = arith.constant 0 : index
    %2 = vector.load %arg2[%c0_2, %c0_3] : memref<16x512xbf16, #tpu.memory_space<vmem>>, vector<16x512xbf16>
    %cst = arith.constant dense<0.000000e+00> : vector<128x512xf32>
    %3 = tpu.matmul %1, %2, %cst {dimension_numbers = #tpu.dot_dimension_numbers<[1], [0], [0], [1], [0, 0, 1, 1], [], []>} : vector<128x16xbf16>, vector<16x512xbf16>, vector<128x512xf32> -> vector<128x512xf32>
    %c0_4 = arith.constant 0 : index
    %c0_5 = arith.constant 0 : index
    %4 = vector.load %arg4[%c0_4, %c0_5] : memref<1x512xf32, #tpu.memory_space<vmem>>, vector<1x512xf32>
    %5 = vector.broadcast %4 : vector<1x512xf32> to vector<128x512xf32>
    %6 = arith.addf %3, %5 : vector<128x512xf32>
    %7 = arith.truncf %6 : vector<128x512xf32> to vector<128x512xbf16>
    %c0_6 = arith.constant 0 : index
    %c0_7 = arith.constant 0 : index
    %8 = vector.load %arg7[%c0_6, %c0_7] : memref<128x512xbf16, #tpu.memory_space<vmem>>, vector<128x512xbf16>
    tpu.vector_store %arg7[%c0_6, %c0_7], %7 {strides = array<i32>} : memref<128x512xbf16, #tpu.memory_space<vmem>>, vector<128x512xbf16>,
    %cst_8 = arith.constant 0.000000e+00 : f32
    %9 = vector.broadcast %cst_8 : f32 to vector<16x128xf32>
    %cst_9 = arith.constant 0.000000e+00 : f32
    %10 = vector.broadcast %cst_9 : f32 to vector<16x128xf32>
    %c0_i32 = arith.constant 0 : i32
    %c16_i32 = arith.constant 16 : i32
    %11 = arith.muli %c0_i32, %c16_i32 : i32
    %12 = tpu.assume_multiple %11, 16 : i32
    %13 = arith.truncf %9 : vector<16x128xf32> to vector<16x128xbf16>
    %14 = arith.index_cast %12 : i32 to index
    %c128 = arith.constant 128 : index
    %15 = vector.load %arg7[%14, %c128] : memref<128x512xbf16, #tpu.memory_space<vmem>>, vector<16x128xbf16>
    %16 = arith.extf %15 : vector<16x128xbf16> to vector<16x128xf32>
    %c0_10 = arith.constant 0 : index
    %c128_11 = arith.constant 128 : index
    %17 = vector.load %arg3[%c0_10, %c128_11] : memref<128x512xbf16, #tpu.memory_space<vmem>>, vector<128x128xbf16>
    %cst_12 = arith.constant dense<0.000000e+00> : vector<16x128xf32>
    %18 = tpu.matmul %13, %17, %cst_12 {dimension_numbers = #tpu.dot_dimension_numbers<[1], [0], [0], [1], [0, 0, 1, 1], [], []>} : vector<16x128xbf16>, vector<128x128xbf16>, vector<16x128xf32> -> vector<16x128xf32>
    %19 = arith.addf %16, %18 : vector<16x128xf32>
    %cst_13 = arith.constant 5.000000e-01 : f32
    %20 = vector.broadcast %cst_13 : f32 to vector<16x128xf32>
    %21 = arith.mulf %20, %19 : vector<16x128xf32>
    %22 = math.tanh %21 : vector<16x128xf32>
    %cst_14 = arith.constant 5.000000e-01 : f32
    %23 = vector.broadcast %cst_14 : f32 to vector<16x128xf32>
    %24 = arith.mulf %23, %22 : vector<16x128xf32>
    %cst_15 = arith.constant 5.000000e-01 : f32
    %25 = vector.broadcast %cst_15 : f32 to vector<16x128xf32>
    %26 = arith.addf %24, %25 : vector<16x128xf32>
    %27 = arith.mulf %26, %10 : vector<16x128xf32>
    %28 = arith.index_cast %12 : i32 to index
    %c0_16 = arith.constant 0 : index
    %29 = vector.load %arg7[%28, %c0_16] : memref<128x512xbf16, #tpu.memory_space<vmem>>, vector<16x128xbf16>
    %30 = arith.extf %29 : vector<16x128xbf16> to vector<16x128xf32>
    %c0_17 = arith.constant 0 : index
    %c0_18 = arith.constant 0 : index
    %31 = vector.load %arg3[%c0_17, %c0_18] : memref<128x512xbf16, #tpu.memory_space<vmem>>, vector<128x128xbf16>
    %cst_19 = arith.constant dense<0.000000e+00> : vector<16x128xf32>
    %32 = tpu.matmul %13, %31, %cst_19 {dimension_numbers = #tpu.dot_dimension_numbers<[1], [0], [0], [1], [0, 0, 1, 1], [], []>} : vector<16x128xbf16>, vector<128x128xbf16>, vector<16x128xf32> -> vector<16x128xf32>
    %33 = arith.addf %30, %32 : vector<16x128xf32>
    %cst_20 = arith.constant 5.000000e-01 : f32
    %34 = vector.broadcast %cst_20 : f32 to vector<16x128xf32>
    %35 = arith.mulf %34, %33 : vector<16x128xf32>
    %36 = math.tanh %35 : vector<16x128xf32>
    %cst_21 = arith.constant 5.000000e-01 : f32
    %37 = vector.broadcast %cst_21 : f32 to vector<16x128xf32>
    %38 = arith.mulf %37, %36 : vector<16x128xf32>
    %cst_22 = arith.constant 5.000000e-01 : f32
    %39 = vector.broadcast %cst_22 : f32 to vector<16x128xf32>
    %40 = arith.addf %38, %39 : vector<16x128xf32>
    %41 = arith.index_cast %12 : i32 to index
    %c256 = arith.constant 256 : index
    %42 = vector.load %arg7[%41, %c256] : memref<128x512xbf16, #tpu.memory_space<vmem>>, vector<16x128xbf16>
    %43 = arith.extf %42 : vector<16x128xbf16> to vector<16x128xf32>
    %c0_23 = arith.constant 0 : index
    %c256_24 = arith.constant 256 : index
    %44 = vector.load %arg3[%c0_23, %c256_24] : memref<128x512xbf16, #tpu.memory_space<vmem>>, vector<128x128xbf16>
    %cst_25 = arith.constant dense<0.000000e+00> : vector<16x128xf32>
    %45 = tpu.matmul %13, %44, %cst_25 {dimension_numbers = #tpu.dot_dimension_numbers<[1], [0], [0], [1], [0, 0, 1, 1], [], []>} : vector<16x128xbf16>, vector<128x128xbf16>, vector<16x128xf32> -> vector<16x128xf32>
    %46 = arith.addf %43, %45 : vector<16x128xf32>
    %47 = math.tanh %46 : vector<16x128xf32>
    %48 = arith.mulf %40, %47 : vector<16x128xf32>
    %49 = arith.addf %27, %48 : vector<16x128xf32>
    %50 = arith.index_cast %12 : i32 to index
    %c384 = arith.constant 384 : index
    %51 = vector.load %arg7[%50, %c384] : memref<128x512xbf16, #tpu.memory_space<vmem>>, vector<16x128xbf16>
    %52 = arith.extf %51 : vector<16x128xbf16> to vector<16x128xf32>
    %c0_26 = arith.constant 0 : index
    %c384_27 = arith.constant 384 : index
    %53 = vector.load %arg3[%c0_26, %c384_27] : memref<128x512xbf16, #tpu.memory_space<vmem>>, vector<128x128xbf16>
    %cst_28 = arith.constant dense<0.000000e+00> : vector<16x128xf32>
    %54 = tpu.matmul %13, %53, %cst_28 {dimension_numbers = #tpu.dot_dimension_numbers<[1], [0], [0], [1], [0, 0, 1, 1], [], []>} : vector<16x128xbf16>, vector<128x128xbf16>, vector<16x128xf32> -> vector<16x128xf32>
    %55 = arith.addf %52, %54 : vector<16x128xf32>
    %cst_29 = arith.constant 5.000000e-01 : f32
    %56 = vector.broadcast %cst_29 : f32 to vector<16x128xf32>
    %57 = arith.mulf %56, %55 : vector<16x128xf32>
    %58 = math.tanh %57 : vector<16x128xf32>
    %cst_30 = arith.constant 5.000000e-01 : f32
    %59 = vector.broadcast %cst_30 : f32 to vector<16x128xf32>
    %60 = arith.mulf %59, %58 : vector<16x128xf32>
    %cst_31 = arith.constant 5.000000e-01 : f32
    %61 = vector.broadcast %cst_31 : f32 to vector<16x128xf32>
    %62 = arith.addf %60, %61 : vector<16x128xf32>
    %63 = math.tanh %49 : vector<16x128xf32>
    %64 = arith.mulf %62, %63 : vector<16x128xf32>
    %65 = arith.truncf %64 : vector<16x128xf32> to vector<16x128xbf16>
    %66 = arith.index_cast %12 : i32 to index
    %c0_32 = arith.constant 0 : index
    %67 = vector.load %arg8[%66, %c0_32] : memref<128x128xbf16, #tpu.memory_space<vmem>>, vector<16x128xbf16>
    tpu.vector_store %arg8[%66, %c0_32], %65 {strides = array<i32>} : memref<128x128xbf16, #tpu.memory_space<vmem>>, vector<16x128xbf16>,
    %c1_i32 = arith.constant 1 : i32
    %c16_i32_33 = arith.constant 16 : i32
    %68 = arith.muli %c1_i32, %c16_i32_33 : i32
    %69 = tpu.assume_multiple %68, 16 : i32
    %70 = arith.truncf %64 : vector<16x128xf32> to vector<16x128xbf16>
    %71 = arith.index_cast %69 : i32 to index
    %c128_34 = arith.constant 128 : index
    %72 = vector.load %arg7[%71, %c128_34] : memref<128x512xbf16, #tpu.memory_space<vmem>>, vector<16x128xbf16>
    %73 = arith.extf %72 : vector<16x128xbf16> to vector<16x128xf32>
    %c0_35 = arith.constant 0 : index
    %c128_36 = arith.constant 128 : index
    %74 = vector.load %arg3[%c0_35, %c128_36] : memref<128x512xbf16, #tpu.memory_space<vmem>>, vector<128x128xbf16>
    %cst_37 = arith.constant dense<0.000000e+00> : vector<16x128xf32>
    %75 = tpu.matmul %70, %74, %cst_37 {dimension_numbers = #tpu.dot_dimension_numbers<[1], [0], [0], [1], [0, 0, 1, 1], [], []>} : vector<16x128xbf16>, vector<128x128xbf16>, vector<16x128xf32> -> vector<16x128xf32>
    %76 = arith.addf %73, %75 : vector<16x128xf32>
    %cst_38 = arith.constant 5.000000e-01 : f32
    %77 = vector.broadcast %cst_38 : f32 to vector<16x128xf32>
    %78 = arith.mulf %77, %76 : vector<16x128xf32>
    %79 = math.tanh %78 : vector<16x128xf32>
    %cst_39 = arith.constant 5.000000e-01 : f32
    %80 = vector.broadcast %cst_39 : f32 to vector<16x128xf32>
    %81 = arith.mulf %80, %79 : vector<16x128xf32>
    %cst_40 = arith.constant 5.000000e-01 : f32
    %82 = vector.broadcast %cst_40 : f32 to vector<16x128xf32>
    %83 = arith.addf %81, %82 : vector<16x128xf32>
    %84 = arith.mulf %83, %49 : vector<16x128xf32>
    %85 = arith.index_cast %69 : i32 to index
    %c0_41 = arith.constant 0 : index
    %86 = vector.load %arg7[%85, %c0_41] : memref<128x512xbf16, #tpu.memory_space<vmem>>, vector<16x128xbf16>
    %87 = arith.extf %86 : vector<16x128xbf16> to vector<16x128xf32>
    %c0_42 = arith.constant 0 : index
    %c0_43 = arith.constant 0 : index
    %88 = vector.load %arg3[%c0_42, %c0_43] : memref<128x512xbf16, #tpu.memory_space<vmem>>, vector<128x128xbf16>
    %cst_44 = arith.constant dense<0.000000e+00> : vector<16x128xf32>
    %89 = tpu.matmul %70, %88, %cst_44 {dimension_numbers = #tpu.dot_dimension_numbers<[1], [0], [0], [1], [0, 0, 1, 1], [], []>} : vector<16x128xbf16>, vector<128x128xbf16>, vector<16x128xf32> -> vector<16x128xf32>
    %90 = arith.addf %87, %89 : vector<16x128xf32>
    %cst_45 = arith.constant 5.000000e-01 : f32
    %91 = vector.broadcast %cst_45 : f32 to vector<16x128xf32>
    %92 = arith.mulf %91, %90 : vector<16x128xf32>
    %93 = math.tanh %92 : vector<16x128xf32>
    %cst_46 = arith.constant 5.000000e-01 : f32
    %94 = vector.broadcast %cst_46 : f32 to vector<16x128xf32>
    %95 = arith.mulf %94, %93 : vector<16x128xf32>
    %cst_47 = arith.constant 5.000000e-01 : f32
    %96 = vector.broadcast %cst_47 : f32 to vector<16x128xf32>
    %97 = arith.addf %95, %96 : vector<16x128xf32>
    %98 = arith.index_cast %69 : i32 to index
    %c256_48 = arith.constant 256 : index
    %99 = vector.load %arg7[%98, %c256_48] : memref<128x512xbf16, #tpu.memory_space<vmem>>, vector<16x128xbf16>
    %100 = arith.extf %99 : vector<16x128xbf16> to vector<16x128xf32>
    %c0_49 = arith.constant 0 : index
    %c256_50 = arith.constant 256 : index
    %101 = vector.load %arg3[%c0_49, %c256_50] : memref<128x512xbf16, #tpu.memory_space<vmem>>, vector<128x128xbf16>
    %cst_51 = arith.constant dense<0.000000e+00> : vector<16x128xf32>
    %102 = tpu.matmul %70, %101, %cst_51 {dimension_numbers = #tpu.dot_dimension_numbers<[1], [0], [0], [1], [0, 0, 1, 1], [], []>} : vector<16x128xbf16>, vector<128x128xbf16>, vector<16x128xf32> -> vector<16x128xf32>
    %103 = arith.addf %100, %102 : vector<16x128xf32>
    %104 = math.tanh %103 : vector<16x128xf32>
    %105 = arith.mulf %97, %104 : vector<16x128xf32>
    %106 = arith.addf %84, %105 : vector<16x128xf32>
    %107 = arith.index_cast %69 : i32 to index
    %c384_52 = arith.constant 384 : index
    %108 = vector.load %arg7[%107, %c384_52] : memref<128x512xbf16, #tpu.memory_space<vmem>>, vector<16x128xbf16>
    %109 = arith.extf %108 : vector<16x128xbf16> to vector<16x128xf32>
    %c0_53 = arith.constant 0 : index
    %c384_54 = arith.constant 384 : index
    %110 = vector.load %arg3[%c0_53, %c384_54] : memref<128x512xbf16, #tpu.memory_space<vmem>>, vector<128x128xbf16>
    %cst_55 = arith.constant dense<0.000000e+00> : vector<16x128xf32>
    %111 = tpu.matmul %70, %110, %cst_55 {dimension_numbers = #tpu.dot_dimension_numbers<[1], [0], [0], [1], [0, 0, 1, 1], [], []>} : vector<16x128xbf16>, vector<128x128xbf16>, vector<16x128xf32> -> vector<16x128xf32>
    %112 = arith.addf %109, %111 : vector<16x128xf32>
    %cst_56 = arith.constant 5.000000e-01 : f32
    %113 = vector.broadcast %cst_56 : f32 to vector<16x128xf32>
    %114 = arith.mulf %113, %112 : vector<16x128xf32>
    %115 = math.tanh %114 : vector<16x128xf32>
    %cst_57 = arith.constant 5.000000e-01 : f32
    %116 = vector.broadcast %cst_57 : f32 to vector<16x128xf32>
    %117 = arith.mulf %116, %115 : vector<16x128xf32>
    %cst_58 = arith.constant 5.000000e-01 : f32
    %118 = vector.broadcast %cst_58 : f32 to vector<16x128xf32>
    %119 = arith.addf %117, %118 : vector<16x128xf32>
    %120 = math.tanh %106 : vector<16x128xf32>
    %121 = arith.mulf %119, %120 : vector<16x128xf32>
    %122 = arith.truncf %121 : vector<16x128xf32> to vector<16x128xbf16>
    %123 = arith.index_cast %69 : i32 to index
    %c0_59 = arith.constant 0 : index
    %124 = vector.load %arg8[%123, %c0_59] : memref<128x128xbf16, #tpu.memory_space<vmem>>, vector<16x128xbf16>
    tpu.vector_store %arg8[%123, %c0_59], %122 {strides = array<i32>} : memref<128x128xbf16, #tpu.memory_space<vmem>>, vector<16x128xbf16>,
    %c2_i32 = arith.constant 2 : i32
    %c16_i32_60 = arith.constant 16 : i32
    %125 = arith.muli %c2_i32, %c16_i32_60 : i32
    %126 = tpu.assume_multiple %125, 16 : i32
    %127 = arith.truncf %121 : vector<16x128xf32> to vector<16x128xbf16>
    %128 = arith.index_cast %126 : i32 to index
    %c128_61 = arith.constant 128 : index
    %129 = vector.load %arg7[%128, %c128_61] : memref<128x512xbf16, #tpu.memory_space<vmem>>, vector<16x128xbf16>
    %130 = arith.extf %129 : vector<16x128xbf16> to vector<16x128xf32>
    %c0_62 = arith.constant 0 : index
    %c128_63 = arith.constant 128 : index
    %131 = vector.load %arg3[%c0_62, %c128_63] : memref<128x512xbf16, #tpu.memory_space<vmem>>, vector<128x128xbf16>
    %cst_64 = arith.constant dense<0.000000e+00> : vector<16x128xf32>
    %132 = tpu.matmul %127, %131, %cst_64 {dimension_numbers = #tpu.dot_dimension_numbers<[1], [0], [0], [1], [0, 0, 1, 1], [], []>} : vector<16x128xbf16>, vector<128x128xbf16>, vector<16x128xf32> -> vector<16x128xf32>
    %133 = arith.addf %130, %132 : vector<16x128xf32>
    %cst_65 = arith.constant 5.000000e-01 : f32
    %134 = vector.broadcast %cst_65 : f32 to vector<16x128xf32>
    %135 = arith.mulf %134, %133 : vector<16x128xf32>
    %136 = math.tanh %135 : vector<16x128xf32>
    %cst_66 = arith.constant 5.000000e-01 : f32
    %137 = vector.broadcast %cst_66 : f32 to vector<16x128xf32>
    %138 = arith.mulf %137, %136 : vector<16x128xf32>
    %cst_67 = arith.constant 5.000000e-01 : f32
    %139 = vector.broadcast %cst_67 : f32 to vector<16x128xf32>
    %140 = arith.addf %138, %139 : vector<16x128xf32>
    %141 = arith.mulf %140, %106 : vector<16x128xf32>
    %142 = arith.index_cast %126 : i32 to index
    %c0_68 = arith.constant 0 : index
    %143 = vector.load %arg7[%142, %c0_68] : memref<128x512xbf16, #tpu.memory_space<vmem>>, vector<16x128xbf16>
    %144 = arith.extf %143 : vector<16x128xbf16> to vector<16x128xf32>
    %c0_69 = arith.constant 0 : index
    %c0_70 = arith.constant 0 : index
    %145 = vector.load %arg3[%c0_69, %c0_70] : memref<128x512xbf16, #tpu.memory_space<vmem>>, vector<128x128xbf16>
    %cst_71 = arith.constant dense<0.000000e+00> : vector<16x128xf32>
    %146 = tpu.matmul %127, %145, %cst_71 {dimension_numbers = #tpu.dot_dimension_numbers<[1], [0], [0], [1], [0, 0, 1, 1], [], []>} : vector<16x128xbf16>, vector<128x128xbf16>, vector<16x128xf32> -> vector<16x128xf32>
    %147 = arith.addf %144, %146 : vector<16x128xf32>
    %cst_72 = arith.constant 5.000000e-01 : f32
    %148 = vector.broadcast %cst_72 : f32 to vector<16x128xf32>
    %149 = arith.mulf %148, %147 : vector<16x128xf32>
    %150 = math.tanh %149 : vector<16x128xf32>
    %cst_73 = arith.constant 5.000000e-01 : f32
    %151 = vector.broadcast %cst_73 : f32 to vector<16x128xf32>
    %152 = arith.mulf %151, %150 : vector<16x128xf32>
    %cst_74 = arith.constant 5.000000e-01 : f32
    %153 = vector.broadcast %cst_74 : f32 to vector<16x128xf32>
    %154 = arith.addf %152, %153 : vector<16x128xf32>
    %155 = arith.index_cast %126 : i32 to index
    %c256_75 = arith.constant 256 : index
    %156 = vector.load %arg7[%155, %c256_75] : memref<128x512xbf16, #tpu.memory_space<vmem>>, vector<16x128xbf16>
    %157 = arith.extf %156 : vector<16x128xbf16> to vector<16x128xf32>
    %c0_76 = arith.constant 0 : index
    %c256_77 = arith.constant 256 : index
    %158 = vector.load %arg3[%c0_76, %c256_77] : memref<128x512xbf16, #tpu.memory_space<vmem>>, vector<128x128xbf16>
    %cst_78 = arith.constant dense<0.000000e+00> : vector<16x128xf32>
    %159 = tpu.matmul %127, %158, %cst_78 {dimension_numbers = #tpu.dot_dimension_numbers<[1], [0], [0], [1], [0, 0, 1, 1], [], []>} : vector<16x128xbf16>, vector<128x128xbf16>, vector<16x128xf32> -> vector<16x128xf32>
    %160 = arith.addf %157, %159 : vector<16x128xf32>
    %161 = math.tanh %160 : vector<16x128xf32>
    %162 = arith.mulf %154, %161 : vector<16x128xf32>
    %163 = arith.addf %141, %162 : vector<16x128xf32>
    %164 = arith.index_cast %126 : i32 to index
    %c384_79 = arith.constant 384 : index
    %165 = vector.load %arg7[%164, %c384_79] : memref<128x512xbf16, #tpu.memory_space<vmem>>, vector<16x128xbf16>
    %166 = arith.extf %165 : vector<16x128xbf16> to vector<16x128xf32>
    %c0_80 = arith.constant 0 : index
    %c384_81 = arith.constant 384 : index
    %167 = vector.load %arg3[%c0_80, %c384_81] : memref<128x512xbf16, #tpu.memory_space<vmem>>, vector<128x128xbf16>
    %cst_82 = arith.constant dense<0.000000e+00> : vector<16x128xf32>
    %168 = tpu.matmul %127, %167, %cst_82 {dimension_numbers = #tpu.dot_dimension_numbers<[1], [0], [0], [1], [0, 0, 1, 1], [], []>} : vector<16x128xbf16>, vector<128x128xbf16>, vector<16x128xf32> -> vector<16x128xf32>
    %169 = arith.addf %166, %168 : vector<16x128xf32>
    %cst_83 = arith.constant 5.000000e-01 : f32
    %170 = vector.broadcast %cst_83 : f32 to vector<16x128xf32>
    %171 = arith.mulf %170, %169 : vector<16x128xf32>
    %172 = math.tanh %171 : vector<16x128xf32>
    %cst_84 = arith.constant 5.000000e-01 : f32
    %173 = vector.broadcast %cst_84 : f32 to vector<16x128xf32>
    %174 = arith.mulf %173, %172 : vector<16x128xf32>
    %cst_85 = arith.constant 5.000000e-01 : f32
    %175 = vector.broadcast %cst_85 : f32 to vector<16x128xf32>
    %176 = arith.addf %174, %175 : vector<16x128xf32>
    %177 = math.tanh %163 : vector<16x128xf32>
    %178 = arith.mulf %176, %177 : vector<16x128xf32>
    %179 = arith.truncf %178 : vector<16x128xf32> to vector<16x128xbf16>
    %180 = arith.index_cast %126 : i32 to index
    %c0_86 = arith.constant 0 : index
    %181 = vector.load %arg8[%180, %c0_86] : memref<128x128xbf16, #tpu.memory_space<vmem>>, vector<16x128xbf16>
    tpu.vector_store %arg8[%180, %c0_86], %179 {strides = array<i32>} : memref<128x128xbf16, #tpu.memory_space<vmem>>, vector<16x128xbf16>,
    %c3_i32 = arith.constant 3 : i32
    %c16_i32_87 = arith.constant 16 : i32
    %182 = arith.muli %c3_i32, %c16_i32_87 : i32
    %183 = tpu.assume_multiple %182, 16 : i32
    %184 = arith.truncf %178 : vector<16x128xf32> to vector<16x128xbf16>
    %185 = arith.index_cast %183 : i32 to index
    %c128_88 = arith.constant 128 : index
    %186 = vector.load %arg7[%185, %c128_88] : memref<128x512xbf16, #tpu.memory_space<vmem>>, vector<16x128xbf16>
    %187 = arith.extf %186 : vector<16x128xbf16> to vector<16x128xf32>
    %c0_89 = arith.constant 0 : index
    %c128_90 = arith.constant 128 : index
    %188 = vector.load %arg3[%c0_89, %c128_90] : memref<128x512xbf16, #tpu.memory_space<vmem>>, vector<128x128xbf16>
    %cst_91 = arith.constant dense<0.000000e+00> : vector<16x128xf32>
    %189 = tpu.matmul %184, %188, %cst_91 {dimension_numbers = #tpu.dot_dimension_numbers<[1], [0], [0], [1], [0, 0, 1, 1], [], []>} : vector<16x128xbf16>, vector<128x128xbf16>, vector<16x128xf32> -> vector<16x128xf32>
    %190 = arith.addf %187, %189 : vector<16x128xf32>
    %cst_92 = arith.constant 5.000000e-01 : f32
    %191 = vector.broadcast %cst_92 : f32 to vector<16x128xf32>
    %192 = arith.mulf %191, %190 : vector<16x128xf32>
    %193 = math.tanh %192 : vector<16x128xf32>
    %cst_93 = arith.constant 5.000000e-01 : f32
    %194 = vector.broadcast %cst_93 : f32 to vector<16x128xf32>
    %195 = arith.mulf %194, %193 : vector<16x128xf32>
    %cst_94 = arith.constant 5.000000e-01 : f32
    %196 = vector.broadcast %cst_94 : f32 to vector<16x128xf32>
    %197 = arith.addf %195, %196 : vector<16x128xf32>
    %198 = arith.mulf %197, %163 : vector<16x128xf32>
    %199 = arith.index_cast %183 : i32 to index
    %c0_95 = arith.constant 0 : index
    %200 = vector.load %arg7[%199, %c0_95] : memref<128x512xbf16, #tpu.memory_space<vmem>>, vector<16x128xbf16>
    %201 = arith.extf %200 : vector<16x128xbf16> to vector<16x128xf32>
    %c0_96 = arith.constant 0 : index
    %c0_97 = arith.constant 0 : index
    %202 = vector.load %arg3[%c0_96, %c0_97] : memref<128x512xbf16, #tpu.memory_space<vmem>>, vector<128x128xbf16>
    %cst_98 = arith.constant dense<0.000000e+00> : vector<16x128xf32>
    %203 = tpu.matmul %184, %202, %cst_98 {dimension_numbers = #tpu.dot_dimension_numbers<[1], [0], [0], [1], [0, 0, 1, 1], [], []>} : vector<16x128xbf16>, vector<128x128xbf16>, vector<16x128xf32> -> vector<16x128xf32>
    %204 = arith.addf %201, %203 : vector<16x128xf32>
    %cst_99 = arith.constant 5.000000e-01 : f32
    %205 = vector.broadcast %cst_99 : f32 to vector<16x128xf32>
    %206 = arith.mulf %205, %204 : vector<16x128xf32>
    %207 = math.tanh %206 : vector<16x128xf32>
    %cst_100 = arith.constant 5.000000e-01 : f32
    %208 = vector.broadcast %cst_100 : f32 to vector<16x128xf32>
    %209 = arith.mulf %208, %207 : vector<16x128xf32>
    %cst_101 = arith.constant 5.000000e-01 : f32
    %210 = vector.broadcast %cst_101 : f32 to vector<16x128xf32>
    %211 = arith.addf %209, %210 : vector<16x128xf32>
    %212 = arith.index_cast %183 : i32 to index
    %c256_102 = arith.constant 256 : index
    %213 = vector.load %arg7[%212, %c256_102] : memref<128x512xbf16, #tpu.memory_space<vmem>>, vector<16x128xbf16>
    %214 = arith.extf %213 : vector<16x128xbf16> to vector<16x128xf32>
    %c0_103 = arith.constant 0 : index
    %c256_104 = arith.constant 256 : index
    %215 = vector.load %arg3[%c0_103, %c256_104] : memref<128x512xbf16, #tpu.memory_space<vmem>>, vector<128x128xbf16>
    %cst_105 = arith.constant dense<0.000000e+00> : vector<16x128xf32>
    %216 = tpu.matmul %184, %215, %cst_105 {dimension_numbers = #tpu.dot_dimension_numbers<[1], [0], [0], [1], [0, 0, 1, 1], [], []>} : vector<16x128xbf16>, vector<128x128xbf16>, vector<16x128xf32> -> vector<16x128xf32>
    %217 = arith.addf %214, %216 : vector<16x128xf32>
    %218 = math.tanh %217 : vector<16x128xf32>
    %219 = arith.mulf %211, %218 : vector<16x128xf32>
    %220 = arith.addf %198, %219 : vector<16x128xf32>
    %221 = arith.index_cast %183 : i32 to index
    %c384_106 = arith.constant 384 : index
    %222 = vector.load %arg7[%221, %c384_106] : memref<128x512xbf16, #tpu.memory_space<vmem>>, vector<16x128xbf16>
    %223 = arith.extf %222 : vector<16x128xbf16> to vector<16x128xf32>
    %c0_107 = arith.constant 0 : index
    %c384_108 = arith.constant 384 : index
    %224 = vector.load %arg3[%c0_107, %c384_108] : memref<128x512xbf16, #tpu.memory_space<vmem>>, vector<128x128xbf16>
    %cst_109 = arith.constant dense<0.000000e+00> : vector<16x128xf32>
    %225 = tpu.matmul %184, %224, %cst_109 {dimension_numbers = #tpu.dot_dimension_numbers<[1], [0], [0], [1], [0, 0, 1, 1], [], []>} : vector<16x128xbf16>, vector<128x128xbf16>, vector<16x128xf32> -> vector<16x128xf32>
    %226 = arith.addf %223, %225 : vector<16x128xf32>
    %cst_110 = arith.constant 5.000000e-01 : f32
    %227 = vector.broadcast %cst_110 : f32 to vector<16x128xf32>
    %228 = arith.mulf %227, %226 : vector<16x128xf32>
    %229 = math.tanh %228 : vector<16x128xf32>
    %cst_111 = arith.constant 5.000000e-01 : f32
    %230 = vector.broadcast %cst_111 : f32 to vector<16x128xf32>
    %231 = arith.mulf %230, %229 : vector<16x128xf32>
    %cst_112 = arith.constant 5.000000e-01 : f32
    %232 = vector.broadcast %cst_112 : f32 to vector<16x128xf32>
    %233 = arith.addf %231, %232 : vector<16x128xf32>
    %234 = math.tanh %220 : vector<16x128xf32>
    %235 = arith.mulf %233, %234 : vector<16x128xf32>
    %236 = arith.truncf %235 : vector<16x128xf32> to vector<16x128xbf16>
    %237 = arith.index_cast %183 : i32 to index
    %c0_113 = arith.constant 0 : index
    %238 = vector.load %arg8[%237, %c0_113] : memref<128x128xbf16, #tpu.memory_space<vmem>>, vector<16x128xbf16>
    tpu.vector_store %arg8[%237, %c0_113], %236 {strides = array<i32>} : memref<128x128xbf16, #tpu.memory_space<vmem>>, vector<16x128xbf16>,
    %c4_i32 = arith.constant 4 : i32
    %c16_i32_114 = arith.constant 16 : i32
    %239 = arith.muli %c4_i32, %c16_i32_114 : i32
    %240 = tpu.assume_multiple %239, 16 : i32
    %241 = arith.truncf %235 : vector<16x128xf32> to vector<16x128xbf16>
    %242 = arith.index_cast %240 : i32 to index
    %c128_115 = arith.constant 128 : index
    %243 = vector.load %arg7[%242, %c128_115] : memref<128x512xbf16, #tpu.memory_space<vmem>>, vector<16x128xbf16>
    %244 = arith.extf %243 : vector<16x128xbf16> to vector<16x128xf32>
    %c0_116 = arith.constant 0 : index
    %c128_117 = arith.constant 128 : index
    %245 = vector.load %arg3[%c0_116, %c128_117] : memref<128x512xbf16, #tpu.memory_space<vmem>>, vector<128x128xbf16>
    %cst_118 = arith.constant dense<0.000000e+00> : vector<16x128xf32>
    %246 = tpu.matmul %241, %245, %cst_118 {dimension_numbers = #tpu.dot_dimension_numbers<[1], [0], [0], [1], [0, 0, 1, 1], [], []>} : vector<16x128xbf16>, vector<128x128xbf16>, vector<16x128xf32> -> vector<16x128xf32>
    %247 = arith.addf %244, %246 : vector<16x128xf32>
    %cst_119 = arith.constant 5.000000e-01 : f32
    %248 = vector.broadcast %cst_119 : f32 to vector<16x128xf32>
    %249 = arith.mulf %248, %247 : vector<16x128xf32>
    %250 = math.tanh %249 : vector<16x128xf32>
    %cst_120 = arith.constant 5.000000e-01 : f32
    %251 = vector.broadcast %cst_120 : f32 to vector<16x128xf32>
    %252 = arith.mulf %251, %250 : vector<16x128xf32>
    %cst_121 = arith.constant 5.000000e-01 : f32
    %253 = vector.broadcast %cst_121 : f32 to vector<16x128xf32>
    %254 = arith.addf %252, %253 : vector<16x128xf32>
    %255 = arith.mulf %254, %220 : vector<16x128xf32>
    %256 = arith.index_cast %240 : i32 to index
    %c0_122 = arith.constant 0 : index
    %257 = vector.load %arg7[%256, %c0_122] : memref<128x512xbf16, #tpu.memory_space<vmem>>, vector<16x128xbf16>
    %258 = arith.extf %257 : vector<16x128xbf16> to vector<16x128xf32>
    %c0_123 = arith.constant 0 : index
    %c0_124 = arith.constant 0 : index
    %259 = vector.load %arg3[%c0_123, %c0_124] : memref<128x512xbf16, #tpu.memory_space<vmem>>, vector<128x128xbf16>
    %cst_125 = arith.constant dense<0.000000e+00> : vector<16x128xf32>
    %260 = tpu.matmul %241, %259, %cst_125 {dimension_numbers = #tpu.dot_dimension_numbers<[1], [0], [0], [1], [0, 0, 1, 1], [], []>} : vector<16x128xbf16>, vector<128x128xbf16>, vector<16x128xf32> -> vector<16x128xf32>
    %261 = arith.addf %258, %260 : vector<16x128xf32>
    %cst_126 = arith.constant 5.000000e-01 : f32
    %262 = vector.broadcast %cst_126 : f32 to vector<16x128xf32>
    %263 = arith.mulf %262, %261 : vector<16x128xf32>
    %264 = math.tanh %263 : vector<16x128xf32>
    %cst_127 = arith.constant 5.000000e-01 : f32
    %265 = vector.broadcast %cst_127 : f32 to vector<16x128xf32>
    %266 = arith.mulf %265, %264 : vector<16x128xf32>
    %cst_128 = arith.constant 5.000000e-01 : f32
    %267 = vector.broadcast %cst_128 : f32 to vector<16x128xf32>
    %268 = arith.addf %266, %267 : vector<16x128xf32>
    %269 = arith.index_cast %240 : i32 to index
    %c256_129 = arith.constant 256 : index
    %270 = vector.load %arg7[%269, %c256_129] : memref<128x512xbf16, #tpu.memory_space<vmem>>, vector<16x128xbf16>
    %271 = arith.extf %270 : vector<16x128xbf16> to vector<16x128xf32>
    %c0_130 = arith.constant 0 : index
    %c256_131 = arith.constant 256 : index
    %272 = vector.load %arg3[%c0_130, %c256_131] : memref<128x512xbf16, #tpu.memory_space<vmem>>, vector<128x128xbf16>
    %cst_132 = arith.constant dense<0.000000e+00> : vector<16x128xf32>
    %273 = tpu.matmul %241, %272, %cst_132 {dimension_numbers = #tpu.dot_dimension_numbers<[1], [0], [0], [1], [0, 0, 1, 1], [], []>} : vector<16x128xbf16>, vector<128x128xbf16>, vector<16x128xf32> -> vector<16x128xf32>
    %274 = arith.addf %271, %273 : vector<16x128xf32>
    %275 = math.tanh %274 : vector<16x128xf32>
    %276 = arith.mulf %268, %275 : vector<16x128xf32>
    %277 = arith.addf %255, %276 : vector<16x128xf32>
    %278 = arith.index_cast %240 : i32 to index
    %c384_133 = arith.constant 384 : index
    %279 = vector.load %arg7[%278, %c384_133] : memref<128x512xbf16, #tpu.memory_space<vmem>>, vector<16x128xbf16>
    %280 = arith.extf %279 : vector<16x128xbf16> to vector<16x128xf32>
    %c0_134 = arith.constant 0 : index
    %c384_135 = arith.constant 384 : index
    %281 = vector.load %arg3[%c0_134, %c384_135] : memref<128x512xbf16, #tpu.memory_space<vmem>>, vector<128x128xbf16>
    %cst_136 = arith.constant dense<0.000000e+00> : vector<16x128xf32>
    %282 = tpu.matmul %241, %281, %cst_136 {dimension_numbers = #tpu.dot_dimension_numbers<[1], [0], [0], [1], [0, 0, 1, 1], [], []>} : vector<16x128xbf16>, vector<128x128xbf16>, vector<16x128xf32> -> vector<16x128xf32>
    %283 = arith.addf %280, %282 : vector<16x128xf32>
    %cst_137 = arith.constant 5.000000e-01 : f32
    %284 = vector.broadcast %cst_137 : f32 to vector<16x128xf32>
    %285 = arith.mulf %284, %283 : vector<16x128xf32>
    %286 = math.tanh %285 : vector<16x128xf32>
    %cst_138 = arith.constant 5.000000e-01 : f32
    %287 = vector.broadcast %cst_138 : f32 to vector<16x128xf32>
    %288 = arith.mulf %287, %286 : vector<16x128xf32>
    %cst_139 = arith.constant 5.000000e-01 : f32
    %289 = vector.broadcast %cst_139 : f32 to vector<16x128xf32>
    %290 = arith.addf %288, %289 : vector<16x128xf32>
    %291 = math.tanh %277 : vector<16x128xf32>
    %292 = arith.mulf %290, %291 : vector<16x128xf32>
    %293 = arith.truncf %292 : vector<16x128xf32> to vector<16x128xbf16>
    %294 = arith.index_cast %240 : i32 to index
    %c0_140 = arith.constant 0 : index
    %295 = vector.load %arg8[%294, %c0_140] : memref<128x128xbf16, #tpu.memory_space<vmem>>, vector<16x128xbf16>
    tpu.vector_store %arg8[%294, %c0_140], %293 {strides = array<i32>} : memref<128x128xbf16, #tpu.memory_space<vmem>>, vector<16x128xbf16>,
    %c5_i32 = arith.constant 5 : i32
    %c16_i32_141 = arith.constant 16 : i32
    %296 = arith.muli %c5_i32, %c16_i32_141 : i32
    %297 = tpu.assume_multiple %296, 16 : i32
    %298 = arith.truncf %292 : vector<16x128xf32> to vector<16x128xbf16>
    %299 = arith.index_cast %297 : i32 to index
    %c128_142 = arith.constant 128 : index
    %300 = vector.load %arg7[%299, %c128_142] : memref<128x512xbf16, #tpu.memory_space<vmem>>, vector<16x128xbf16>
    %301 = arith.extf %300 : vector<16x128xbf16> to vector<16x128xf32>
    %c0_143 = arith.constant 0 : index
    %c128_144 = arith.constant 128 : index
    %302 = vector.load %arg3[%c0_143, %c128_144] : memref<128x512xbf16, #tpu.memory_space<vmem>>, vector<128x128xbf16>
    %cst_145 = arith.constant dense<0.000000e+00> : vector<16x128xf32>
    %303 = tpu.matmul %298, %302, %cst_145 {dimension_numbers = #tpu.dot_dimension_numbers<[1], [0], [0], [1], [0, 0, 1, 1], [], []>} : vector<16x128xbf16>, vector<128x128xbf16>, vector<16x128xf32> -> vector<16x128xf32>
    %304 = arith.addf %301, %303 : vector<16x128xf32>
    %cst_146 = arith.constant 5.000000e-01 : f32
    %305 = vector.broadcast %cst_146 : f32 to vector<16x128xf32>
    %306 = arith.mulf %305, %304 : vector<16x128xf32>
    %307 = math.tanh %306 : vector<16x128xf32>
    %cst_147 = arith.constant 5.000000e-01 : f32
    %308 = vector.broadcast %cst_147 : f32 to vector<16x128xf32>
    %309 = arith.mulf %308, %307 : vector<16x128xf32>
    %cst_148 = arith.constant 5.000000e-01 : f32
    %310 = vector.broadcast %cst_148 : f32 to vector<16x128xf32>
    %311 = arith.addf %309, %310 : vector<16x128xf32>
    %312 = arith.mulf %311, %277 : vector<16x128xf32>
    %313 = arith.index_cast %297 : i32 to index
    %c0_149 = arith.constant 0 : index
    %314 = vector.load %arg7[%313, %c0_149] : memref<128x512xbf16, #tpu.memory_space<vmem>>, vector<16x128xbf16>
    %315 = arith.extf %314 : vector<16x128xbf16> to vector<16x128xf32>
    %c0_150 = arith.constant 0 : index
    %c0_151 = arith.constant 0 : index
    %316 = vector.load %arg3[%c0_150, %c0_151] : memref<128x512xbf16, #tpu.memory_space<vmem>>, vector<128x128xbf16>
    %cst_152 = arith.constant dense<0.000000e+00> : vector<16x128xf32>
    %317 = tpu.matmul %298, %316, %cst_152 {dimension_numbers = #tpu.dot_dimension_numbers<[1], [0], [0], [1], [0, 0, 1, 1], [], []>} : vector<16x128xbf16>, vector<128x128xbf16>, vector<16x128xf32> -> vector<16x128xf32>
    %318 = arith.addf %315, %317 : vector<16x128xf32>
    %cst_153 = arith.constant 5.000000e-01 : f32
    %319 = vector.broadcast %cst_153 : f32 to vector<16x128xf32>
    %320 = arith.mulf %319, %318 : vector<16x128xf32>
    %321 = math.tanh %320 : vector<16x128xf32>
    %cst_154 = arith.constant 5.000000e-01 : f32
    %322 = vector.broadcast %cst_154 : f32 to vector<16x128xf32>
    %323 = arith.mulf %322, %321 : vector<16x128xf32>
    %cst_155 = arith.constant 5.000000e-01 : f32
    %324 = vector.broadcast %cst_155 : f32 to vector<16x128xf32>
    %325 = arith.addf %323, %324 : vector<16x128xf32>
    %326 = arith.index_cast %297 : i32 to index
    %c256_156 = arith.constant 256 : index
    %327 = vector.load %arg7[%326, %c256_156] : memref<128x512xbf16, #tpu.memory_space<vmem>>, vector<16x128xbf16>
    %328 = arith.extf %327 : vector<16x128xbf16> to vector<16x128xf32>
    %c0_157 = arith.constant 0 : index
    %c256_158 = arith.constant 256 : index
    %329 = vector.load %arg3[%c0_157, %c256_158] : memref<128x512xbf16, #tpu.memory_space<vmem>>, vector<128x128xbf16>
    %cst_159 = arith.constant dense<0.000000e+00> : vector<16x128xf32>
    %330 = tpu.matmul %298, %329, %cst_159 {dimension_numbers = #tpu.dot_dimension_numbers<[1], [0], [0], [1], [0, 0, 1, 1], [], []>} : vector<16x128xbf16>, vector<128x128xbf16>, vector<16x128xf32> -> vector<16x128xf32>
    %331 = arith.addf %328, %330 : vector<16x128xf32>
    %332 = math.tanh %331 : vector<16x128xf32>
    %333 = arith.mulf %325, %332 : vector<16x128xf32>
    %334 = arith.addf %312, %333 : vector<16x128xf32>
    %335 = arith.index_cast %297 : i32 to index
    %c384_160 = arith.constant 384 : index
    %336 = vector.load %arg7[%335, %c384_160] : memref<128x512xbf16, #tpu.memory_space<vmem>>, vector<16x128xbf16>
    %337 = arith.extf %336 : vector<16x128xbf16> to vector<16x128xf32>
    %c0_161 = arith.constant 0 : index
    %c384_162 = arith.constant 384 : index
    %338 = vector.load %arg3[%c0_161, %c384_162] : memref<128x512xbf16, #tpu.memory_space<vmem>>, vector<128x128xbf16>
    %cst_163 = arith.constant dense<0.000000e+00> : vector<16x128xf32>
    %339 = tpu.matmul %298, %338, %cst_163 {dimension_numbers = #tpu.dot_dimension_numbers<[1], [0], [0], [1], [0, 0, 1, 1], [], []>} : vector<16x128xbf16>, vector<128x128xbf16>, vector<16x128xf32> -> vector<16x128xf32>
    %340 = arith.addf %337, %339 : vector<16x128xf32>
    %cst_164 = arith.constant 5.000000e-01 : f32
    %341 = vector.broadcast %cst_164 : f32 to vector<16x128xf32>
    %342 = arith.mulf %341, %340 : vector<16x128xf32>
    %343 = math.tanh %342 : vector<16x128xf32>
    %cst_165 = arith.constant 5.000000e-01 : f32
    %344 = vector.broadcast %cst_165 : f32 to vector<16x128xf32>
    %345 = arith.mulf %344, %343 : vector<16x128xf32>
    %cst_166 = arith.constant 5.000000e-01 : f32
    %346 = vector.broadcast %cst_166 : f32 to vector<16x128xf32>
    %347 = arith.addf %345, %346 : vector<16x128xf32>
    %348 = math.tanh %334 : vector<16x128xf32>
    %349 = arith.mulf %347, %348 : vector<16x128xf32>
    %350 = arith.truncf %349 : vector<16x128xf32> to vector<16x128xbf16>
    %351 = arith.index_cast %297 : i32 to index
    %c0_167 = arith.constant 0 : index
    %352 = vector.load %arg8[%351, %c0_167] : memref<128x128xbf16, #tpu.memory_space<vmem>>, vector<16x128xbf16>
    tpu.vector_store %arg8[%351, %c0_167], %350 {strides = array<i32>} : memref<128x128xbf16, #tpu.memory_space<vmem>>, vector<16x128xbf16>,
    %c6_i32 = arith.constant 6 : i32
    %c16_i32_168 = arith.constant 16 : i32
    %353 = arith.muli %c6_i32, %c16_i32_168 : i32
    %354 = tpu.assume_multiple %353, 16 : i32
    %355 = arith.truncf %349 : vector<16x128xf32> to vector<16x128xbf16>
    %356 = arith.index_cast %354 : i32 to index
    %c128_169 = arith.constant 128 : index
    %357 = vector.load %arg7[%356, %c128_169] : memref<128x512xbf16, #tpu.memory_space<vmem>>, vector<16x128xbf16>
    %358 = arith.extf %357 : vector<16x128xbf16> to vector<16x128xf32>
    %c0_170 = arith.constant 0 : index
    %c128_171 = arith.constant 128 : index
    %359 = vector.load %arg3[%c0_170, %c128_171] : memref<128x512xbf16, #tpu.memory_space<vmem>>, vector<128x128xbf16>
    %cst_172 = arith.constant dense<0.000000e+00> : vector<16x128xf32>
    %360 = tpu.matmul %355, %359, %cst_172 {dimension_numbers = #tpu.dot_dimension_numbers<[1], [0], [0], [1], [0, 0, 1, 1], [], []>} : vector<16x128xbf16>, vector<128x128xbf16>, vector<16x128xf32> -> vector<16x128xf32>
    %361 = arith.addf %358, %360 : vector<16x128xf32>
    %cst_173 = arith.constant 5.000000e-01 : f32
    %362 = vector.broadcast %cst_173 : f32 to vector<16x128xf32>
    %363 = arith.mulf %362, %361 : vector<16x128xf32>
    %364 = math.tanh %363 : vector<16x128xf32>
    %cst_174 = arith.constant 5.000000e-01 : f32
    %365 = vector.broadcast %cst_174 : f32 to vector<16x128xf32>
    %366 = arith.mulf %365, %364 : vector<16x128xf32>
    %cst_175 = arith.constant 5.000000e-01 : f32
    %367 = vector.broadcast %cst_175 : f32 to vector<16x128xf32>
    %368 = arith.addf %366, %367 : vector<16x128xf32>
    %369 = arith.mulf %368, %334 : vector<16x128xf32>
    %370 = arith.index_cast %354 : i32 to index
    %c0_176 = arith.constant 0 : index
    %371 = vector.load %arg7[%370, %c0_176] : memref<128x512xbf16, #tpu.memory_space<vmem>>, vector<16x128xbf16>
    %372 = arith.extf %371 : vector<16x128xbf16> to vector<16x128xf32>
    %c0_177 = arith.constant 0 : index
    %c0_178 = arith.constant 0 : index
    %373 = vector.load %arg3[%c0_177, %c0_178] : memref<128x512xbf16, #tpu.memory_space<vmem>>, vector<128x128xbf16>
    %cst_179 = arith.constant dense<0.000000e+00> : vector<16x128xf32>
    %374 = tpu.matmul %355, %373, %cst_179 {dimension_numbers = #tpu.dot_dimension_numbers<[1], [0], [0], [1], [0, 0, 1, 1], [], []>} : vector<16x128xbf16>, vector<128x128xbf16>, vector<16x128xf32> -> vector<16x128xf32>
    %375 = arith.addf %372, %374 : vector<16x128xf32>
    %cst_180 = arith.constant 5.000000e-01 : f32
    %376 = vector.broadcast %cst_180 : f32 to vector<16x128xf32>
    %377 = arith.mulf %376, %375 : vector<16x128xf32>
    %378 = math.tanh %377 : vector<16x128xf32>
    %cst_181 = arith.constant 5.000000e-01 : f32
    %379 = vector.broadcast %cst_181 : f32 to vector<16x128xf32>
    %380 = arith.mulf %379, %378 : vector<16x128xf32>
    %cst_182 = arith.constant 5.000000e-01 : f32
    %381 = vector.broadcast %cst_182 : f32 to vector<16x128xf32>
    %382 = arith.addf %380, %381 : vector<16x128xf32>
    %383 = arith.index_cast %354 : i32 to index
    %c256_183 = arith.constant 256 : index
    %384 = vector.load %arg7[%383, %c256_183] : memref<128x512xbf16, #tpu.memory_space<vmem>>, vector<16x128xbf16>
    %385 = arith.extf %384 : vector<16x128xbf16> to vector<16x128xf32>
    %c0_184 = arith.constant 0 : index
    %c256_185 = arith.constant 256 : index
    %386 = vector.load %arg3[%c0_184, %c256_185] : memref<128x512xbf16, #tpu.memory_space<vmem>>, vector<128x128xbf16>
    %cst_186 = arith.constant dense<0.000000e+00> : vector<16x128xf32>
    %387 = tpu.matmul %355, %386, %cst_186 {dimension_numbers = #tpu.dot_dimension_numbers<[1], [0], [0], [1], [0, 0, 1, 1], [], []>} : vector<16x128xbf16>, vector<128x128xbf16>, vector<16x128xf32> -> vector<16x128xf32>
    %388 = arith.addf %385, %387 : vector<16x128xf32>
    %389 = math.tanh %388 : vector<16x128xf32>
    %390 = arith.mulf %382, %389 : vector<16x128xf32>
    %391 = arith.addf %369, %390 : vector<16x128xf32>
    %392 = arith.index_cast %354 : i32 to index
    %c384_187 = arith.constant 384 : index
    %393 = vector.load %arg7[%392, %c384_187] : memref<128x512xbf16, #tpu.memory_space<vmem>>, vector<16x128xbf16>
    %394 = arith.extf %393 : vector<16x128xbf16> to vector<16x128xf32>
    %c0_188 = arith.constant 0 : index
    %c384_189 = arith.constant 384 : index
    %395 = vector.load %arg3[%c0_188, %c384_189] : memref<128x512xbf16, #tpu.memory_space<vmem>>, vector<128x128xbf16>
    %cst_190 = arith.constant dense<0.000000e+00> : vector<16x128xf32>
    %396 = tpu.matmul %355, %395, %cst_190 {dimension_numbers = #tpu.dot_dimension_numbers<[1], [0], [0], [1], [0, 0, 1, 1], [], []>} : vector<16x128xbf16>, vector<128x128xbf16>, vector<16x128xf32> -> vector<16x128xf32>
    %397 = arith.addf %394, %396 : vector<16x128xf32>
    %cst_191 = arith.constant 5.000000e-01 : f32
    %398 = vector.broadcast %cst_191 : f32 to vector<16x128xf32>
    %399 = arith.mulf %398, %397 : vector<16x128xf32>
    %400 = math.tanh %399 : vector<16x128xf32>
    %cst_192 = arith.constant 5.000000e-01 : f32
    %401 = vector.broadcast %cst_192 : f32 to vector<16x128xf32>
    %402 = arith.mulf %401, %400 : vector<16x128xf32>
    %cst_193 = arith.constant 5.000000e-01 : f32
    %403 = vector.broadcast %cst_193 : f32 to vector<16x128xf32>
    %404 = arith.addf %402, %403 : vector<16x128xf32>
    %405 = math.tanh %391 : vector<16x128xf32>
    %406 = arith.mulf %404, %405 : vector<16x128xf32>
    %407 = arith.truncf %406 : vector<16x128xf32> to vector<16x128xbf16>
    %408 = arith.index_cast %354 : i32 to index
    %c0_194 = arith.constant 0 : index
    %409 = vector.load %arg8[%408, %c0_194] : memref<128x128xbf16, #tpu.memory_space<vmem>>, vector<16x128xbf16>
    tpu.vector_store %arg8[%408, %c0_194], %407 {strides = array<i32>} : memref<128x128xbf16, #tpu.memory_space<vmem>>, vector<16x128xbf16>,
    %c7_i32 = arith.constant 7 : i32
    %c16_i32_195 = arith.constant 16 : i32
    %410 = arith.muli %c7_i32, %c16_i32_195 : i32
    %411 = tpu.assume_multiple %410, 16 : i32
    %412 = arith.truncf %406 : vector<16x128xf32> to vector<16x128xbf16>
    %413 = arith.index_cast %411 : i32 to index
    %c128_196 = arith.constant 128 : index
    %414 = vector.load %arg7[%413, %c128_196] : memref<128x512xbf16, #tpu.memory_space<vmem>>, vector<16x128xbf16>
    %415 = arith.extf %414 : vector<16x128xbf16> to vector<16x128xf32>
    %c0_197 = arith.constant 0 : index
    %c128_198 = arith.constant 128 : index
    %416 = vector.load %arg3[%c0_197, %c128_198] : memref<128x512xbf16, #tpu.memory_space<vmem>>, vector<128x128xbf16>
    %cst_199 = arith.constant dense<0.000000e+00> : vector<16x128xf32>
    %417 = tpu.matmul %412, %416, %cst_199 {dimension_numbers = #tpu.dot_dimension_numbers<[1], [0], [0], [1], [0, 0, 1, 1], [], []>} : vector<16x128xbf16>, vector<128x128xbf16>, vector<16x128xf32> -> vector<16x128xf32>
    %418 = arith.addf %415, %417 : vector<16x128xf32>
    %cst_200 = arith.constant 5.000000e-01 : f32
    %419 = vector.broadcast %cst_200 : f32 to vector<16x128xf32>
    %420 = arith.mulf %419, %418 : vector<16x128xf32>
    %421 = math.tanh %420 : vector<16x128xf32>
    %cst_201 = arith.constant 5.000000e-01 : f32
    %422 = vector.broadcast %cst_201 : f32 to vector<16x128xf32>
    %423 = arith.mulf %422, %421 : vector<16x128xf32>
    %cst_202 = arith.constant 5.000000e-01 : f32
    %424 = vector.broadcast %cst_202 : f32 to vector<16x128xf32>
    %425 = arith.addf %423, %424 : vector<16x128xf32>
    %426 = arith.mulf %425, %391 : vector<16x128xf32>
    %427 = arith.index_cast %411 : i32 to index
    %c0_203 = arith.constant 0 : index
    %428 = vector.load %arg7[%427, %c0_203] : memref<128x512xbf16, #tpu.memory_space<vmem>>, vector<16x128xbf16>
    %429 = arith.extf %428 : vector<16x128xbf16> to vector<16x128xf32>
    %c0_204 = arith.constant 0 : index
    %c0_205 = arith.constant 0 : index
    %430 = vector.load %arg3[%c0_204, %c0_205] : memref<128x512xbf16, #tpu.memory_space<vmem>>, vector<128x128xbf16>
    %cst_206 = arith.constant dense<0.000000e+00> : vector<16x128xf32>
    %431 = tpu.matmul %412, %430, %cst_206 {dimension_numbers = #tpu.dot_dimension_numbers<[1], [0], [0], [1], [0, 0, 1, 1], [], []>} : vector<16x128xbf16>, vector<128x128xbf16>, vector<16x128xf32> -> vector<16x128xf32>
    %432 = arith.addf %429, %431 : vector<16x128xf32>
    %cst_207 = arith.constant 5.000000e-01 : f32
    %433 = vector.broadcast %cst_207 : f32 to vector<16x128xf32>
    %434 = arith.mulf %433, %432 : vector<16x128xf32>
    %435 = math.tanh %434 : vector<16x128xf32>
    %cst_208 = arith.constant 5.000000e-01 : f32
    %436 = vector.broadcast %cst_208 : f32 to vector<16x128xf32>
    %437 = arith.mulf %436, %435 : vector<16x128xf32>
    %cst_209 = arith.constant 5.000000e-01 : f32
    %438 = vector.broadcast %cst_209 : f32 to vector<16x128xf32>
    %439 = arith.addf %437, %438 : vector<16x128xf32>
    %440 = arith.index_cast %411 : i32 to index
    %c256_210 = arith.constant 256 : index
    %441 = vector.load %arg7[%440, %c256_210] : memref<128x512xbf16, #tpu.memory_space<vmem>>, vector<16x128xbf16>
    %442 = arith.extf %441 : vector<16x128xbf16> to vector<16x128xf32>
    %c0_211 = arith.constant 0 : index
    %c256_212 = arith.constant 256 : index
    %443 = vector.load %arg3[%c0_211, %c256_212] : memref<128x512xbf16, #tpu.memory_space<vmem>>, vector<128x128xbf16>
    %cst_213 = arith.constant dense<0.000000e+00> : vector<16x128xf32>
    %444 = tpu.matmul %412, %443, %cst_213 {dimension_numbers = #tpu.dot_dimension_numbers<[1], [0], [0], [1], [0, 0, 1, 1], [], []>} : vector<16x128xbf16>, vector<128x128xbf16>, vector<16x128xf32> -> vector<16x128xf32>
    %445 = arith.addf %442, %444 : vector<16x128xf32>
    %446 = math.tanh %445 : vector<16x128xf32>
    %447 = arith.mulf %439, %446 : vector<16x128xf32>
    %448 = arith.addf %426, %447 : vector<16x128xf32>
    %449 = arith.index_cast %411 : i32 to index
    %c384_214 = arith.constant 384 : index
    %450 = vector.load %arg7[%449, %c384_214] : memref<128x512xbf16, #tpu.memory_space<vmem>>, vector<16x128xbf16>
    %451 = arith.extf %450 : vector<16x128xbf16> to vector<16x128xf32>
    %c0_215 = arith.constant 0 : index
    %c384_216 = arith.constant 384 : index
    %452 = vector.load %arg3[%c0_215, %c384_216] : memref<128x512xbf16, #tpu.memory_space<vmem>>, vector<128x128xbf16>
    %cst_217 = arith.constant dense<0.000000e+00> : vector<16x128xf32>
    %453 = tpu.matmul %412, %452, %cst_217 {dimension_numbers = #tpu.dot_dimension_numbers<[1], [0], [0], [1], [0, 0, 1, 1], [], []>} : vector<16x128xbf16>, vector<128x128xbf16>, vector<16x128xf32> -> vector<16x128xf32>
    %454 = arith.addf %451, %453 : vector<16x128xf32>
    %cst_218 = arith.constant 5.000000e-01 : f32
    %455 = vector.broadcast %cst_218 : f32 to vector<16x128xf32>
    %456 = arith.mulf %455, %454 : vector<16x128xf32>
    %457 = math.tanh %456 : vector<16x128xf32>
    %cst_219 = arith.constant 5.000000e-01 : f32
    %458 = vector.broadcast %cst_219 : f32 to vector<16x128xf32>
    %459 = arith.mulf %458, %457 : vector<16x128xf32>
    %cst_220 = arith.constant 5.000000e-01 : f32
    %460 = vector.broadcast %cst_220 : f32 to vector<16x128xf32>
    %461 = arith.addf %459, %460 : vector<16x128xf32>
    %462 = math.tanh %448 : vector<16x128xf32>
    %463 = arith.mulf %461, %462 : vector<16x128xf32>
    %464 = arith.truncf %463 : vector<16x128xf32> to vector<16x128xbf16>
    %465 = arith.index_cast %411 : i32 to index
    %c0_221 = arith.constant 0 : index
    %466 = vector.load %arg8[%465, %c0_221] : memref<128x128xbf16, #tpu.memory_space<vmem>>, vector<16x128xbf16>
    tpu.vector_store %arg8[%465, %c0_221], %464 {strides = array<i32>} : memref<128x128xbf16, #tpu.memory_space<vmem>>, vector<16x128xbf16>,
    %c8_i32 = arith.constant 8 : i32
    %c0_222 = arith.constant 0 : index
    %c0_223 = arith.constant 0 : index
    %467 = vector.load %arg8[%c0_222, %c0_223] : memref<128x128xbf16, #tpu.memory_space<vmem>>, vector<16x128xbf16>
    %c0_224 = arith.constant 0 : index
    %c0_225 = arith.constant 0 : index
    %468 = vector.load %arg5[%c0_224, %c0_225] : memref<128x128xbf16, #tpu.memory_space<vmem>>, vector<128x128xbf16>
    %cst_226 = arith.constant dense<0.000000e+00> : vector<16x128xf32>
    %469 = tpu.matmul %467, %468, %cst_226 {dimension_numbers = #tpu.dot_dimension_numbers<[1], [0], [0], [1], [0, 0, 1, 1], [], []>} : vector<16x128xbf16>, vector<128x128xbf16>, vector<16x128xf32> -> vector<16x128xf32>
    %c0_227 = arith.constant 0 : index
    %c0_228 = arith.constant 0 : index
    %470 = vector.load %arg9[%c0_227, %c0_228] : memref<128x128xf32, #tpu.memory_space<vmem>>, vector<16x128xf32>
    tpu.vector_store %arg9[%c0_227, %c0_228], %469 {strides = array<i32>} : memref<128x128xf32, #tpu.memory_space<vmem>>, vector<16x128xf32>,
    %c16 = arith.constant 16 : index
    %c0_229 = arith.constant 0 : index
    %471 = vector.load %arg8[%c16, %c0_229] : memref<128x128xbf16, #tpu.memory_space<vmem>>, vector<16x128xbf16>
    %c0_230 = arith.constant 0 : index
    %c0_231 = arith.constant 0 : index
    %472 = vector.load %arg5[%c0_230, %c0_231] : memref<128x128xbf16, #tpu.memory_space<vmem>>, vector<128x128xbf16>
    %cst_232 = arith.constant dense<0.000000e+00> : vector<16x128xf32>
    %473 = tpu.matmul %471, %472, %cst_232 {dimension_numbers = #tpu.dot_dimension_numbers<[1], [0], [0], [1], [0, 0, 1, 1], [], []>} : vector<16x128xbf16>, vector<128x128xbf16>, vector<16x128xf32> -> vector<16x128xf32>
    %c16_233 = arith.constant 16 : index
    %c0_234 = arith.constant 0 : index
    %474 = vector.load %arg9[%c16_233, %c0_234] : memref<128x128xf32, #tpu.memory_space<vmem>>, vector<16x128xf32>
    tpu.vector_store %arg9[%c16_233, %c0_234], %473 {strides = array<i32>} : memref<128x128xf32, #tpu.memory_space<vmem>>, vector<16x128xf32>,
    %475 = arith.maximumf %469, %473 : vector<16x128xf32>
    %c32 = arith.constant 32 : index
    %c0_235 = arith.constant 0 : index
    %476 = vector.load %arg8[%c32, %c0_235] : memref<128x128xbf16, #tpu.memory_space<vmem>>, vector<16x128xbf16>
    %c0_236 = arith.constant 0 : index
    %c0_237 = arith.constant 0 : index
    %477 = vector.load %arg5[%c0_236, %c0_237] : memref<128x128xbf16, #tpu.memory_space<vmem>>, vector<128x128xbf16>
    %cst_238 = arith.constant dense<0.000000e+00> : vector<16x128xf32>
    %478 = tpu.matmul %476, %477, %cst_238 {dimension_numbers = #tpu.dot_dimension_numbers<[1], [0], [0], [1], [0, 0, 1, 1], [], []>} : vector<16x128xbf16>, vector<128x128xbf16>, vector<16x128xf32> -> vector<16x128xf32>
    %c32_239 = arith.constant 32 : index
    %c0_240 = arith.constant 0 : index
    %479 = vector.load %arg9[%c32_239, %c0_240] : memref<128x128xf32, #tpu.memory_space<vmem>>, vector<16x128xf32>
    tpu.vector_store %arg9[%c32_239, %c0_240], %478 {strides = array<i32>} : memref<128x128xf32, #tpu.memory_space<vmem>>, vector<16x128xf32>,
    %480 = arith.maximumf %475, %478 : vector<16x128xf32>
    %c48 = arith.constant 48 : index
    %c0_241 = arith.constant 0 : index
    %481 = vector.load %arg8[%c48, %c0_241] : memref<128x128xbf16, #tpu.memory_space<vmem>>, vector<16x128xbf16>
    %c0_242 = arith.constant 0 : index
    %c0_243 = arith.constant 0 : index
    %482 = vector.load %arg5[%c0_242, %c0_243] : memref<128x128xbf16, #tpu.memory_space<vmem>>, vector<128x128xbf16>
    %cst_244 = arith.constant dense<0.000000e+00> : vector<16x128xf32>
    %483 = tpu.matmul %481, %482, %cst_244 {dimension_numbers = #tpu.dot_dimension_numbers<[1], [0], [0], [1], [0, 0, 1, 1], [], []>} : vector<16x128xbf16>, vector<128x128xbf16>, vector<16x128xf32> -> vector<16x128xf32>
    %c48_245 = arith.constant 48 : index
    %c0_246 = arith.constant 0 : index
    %484 = vector.load %arg9[%c48_245, %c0_246] : memref<128x128xf32, #tpu.memory_space<vmem>>, vector<16x128xf32>
    tpu.vector_store %arg9[%c48_245, %c0_246], %483 {strides = array<i32>} : memref<128x128xf32, #tpu.memory_space<vmem>>, vector<16x128xf32>,
    %485 = arith.maximumf %480, %483 : vector<16x128xf32>
    %c64 = arith.constant 64 : index
    %c0_247 = arith.constant 0 : index
    %486 = vector.load %arg8[%c64, %c0_247] : memref<128x128xbf16, #tpu.memory_space<vmem>>, vector<16x128xbf16>
    %c0_248 = arith.constant 0 : index
    %c0_249 = arith.constant 0 : index
    %487 = vector.load %arg5[%c0_248, %c0_249] : memref<128x128xbf16, #tpu.memory_space<vmem>>, vector<128x128xbf16>
    %cst_250 = arith.constant dense<0.000000e+00> : vector<16x128xf32>
    %488 = tpu.matmul %486, %487, %cst_250 {dimension_numbers = #tpu.dot_dimension_numbers<[1], [0], [0], [1], [0, 0, 1, 1], [], []>} : vector<16x128xbf16>, vector<128x128xbf16>, vector<16x128xf32> -> vector<16x128xf32>
    %c64_251 = arith.constant 64 : index
    %c0_252 = arith.constant 0 : index
    %489 = vector.load %arg9[%c64_251, %c0_252] : memref<128x128xf32, #tpu.memory_space<vmem>>, vector<16x128xf32>
    tpu.vector_store %arg9[%c64_251, %c0_252], %488 {strides = array<i32>} : memref<128x128xf32, #tpu.memory_space<vmem>>, vector<16x128xf32>,
    %490 = arith.maximumf %485, %488 : vector<16x128xf32>
    %c80 = arith.constant 80 : index
    %c0_253 = arith.constant 0 : index
    %491 = vector.load %arg8[%c80, %c0_253] : memref<128x128xbf16, #tpu.memory_space<vmem>>, vector<16x128xbf16>
    %c0_254 = arith.constant 0 : index
    %c0_255 = arith.constant 0 : index
    %492 = vector.load %arg5[%c0_254, %c0_255] : memref<128x128xbf16, #tpu.memory_space<vmem>>, vector<128x128xbf16>
    %cst_256 = arith.constant dense<0.000000e+00> : vector<16x128xf32>
    %493 = tpu.matmul %491, %492, %cst_256 {dimension_numbers = #tpu.dot_dimension_numbers<[1], [0], [0], [1], [0, 0, 1, 1], [], []>} : vector<16x128xbf16>, vector<128x128xbf16>, vector<16x128xf32> -> vector<16x128xf32>
    %c80_257 = arith.constant 80 : index
    %c0_258 = arith.constant 0 : index
    %494 = vector.load %arg9[%c80_257, %c0_258] : memref<128x128xf32, #tpu.memory_space<vmem>>, vector<16x128xf32>
    tpu.vector_store %arg9[%c80_257, %c0_258], %493 {strides = array<i32>} : memref<128x128xf32, #tpu.memory_space<vmem>>, vector<16x128xf32>,
    %495 = arith.maximumf %490, %493 : vector<16x128xf32>
    %c96 = arith.constant 96 : index
    %c0_259 = arith.constant 0 : index
    %496 = vector.load %arg8[%c96, %c0_259] : memref<128x128xbf16, #tpu.memory_space<vmem>>, vector<16x128xbf16>
    %c0_260 = arith.constant 0 : index
    %c0_261 = arith.constant 0 : index
    %497 = vector.load %arg5[%c0_260, %c0_261] : memref<128x128xbf16, #tpu.memory_space<vmem>>, vector<128x128xbf16>
    %cst_262 = arith.constant dense<0.000000e+00> : vector<16x128xf32>
    %498 = tpu.matmul %496, %497, %cst_262 {dimension_numbers = #tpu.dot_dimension_numbers<[1], [0], [0], [1], [0, 0, 1, 1], [], []>} : vector<16x128xbf16>, vector<128x128xbf16>, vector<16x128xf32> -> vector<16x128xf32>
    %c96_263 = arith.constant 96 : index
    %c0_264 = arith.constant 0 : index
    %499 = vector.load %arg9[%c96_263, %c0_264] : memref<128x128xf32, #tpu.memory_space<vmem>>, vector<16x128xf32>
    tpu.vector_store %arg9[%c96_263, %c0_264], %498 {strides = array<i32>} : memref<128x128xf32, #tpu.memory_space<vmem>>, vector<16x128xf32>,
    %500 = arith.maximumf %495, %498 : vector<16x128xf32>
    %c112 = arith.constant 112 : index
    %c0_265 = arith.constant 0 : index
    %501 = vector.load %arg8[%c112, %c0_265] : memref<128x128xbf16, #tpu.memory_space<vmem>>, vector<16x128xbf16>
    %c0_266 = arith.constant 0 : index
    %c0_267 = arith.constant 0 : index
    %502 = vector.load %arg5[%c0_266, %c0_267] : memref<128x128xbf16, #tpu.memory_space<vmem>>, vector<128x128xbf16>
    %cst_268 = arith.constant dense<0.000000e+00> : vector<16x128xf32>
    %503 = tpu.matmul %501, %502, %cst_268 {dimension_numbers = #tpu.dot_dimension_numbers<[1], [0], [0], [1], [0, 0, 1, 1], [], []>} : vector<16x128xbf16>, vector<128x128xbf16>, vector<16x128xf32> -> vector<16x128xf32>
    %c112_269 = arith.constant 112 : index
    %c0_270 = arith.constant 0 : index
    %504 = vector.load %arg9[%c112_269, %c0_270] : memref<128x128xf32, #tpu.memory_space<vmem>>, vector<16x128xf32>
    tpu.vector_store %arg9[%c112_269, %c0_270], %503 {strides = array<i32>} : memref<128x128xf32, #tpu.memory_space<vmem>>, vector<16x128xf32>,
    %505 = arith.maximumf %500, %503 : vector<16x128xf32>
    %cst_271 = arith.constant 0.000000e+00 : f32
    %506 = vector.broadcast %cst_271 : f32 to vector<16x128xf32>
    %cst_272 = arith.constant 0.000000e+00 : f32
    %507 = vector.broadcast %cst_272 : f32 to vector<16x128xf32>
    %c0_273 = arith.constant 0 : index
    %c0_274 = arith.constant 0 : index
    %508 = vector.load %arg9[%c0_273, %c0_274] : memref<128x128xf32, #tpu.memory_space<vmem>>, vector<16x128xf32>
    %509 = arith.subf %508, %505 : vector<16x128xf32>
    %510 = math.exp %509 : vector<16x128xf32>
    %511 = arith.addf %506, %510 : vector<16x128xf32>
    %512 = vector.extract_strided_slice %508 {offsets = [0, 0], sizes = [16, 1], strides = [1, 1]} : vector<16x128xf32> to vector<16x1xf32>
    %513 = vector.broadcast %512 : vector<16x1xf32> to vector<16x128xf32>
    %514 = arith.mulf %510, %513 : vector<16x128xf32>
    %515 = arith.addf %507, %514 : vector<16x128xf32>
    %c16_275 = arith.constant 16 : index
    %c0_276 = arith.constant 0 : index
    %516 = vector.load %arg9[%c16_275, %c0_276] : memref<128x128xf32, #tpu.memory_space<vmem>>, vector<16x128xf32>
    %517 = arith.subf %516, %505 : vector<16x128xf32>
    %518 = math.exp %517 : vector<16x128xf32>
    %519 = arith.addf %511, %518 : vector<16x128xf32>
    %520 = vector.extract_strided_slice %516 {offsets = [0, 0], sizes = [16, 1], strides = [1, 1]} : vector<16x128xf32> to vector<16x1xf32>
    %521 = vector.broadcast %520 : vector<16x1xf32> to vector<16x128xf32>
    %522 = arith.mulf %518, %521 : vector<16x128xf32>
    %523 = arith.addf %515, %522 : vector<16x128xf32>
    %c32_277 = arith.constant 32 : index
    %c0_278 = arith.constant 0 : index
    %524 = vector.load %arg9[%c32_277, %c0_278] : memref<128x128xf32, #tpu.memory_space<vmem>>, vector<16x128xf32>
    %525 = arith.subf %524, %505 : vector<16x128xf32>
    %526 = math.exp %525 : vector<16x128xf32>
    %527 = arith.addf %519, %526 : vector<16x128xf32>
    %528 = vector.extract_strided_slice %524 {offsets = [0, 0], sizes = [16, 1], strides = [1, 1]} : vector<16x128xf32> to vector<16x1xf32>
    %529 = vector.broadcast %528 : vector<16x1xf32> to vector<16x128xf32>
    %530 = arith.mulf %526, %529 : vector<16x128xf32>
    %531 = arith.addf %523, %530 : vector<16x128xf32>
    %c48_279 = arith.constant 48 : index
    %c0_280 = arith.constant 0 : index
    %532 = vector.load %arg9[%c48_279, %c0_280] : memref<128x128xf32, #tpu.memory_space<vmem>>, vector<16x128xf32>
    %533 = arith.subf %532, %505 : vector<16x128xf32>
    %534 = math.exp %533 : vector<16x128xf32>
    %535 = arith.addf %527, %534 : vector<16x128xf32>
    %536 = vector.extract_strided_slice %532 {offsets = [0, 0], sizes = [16, 1], strides = [1, 1]} : vector<16x128xf32> to vector<16x1xf32>
    %537 = vector.broadcast %536 : vector<16x1xf32> to vector<16x128xf32>
    %538 = arith.mulf %534, %537 : vector<16x128xf32>
    %539 = arith.addf %531, %538 : vector<16x128xf32>
    %c64_281 = arith.constant 64 : index
    %c0_282 = arith.constant 0 : index
    %540 = vector.load %arg9[%c64_281, %c0_282] : memref<128x128xf32, #tpu.memory_space<vmem>>, vector<16x128xf32>
    %541 = arith.subf %540, %505 : vector<16x128xf32>
    %542 = math.exp %541 : vector<16x128xf32>
    %543 = arith.addf %535, %542 : vector<16x128xf32>
    %544 = vector.extract_strided_slice %540 {offsets = [0, 0], sizes = [16, 1], strides = [1, 1]} : vector<16x128xf32> to vector<16x1xf32>
    %545 = vector.broadcast %544 : vector<16x1xf32> to vector<16x128xf32>
    %546 = arith.mulf %542, %545 : vector<16x128xf32>
    %547 = arith.addf %539, %546 : vector<16x128xf32>
    %c80_283 = arith.constant 80 : index
    %c0_284 = arith.constant 0 : index
    %548 = vector.load %arg9[%c80_283, %c0_284] : memref<128x128xf32, #tpu.memory_space<vmem>>, vector<16x128xf32>
    %549 = arith.subf %548, %505 : vector<16x128xf32>
    %550 = math.exp %549 : vector<16x128xf32>
    %551 = arith.addf %543, %550 : vector<16x128xf32>
    %552 = vector.extract_strided_slice %548 {offsets = [0, 0], sizes = [16, 1], strides = [1, 1]} : vector<16x128xf32> to vector<16x1xf32>
    %553 = vector.broadcast %552 : vector<16x1xf32> to vector<16x128xf32>
    %554 = arith.mulf %550, %553 : vector<16x128xf32>
    %555 = arith.addf %547, %554 : vector<16x128xf32>
    %c96_285 = arith.constant 96 : index
    %c0_286 = arith.constant 0 : index
    %556 = vector.load %arg9[%c96_285, %c0_286] : memref<128x128xf32, #tpu.memory_space<vmem>>, vector<16x128xf32>
    %557 = arith.subf %556, %505 : vector<16x128xf32>
    %558 = math.exp %557 : vector<16x128xf32>
    %559 = arith.addf %551, %558 : vector<16x128xf32>
    %560 = vector.extract_strided_slice %556 {offsets = [0, 0], sizes = [16, 1], strides = [1, 1]} : vector<16x128xf32> to vector<16x1xf32>
    %561 = vector.broadcast %560 : vector<16x1xf32> to vector<16x128xf32>
    %562 = arith.mulf %558, %561 : vector<16x128xf32>
    %563 = arith.addf %555, %562 : vector<16x128xf32>
    %c112_287 = arith.constant 112 : index
    %c0_288 = arith.constant 0 : index
    %564 = vector.load %arg9[%c112_287, %c0_288] : memref<128x128xf32, #tpu.memory_space<vmem>>, vector<16x128xf32>
    %565 = arith.subf %564, %505 : vector<16x128xf32>
    %566 = math.exp %565 : vector<16x128xf32>
    %567 = arith.addf %559, %566 : vector<16x128xf32>
    %568 = vector.extract_strided_slice %564 {offsets = [0, 0], sizes = [16, 1], strides = [1, 1]} : vector<16x128xf32> to vector<16x1xf32>
    %569 = vector.broadcast %568 : vector<16x1xf32> to vector<16x128xf32>
    %570 = arith.mulf %566, %569 : vector<16x128xf32>
    %571 = arith.addf %563, %570 : vector<16x128xf32>
    %572 = tpu.reciprocal %567 {approx = true} : vector<16x128xf32> -> vector<16x128xf32>
    %573 = arith.mulf %571, %572 : vector<16x128xf32>
    %cst_289 = arith.constant 1.250000e-01 : f32
    %574 = vector.broadcast %cst_289 : f32 to vector<16x128xf32>
    %575 = arith.mulf %573, %574 : vector<16x128xf32>
    %c0_290 = arith.constant 0 : index
    %c0_291 = arith.constant 0 : index
    %576 = vector.load %arg6[%c0_290, %c0_291] : memref<16x128xf32, #tpu.memory_space<vmem>>, vector<16x128xf32>
    tpu.vector_store %arg6[%c0_290, %c0_291], %575 {strides = array<i32>} : memref<16x128xf32, #tpu.memory_space<vmem>>, vector<16x128xf32>,
    return
  }
  func.func @transform_0(%arg0: i32) -> (i32, i32, i32) {
    %c0_i32 = arith.constant 0 : i32
    %c0_i32_0 = arith.constant 0 : i32
    %c0_i32_1 = arith.constant 0 : i32
    return %c0_i32, %arg0, %c0_i32_0 : i32, i32, i32
  }
  func.func @transform_1(%arg0: i32) -> (i32, i32) {
    %c0_i32 = arith.constant 0 : i32
    %c0_i32_0 = arith.constant 0 : i32
    %c0_i32_1 = arith.constant 0 : i32
    return %c0_i32, %c0_i32_0 : i32, i32
  }
  func.func @transform_2(%arg0: i32) -> (i32, i32) {
    %c0_i32 = arith.constant 0 : i32
    %c0_i32_0 = arith.constant 0 : i32
    %c0_i32_1 = arith.constant 0 : i32
    return %c0_i32, %c0_i32_0 : i32, i32
  }
  func.func @transform_3(%arg0: i32) -> (i32, i32) {
    %c0_i32 = arith.constant 0 : i32
    %c0_i32_0 = arith.constant 0 : i32
    %c0_i32_1 = arith.constant 0 : i32
    return %c0_i32, %c0_i32_0 : i32, i32
  }
  func.func @transform_4(%arg0: i32) -> (i32, i32) {
    %c0_i32 = arith.constant 0 : i32
    %c0_i32_0 = arith.constant 0 : i32
    %c0_i32_1 = arith.constant 0 : i32
    return %c0_i32, %c0_i32_0 : i32, i32
  }
  func.func @transform_5(%arg0: i32) -> (i32, i32) {
    %c0_i32 = arith.constant 0 : i32
    %c0_i32_0 = arith.constant 0 : i32
    return %arg0, %c0_i32 : i32, i32
  }
}

</mosaic_0001>

<llo_original>
// kernel: hyperedge_embedding.1
$region0: #{hyperedge_embedding.1}
  #allocation0 [shape = 'u32[]', space=smem, size = 0x4, offset = 0x4, fixed_abs, tag = 'smem constant byte address 0x4 - core index']
  #allocation1 [shape = 'u32[72,128]{1,0:T(1,128)}', space=vmem, size = 0x9000, scoped, tag = 'internal scratch']
  #allocation2 [shape = 'bf16[128,512]{1,0:T(8,128)(2,1)}', space=vmem, size = 0x20000, scoped, tag = 'scratch operand']
  #allocation3 [shape = 'bf16[128,128]{1,0:T(8,128)(2,1)}', space=vmem, size = 0x8000, scoped, tag = 'scratch operand']
  #allocation4 [shape = 'f32[128,128]{1,0:T(8,128)}', space=vmem, size = 0x10000, scoped, tag = 'scratch operand']
  %s0 = inlined_call_operand.vmem [shape: bf16[8,16,16], index: 0, kind: input, shape index: {}]
  %s1 = inlined_call_operand.vmem [shape: bf16[16,512], index: 1, kind: input, shape index: {}]
  %s2 = inlined_call_operand.vmem [shape: bf16[128,512], index: 2, kind: input, shape index: {}]
  %s3 = inlined_call_operand.vmem [shape: f32[1,512], index: 3, kind: input, shape index: {}]
  %s4 = inlined_call_operand.vmem [shape: bf16[128,128], index: 4, kind: input, shape index: {}]
  %s5 = inlined_call_operand.vmem [shape: f32[16,128], index: 5, kind: output, shape index: {}]
  %s6 = sld [smem:[#allocation0]]
  $region30: #{hyperedge_embedding.1} parent=0
    _
  %s8 = ssub.s32 1, %s6
  %s9 = scalar_select 0, %s8, %s6
  // Predicated region
  $region2: #{hyperedge_embedding.1} parent=0 // pred_check
    _
  $region3: #{hyperedge_embedding.1} parent=0 // pred_check_branch
    %11 = sbr.rel (0) target = $region5
  $region4: #{hyperedge_embedding.1} parent=0 // pred_region
    _
  $region5: #{hyperedge_embedding.1} parent=0 // pred_fallthru
    _
  // Predicated region
  $region6: #{hyperedge_embedding.1} parent=0 // pred_check
    _
  $region7: #{hyperedge_embedding.1} parent=0 // pred_check_branch
    %13 = sbr.rel (0) target = $region9
  $region8: #{hyperedge_embedding.1} parent=0 // pred_region
    _
  $region9: #{hyperedge_embedding.1} parent=0 // pred_fallthru
    _
  // Predicated region
  $region10: #{hyperedge_embedding.1} parent=0 // pred_check
    _
  $region11: #{hyperedge_embedding.1} parent=0 // pred_check_branch
    %15 = sbr.rel (0) target = $region13
  $region12: #{hyperedge_embedding.1} parent=0 // pred_region
    _
  $region13: #{hyperedge_embedding.1} parent=0 // pred_fallthru
    _
  // Predicated region
  $region14: #{hyperedge_embedding.1} parent=0 // pred_check
    _
  $region15: #{hyperedge_embedding.1} parent=0 // pred_check_branch
    %17 = sbr.rel (0) target = $region17
  $region16: #{hyperedge_embedding.1} parent=0 // pred_region
    _
  $region17: #{hyperedge_embedding.1} parent=0 // pred_fallthru
    _
  // Predicated region
  $region18: #{hyperedge_embedding.1} parent=0 // pred_check
    _
  $region19: #{hyperedge_embedding.1} parent=0 // pred_check_branch
    %19 = sbr.rel (0) target = $region21
  $region20: #{hyperedge_embedding.1} parent=0 // pred_region
    _
  $region21: #{hyperedge_embedding.1} parent=0 // pred_fallthru
    _
  %v21 = vld [vmem:[%s0] sm:$0xf]
  %v22 = vld [vmem:[%s0 + $0x4] sm:$0xf]
  %v23 = vld [vmem:[%s0 + $0x8] sm:$0xf]
  %v24 = vld [vmem:[%s0 + $0xc] sm:$0xf]
  %v25 = vld [vmem:[%s0 + $0x10] sm:$0xf]
  %v26 = vld [vmem:[%s0 + $0x14] sm:$0xf]
  %v27 = vld [vmem:[%s0 + $0x18] sm:$0xf]
  %v28 = vld [vmem:[%s0 + $0x1c] sm:$0xf]
  %v29 = vld [vmem:[%s0 + $0x20] sm:$0xf]
  %v30 = vld [vmem:[%s0 + $0x24] sm:$0xf]
  %v31 = vld [vmem:[%s0 + $0x28] sm:$0xf]
  %v32 = vld [vmem:[%s0 + $0x2c] sm:$0xf]
  %v33 = vld [vmem:[%s0 + $0x30] sm:$0xf]
  %v34 = vld [vmem:[%s0 + $0x34] sm:$0xf]
  %v35 = vld [vmem:[%s0 + $0x38] sm:$0xf]
  %v36 = vld [vmem:[%s0 + $0x3c] sm:$0xf]
  %v37 = vld [vmem:[%s1] sm:$0xff]
  %v38 = vld [vmem:[%s1 + $0x8] sm:$0xff]
  %v39 = vld [vmem:[%s1 + $0x10] sm:$0xff]
  %v40 = vld [vmem:[%s1 + $0x18] sm:$0xff]
  %v41 = vld [vmem:[%s3] sm:$0xf]
  %v43 = vperm.slane %v41, 0
  %v44 = vperm.slane %v41, 1
  %v45 = vperm.slane %v41, 2
  %v46 = vperm.slane %v41, 3
  %v67 = vunpack.c.l.b16 %v21
  %v68 = vunpack.c.l.b16 %v22
  %v69 = vunpack.c.l.b16 %v23
  %v70 = vunpack.c.l.b16 %v24
  %v71 = vunpack.c.l.b16 %v25
  %v72 = vunpack.c.l.b16 %v26
  %v73 = vunpack.c.l.b16 %v27
  %v74 = vunpack.c.l.b16 %v28
  %v75 = vunpack.c.l.b16 %v29
  %v76 = vunpack.c.l.b16 %v30
  %v77 = vunpack.c.l.b16 %v31
  %v78 = vunpack.c.l.b16 %v32
  %v79 = vunpack.c.l.b16 %v33
  %v80 = vunpack.c.l.b16 %v34
  %v81 = vunpack.c.l.b16 %v35
  %v82 = vunpack.c.l.b16 %v36
  %v83 = vpack.c.b16 %v68, %v67
  %v84 = vpack.c.b16 %v70, %v69
  %v85 = vpack.c.b16 %v72, %v71
  %v86 = vpack.c.b16 %v74, %v73
  %v87 = vpack.c.b16 %v76, %v75
  %v88 = vpack.c.b16 %v78, %v77
  %v89 = vpack.c.b16 %v80, %v79
  %v90 = vpack.c.b16 %v82, %v81
  %v95 = vunpack.c.l.b16 %v37
  %v96 = vunpack.c.h.b16 %v37
  %v97 = vunpack.c.l.b16 %v38
  %v98 = vunpack.c.h.b16 %v38
  %v99 = vunpack.c.l.b16 %v39
  %v100 = vunpack.c.h.b16 %v39
  %v101 = vunpack.c.l.b16 %v40
  %v102 = vunpack.c.h.b16 %v40
  %v103 = vpack.c.b16 %v99, %v95
  %v104 = vpack.c.b16 %v100, %v96
  %v105 = vpack.c.b16 %v101, %v97
  %v106 = vpack.c.b16 %v102, %v98
  %vm111 = vcmask 130048
  %v113 = vsel %vm111, %v83, 0
  %v116 = vsel %vm111, %v84, 0
  %v119 = vsel %vm111, %v85, 0
  %v122 = vsel %vm111, %v86, 0
  %v125 = vsel %vm111, %v87, 0
  %v128 = vsel %vm111, %v88, 0
  %v131 = vsel %vm111, %v89, 0
  %v134 = vsel %vm111, %v90, 0
  %136 = vmatpush.bf16.msra.mxu0 0
  %137 = vmatpush.bf16.msra.mxu0 0
  %138 = vmatpush.bf16.msra.mxu0 0
  %139 = vmatpush.bf16.msra.mxu0 0
  %140 = vmatpush.bf16.msra.mxu0 0
  %141 = vmatpush.bf16.msra.mxu0 0
  %142 = vmatpush.bf16.msra.mxu0 0
  %143 = vmatpush.bf16.msra.mxu0 %v103
  %144 = vmatmul.bf16.gmra.mxu0 %v113
  %v145 = vpop.f32.mrf.mxu0
  %v146 = vadd.f32 %v43, %v145
  %v147 = vpop.f32.mrf.mxu0
  %v148 = vadd.f32 %v43, %v147
  %149 = vmatmul.bf16.gmra.mxu0 %v116
  %v150 = vpop.f32.mrf.mxu0
  %v151 = vadd.f32 %v43, %v150
  %v152 = vpop.f32.mrf.mxu0
  %v153 = vadd.f32 %v43, %v152
  %154 = vmatmul.bf16.gmra.mxu0 %v119
  %v155 = vpop.f32.mrf.mxu0
  %v156 = vadd.f32 %v43, %v155
  %v157 = vpop.f32.mrf.mxu0
  %v158 = vadd.f32 %v43, %v157
  %159 = vmatmul.bf16.gmra.mxu0 %v122
  %v160 = vpop.f32.mrf.mxu0
  %v161 = vadd.f32 %v43, %v160
  %v162 = vpop.f32.mrf.mxu0
  %v163 = vadd.f32 %v43, %v162
  %164 = vmatmul.bf16.gmra.mxu0 %v125
  %v165 = vpop.f32.mrf.mxu0
  %v166 = vadd.f32 %v43, %v165
  %v167 = vpop.f32.mrf.mxu0
  %v168 = vadd.f32 %v43, %v167
  %169 = vmatmul.bf16.gmra.mxu0 %v128
  %v170 = vpop.f32.mrf.mxu0
  %v171 = vadd.f32 %v43, %v170
  %v172 = vpop.f32.mrf.mxu0
  %v173 = vadd.f32 %v43, %v172
  %174 = vmatmul.bf16.gmra.mxu0 %v131
  %v175 = vpop.f32.mrf.mxu0
  %v176 = vadd.f32 %v43, %v175
  %v177 = vpop.f32.mrf.mxu0
  %v178 = vadd.f32 %v43, %v177
  %179 = vmatmul.bf16.gmra.mxu0 %v134
  %v180 = vpop.f32.mrf.mxu0
  %v181 = vadd.f32 %v43, %v180
  %v182 = vpop.f32.mrf.mxu0
  %v183 = vadd.f32 %v43, %v182
  %184 = vdwg.mxu0
  %185 = vmatpush.bf16.msra.mxu0 0
  %186 = vmatpush.bf16.msra.mxu0 0
  %187 = vmatpush.bf16.msra.mxu0 0
  %188 = vmatpush.bf16.msra.mxu0 0
  %189 = vmatpush.bf16.msra.mxu0 0
  %190 = vmatpush.bf16.msra.mxu0 0
  %191 = vmatpush.bf16.msra.mxu0 0
  %192 = vmatpush.bf16.msra.mxu0 %v104
  %193 = vmatmul.bf16.gmra.mxu0 %v113
  %v194 = vpop.f32.mrf.mxu0
  %v195 = vadd.f32 %v44, %v194
  %v196 = vpop.f32.mrf.mxu0
  %v197 = vadd.f32 %v44, %v196
  %198 = vmatmul.bf16.gmra.mxu0 %v116
  %v199 = vpop.f32.mrf.mxu0
  %v200 = vadd.f32 %v44, %v199
  %v201 = vpop.f32.mrf.mxu0
  %v202 = vadd.f32 %v44, %v201
  %203 = vmatmul.bf16.gmra.mxu0 %v119
  %v204 = vpop.f32.mrf.mxu0
  %v205 = vadd.f32 %v44, %v204
  %v206 = vpop.f32.mrf.mxu0
  %v207 = vadd.f32 %v44, %v206
  %208 = vmatmul.bf16.gmra.mxu0 %v122
  %v209 = vpop.f32.mrf.mxu0
  %v210 = vadd.f32 %v44, %v209
  %v211 = vpop.f32.mrf.mxu0
  %v212 = vadd.f32 %v44, %v211
  %213 = vmatmul.bf16.gmra.mxu0 %v125
  %v214 = vpop.f32.mrf.mxu0
  %v215 = vadd.f32 %v44, %v214
  %v216 = vpop.f32.mrf.mxu0
  %v217 = vadd.f32 %v44, %v216
  %218 = vmatmul.bf16.gmra.mxu0 %v128
  %v219 = vpop.f32.mrf.mxu0
  %v220 = vadd.f32 %v44, %v219
  %v221 = vpop.f32.mrf.mxu0
  %v222 = vadd.f32 %v44, %v221
  %223 = vmatmul.bf16.gmra.mxu0 %v131
  %v224 = vpop.f32.mrf.mxu0
  %v225 = vadd.f32 %v44, %v224
  %v226 = vpop.f32.mrf.mxu0
  %v227 = vadd.f32 %v44, %v226
  %228 = vmatmul.bf16.gmra.mxu0 %v134
  %v229 = vpop.f32.mrf.mxu0
  %v230 = vadd.f32 %v44, %v229
  %v231 = vpop.f32.mrf.mxu0
  %v232 = vadd.f32 %v44, %v231
  %233 = vdwg.mxu0
  %234 = vmatpush.bf16.msra.mxu0 0
  %235 = vmatpush.bf16.msra.mxu0 0
  %236 = vmatpush.bf16.msra.mxu0 0
  %237 = vmatpush.bf16.msra.mxu0 0
  %238 = vmatpush.bf16.msra.mxu0 0
  %239 = vmatpush.bf16.msra.mxu0 0
  %240 = vmatpush.bf16.msra.mxu0 0
  %241 = vmatpush.bf16.msra.mxu0 %v105
  %242 = vmatmul.bf16.gmra.mxu0 %v113
  %v243 = vpop.f32.mrf.mxu0
  %v244 = vadd.f32 %v45, %v243
  %v245 = vpop.f32.mrf.mxu0
  %v246 = vadd.f32 %v45, %v245
  %247 = vmatmul.bf16.gmra.mxu0 %v116
  %v248 = vpop.f32.mrf.mxu0
  %v249 = vadd.f32 %v45, %v248
  %v250 = vpop.f32.mrf.mxu0
  %v251 = vadd.f32 %v45, %v250
  %252 = vmatmul.bf16.gmra.mxu0 %v119
  %v253 = vpop.f32.mrf.mxu0
  %v254 = vadd.f32 %v45, %v253
  %v255 = vpop.f32.mrf.mxu0
  %v256 = vadd.f32 %v45, %v255
  %257 = vmatmul.bf16.gmra.mxu0 %v122
  %v258 = vpop.f32.mrf.mxu0
  %v259 = vadd.f32 %v45, %v258
  %v260 = vpop.f32.mrf.mxu0
  %v261 = vadd.f32 %v45, %v260
  %262 = vmatmul.bf16.gmra.mxu0 %v125
  %v263 = vpop.f32.mrf.mxu0
  %v264 = vadd.f32 %v45, %v263
  %v265 = vpop.f32.mrf.mxu0
  %v266 = vadd.f32 %v45, %v265
  %267 = vmatmul.bf16.gmra.mxu0 %v128
  %v268 = vpop.f32.mrf.mxu0
  %v269 = vadd.f32 %v45, %v268
  %v270 = vpop.f32.mrf.mxu0
  %v271 = vadd.f32 %v45, %v270
  %272 = vmatmul.bf16.gmra.mxu0 %v131
  %v273 = vpop.f32.mrf.mxu0
  %v274 = vadd.f32 %v45, %v273
  %v275 = vpop.f32.mrf.mxu0
  %v276 = vadd.f32 %v45, %v275
  %277 = vmatmul.bf16.gmra.mxu0 %v134
  %v278 = vpop.f32.mrf.mxu0
  %v279 = vadd.f32 %v45, %v278
  %v280 = vpop.f32.mrf.mxu0
  %v281 = vadd.f32 %v45, %v280
  %282 = vdwg.mxu0
  %283 = vmatpush.bf16.msra.mxu0 0
  %284 = vmatpush.bf16.msra.mxu0 0
  %285 = vmatpush.bf16.msra.mxu0 0
  %286 = vmatpush.bf16.msra.mxu0 0
  %287 = vmatpush.bf16.msra.mxu0 0
  %288 = vmatpush.bf16.msra.mxu0 0
  %289 = vmatpush.bf16.msra.mxu0 0
  %290 = vmatpush.bf16.msra.mxu0 %v106
  %291 = vmatmul.bf16.gmra.mxu0 %v113
  %v292 = vpop.f32.mrf.mxu0
  %v293 = vadd.f32 %v46, %v292
  %v294 = vpop.f32.mrf.mxu0
  %v295 = vadd.f32 %v46, %v294
  %296 = vmatmul.bf16.gmra.mxu0 %v116
  %v297 = vpop.f32.mrf.mxu0
  %v298 = vadd.f32 %v46, %v297
  %v299 = vpop.f32.mrf.mxu0
  %v300 = vadd.f32 %v46, %v299
  %301 = vmatmul.bf16.gmra.mxu0 %v119
  %v302 = vpop.f32.mrf.mxu0
  %v303 = vadd.f32 %v46, %v302
  %v304 = vpop.f32.mrf.mxu0
  %v305 = vadd.f32 %v46, %v304
  %306 = vmatmul.bf16.gmra.mxu0 %v122
  %v307 = vpop.f32.mrf.mxu0
  %v308 = vadd.f32 %v46, %v307
  %v309 = vpop.f32.mrf.mxu0
  %v310 = vadd.f32 %v46, %v309
  %311 = vmatmul.bf16.gmra.mxu0 %v125
  %v312 = vpop.f32.mrf.mxu0
  %v313 = vadd.f32 %v46, %v312
  %v314 = vpop.f32.mrf.mxu0
  %v315 = vadd.f32 %v46, %v314
  %316 = vmatmul.bf16.gmra.mxu0 %v128
  %v317 = vpop.f32.mrf.mxu0
  %v318 = vadd.f32 %v46, %v317
  %v319 = vpop.f32.mrf.mxu0
  %v320 = vadd.f32 %v46, %v319
  %321 = vmatmul.bf16.gmra.mxu0 %v131
  %v322 = vpop.f32.mrf.mxu0
  %v323 = vadd.f32 %v46, %v322
  %v324 = vpop.f32.mrf.mxu0
  %v325 = vadd.f32 %v46, %v324
  %326 = vmatmul.bf16.gmra.mxu0 %v134
  %v327 = vpop.f32.mrf.mxu0
  %v328 = vadd.f32 %v46, %v327
  %v329 = vpop.f32.mrf.mxu0
  %v330 = vadd.f32 %v46, %v329
  %331 = vdwg.mxu0
  %v332 = vpack.c.bf16 %v195, %v146
  %v333 = vpack.c.bf16 %v293, %v244
  %v334 = vpack.c.bf16 %v197, %v148
  %v335 = vpack.c.bf16 %v295, %v246
  %v336 = vpack.c.bf16 %v200, %v151
  %v337 = vpack.c.bf16 %v298, %v249
  %v338 = vpack.c.bf16 %v202, %v153
  %v339 = vpack.c.bf16 %v300, %v251
  %v340 = vpack.c.bf16 %v205, %v156
  %v341 = vpack.c.bf16 %v303, %v254
  %v342 = vpack.c.bf16 %v207, %v158
  %v343 = vpack.c.bf16 %v305, %v256
  %v344 = vpack.c.bf16 %v210, %v161
  %v345 = vpack.c.bf16 %v308, %v259
  %v346 = vpack.c.bf16 %v212, %v163
  %v347 = vpack.c.bf16 %v310, %v261
  %v348 = vpack.c.bf16 %v215, %v166
  %v349 = vpack.c.bf16 %v313, %v264
  %v350 = vpack.c.bf16 %v217, %v168
  %v351 = vpack.c.bf16 %v315, %v266
  %v352 = vpack.c.bf16 %v220, %v171
  %v353 = vpack.c.bf16 %v318, %v269
  %v354 = vpack.c.bf16 %v222, %v173
  %v355 = vpack.c.bf16 %v320, %v271
  %v356 = vpack.c.bf16 %v225, %v176
  %v357 = vpack.c.bf16 %v323, %v274
  %v358 = vpack.c.bf16 %v227, %v178
  %v359 = vpack.c.bf16 %v325, %v276
  %v360 = vpack.c.bf16 %v230, %v181
  %v361 = vpack.c.bf16 %v328, %v279
  %v362 = vpack.c.bf16 %v232, %v183
  %v363 = vpack.c.bf16 %v330, %v281
  %364 = vst [vmem:[#allocation2] sm:$0xff] %v332
  %365 = vst [vmem:[#allocation2 + $0x8] sm:$0xff] %v333
  %366 = vst [vmem:[#allocation2 + $0x10] sm:$0xff] %v334
  %367 = vst [vmem:[#allocation2 + $0x18] sm:$0xff] %v335
  %368 = vst [vmem:[#allocation2 + $0x20] sm:$0xff] %v336
  %369 = vst [vmem:[#allocation2 + $0x28] sm:$0xff] %v337
  %370 = vst [vmem:[#allocation2 + $0x30] sm:$0xff] %v338
  %371 = vst [vmem:[#allocation2 + $0x38] sm:$0xff] %v339
  %372 = vst [vmem:[#allocation2 + $0x40] sm:$0xff] %v340
  %373 = vst [vmem:[#allocation2 + $0x48] sm:$0xff] %v341
  %374 = vst [vmem:[#allocation2 + $0x50] sm:$0xff] %v342
  %375 = vst [vmem:[#allocation2 + $0x58] sm:$0xff] %v343
  %376 = vst [vmem:[#allocation2 + $0x60] sm:$0xff] %v344
  %377 = vst [vmem:[#allocation2 + $0x68] sm:$0xff] %v345
  %378 = vst [vmem:[#allocation2 + $0x70] sm:$0xff] %v346
  %379 = vst [vmem:[#allocation2 + $0x78] sm:$0xff] %v347
  %380 = vst [vmem:[#allocation2 + $0x80] sm:$0xff] %v348
  %381 = vst [vmem:[#allocation2 + $0x88] sm:$0xff] %v349
  %382 = vst [vmem:[#allocation2 + $0x90] sm:$0xff] %v350
  %383 = vst [vmem:[#allocation2 + $0x98] sm:$0xff] %v351
  %384 = vst [vmem:[#allocation2 + $0xa0] sm:$0xff] %v352
  %385 = vst [vmem:[#allocation2 + $0xa8] sm:$0xff] %v353
  %386 = vst [vmem:[#allocation2 + $0xb0] sm:$0xff] %v354
  %387 = vst [vmem:[#allocation2 + $0xb8] sm:$0xff] %v355
  %388 = vst [vmem:[#allocation2 + $0xc0] sm:$0xff] %v356
  %389 = vst [vmem:[#allocation2 + $0xc8] sm:$0xff] %v357
  %390 = vst [vmem:[#allocation2 + $0xd0] sm:$0xff] %v358
  %391 = vst [vmem:[#allocation2 + $0xd8] sm:$0xff] %v359
  %392 = vst [vmem:[#allocation2 + $0xe0] sm:$0xff] %v360
  %393 = vst [vmem:[#allocation2 + $0xe8] sm:$0xff] %v361
  %394 = vst [vmem:[#allocation2 + $0xf0] sm:$0xff] %v362
  %395 = vst [vmem:[#allocation2 + $0xf8] sm:$0xff] %v363
  %s396 = smul.u32 0, 4
  %s397 = smul.addr %s396, 4
  %s398 = scalar_lea.vmem [#allocation2], %s397
  %v399 = vld [vmem:[%s398 + $0x4] sm:$0xf]
  %v400 = vld [vmem:[%s398 + $0x14] sm:$0xf]
  %v401 = vunpack.c.l.bf16 %v399
  %v402 = vunpack.c.l.bf16 %v400
  %v403 = vld [vmem:[%s2 + $0x4] sm:$0xf]
  %v404 = vld [vmem:[%s2 + $0x14] sm:$0xf]
  %v405 = vld [vmem:[%s2 + $0x24] sm:$0xf]
  %v406 = vld [vmem:[%s2 + $0x34] sm:$0xf]
  %v407 = vld [vmem:[%s2 + $0x44] sm:$0xf]
  %v408 = vld [vmem:[%s2 + $0x54] sm:$0xf]
  %v409 = vld [vmem:[%s2 + $0x64] sm:$0xf]
  %v410 = vld [vmem:[%s2 + $0x74] sm:$0xf]
  %v411 = vld [vmem:[%s2 + $0x84] sm:$0xf]
  %v412 = vld [vmem:[%s2 + $0x94] sm:$0xf]
  %v413 = vld [vmem:[%s2 + $0xa4] sm:$0xf]
  %v414 = vld [vmem:[%s2 + $0xb4] sm:$0xf]
  %v415 = vld [vmem:[%s2 + $0xc4] sm:$0xf]
  %v416 = vld [vmem:[%s2 + $0xd4] sm:$0xf]
  %v417 = vld [vmem:[%s2 + $0xe4] sm:$0xf]
  %v418 = vld [vmem:[%s2 + $0xf4] sm:$0xf]
  %v435 = vunpack.c.l.b16 %v403
  %v436 = vunpack.c.l.b16 %v404
  %v437 = vunpack.c.l.b16 %v405
  %v438 = vunpack.c.l.b16 %v406
  %v439 = vunpack.c.l.b16 %v407
  %v440 = vunpack.c.l.b16 %v408
  %v441 = vunpack.c.l.b16 %v409
  %v442 = vunpack.c.l.b16 %v410
  %v443 = vunpack.c.l.b16 %v411
  %v444 = vunpack.c.l.b16 %v412
  %v445 = vunpack.c.l.b16 %v413
  %v446 = vunpack.c.l.b16 %v414
  %v447 = vunpack.c.l.b16 %v415
  %v448 = vunpack.c.l.b16 %v416
  %v449 = vunpack.c.l.b16 %v417
  %v450 = vunpack.c.l.b16 %v418
  %v451 = vpack.c.b16 %v436, %v435
  %v452 = vpack.c.b16 %v438, %v437
  %v453 = vpack.c.b16 %v440, %v439
  %v454 = vpack.c.b16 %v442, %v441
  %v455 = vpack.c.b16 %v444, %v443
  %v456 = vpack.c.b16 %v446, %v445
  %v457 = vpack.c.b16 %v448, %v447
  %v458 = vpack.c.b16 %v450, %v449
  %467 = vmatpush.bf16.msra.mxu0 %v458
  %468 = vmatpush.bf16.msra.mxu0 %v457
  %469 = vmatpush.bf16.msra.mxu0 %v456
  %470 = vmatpush.bf16.msra.mxu0 %v455
  %471 = vmatpush.bf16.msra.mxu0 %v454
  %472 = vmatpush.bf16.msra.mxu0 %v453
  %473 = vmatpush.bf16.msra.mxu0 %v452
  %474 = vmatpush.bf16.msra.mxu0 %v451
  %475 = vmatmul.bf16.gmra.mxu0 0
  %v476 = vpop.f32.mrf.mxu0
  %v477 = vadd.f32 0.0, %v476
  %v478 = vpop.f32.mrf.mxu0
  %v479 = vadd.f32 0.0, %v478
  %480 = vdwg.mxu0
  %v481 = vadd.f32 %v401, %v477
  %v482 = vadd.f32 %v402, %v479
  %v483 = vmul.f32 %v481, 0.5
  %v484 = vmul.f32 %v482, 0.5
  %v485 = vtanh.pop %v483
  %v486 = vtanh.pop %v484
  %v487 = vmul.f32 %v485, 0.5
  %v488 = vmul.f32 %v486, 0.5
  %v489 = vadd.f32 %v487, 0.5
  %v490 = vadd.f32 %v488, 0.5
  %v491 = vmul.f32 %v489, 0.0
  %v492 = vmul.f32 %v490, 0.0
  %v493 = vld [vmem:[%s398] sm:$0xf]
  %v494 = vld [vmem:[%s398 + $0x10] sm:$0xf]
  %v495 = vunpack.c.l.bf16 %v493
  %v496 = vunpack.c.l.bf16 %v494
  %v497 = vld [vmem:[%s2] sm:$0xf]
  %v498 = vld [vmem:[%s2 + $0x10] sm:$0xf]
  %v499 = vld [vmem:[%s2 + $0x20] sm:$0xf]
  %v500 = vld [vmem:[%s2 + $0x30] sm:$0xf]
  %v501 = vld [vmem:[%s2 + $0x40] sm:$0xf]
  %v502 = vld [vmem:[%s2 + $0x50] sm:$0xf]
  %v503 = vld [vmem:[%s2 + $0x60] sm:$0xf]
  %v504 = vld [vmem:[%s2 + $0x70] sm:$0xf]
  %v505 = vld [vmem:[%s2 + $0x80] sm:$0xf]
  %v506 = vld [vmem:[%s2 + $0x90] sm:$0xf]
  %v507 = vld [vmem:[%s2 + $0xa0] sm:$0xf]
  %v508 = vld [vmem:[%s2 + $0xb0] sm:$0xf]
  %v509 = vld [vmem:[%s2 + $0xc0] sm:$0xf]
  %v510 = vld [vmem:[%s2 + $0xd0] sm:$0xf]
  %v511 = vld [vmem:[%s2 + $0xe0] sm:$0xf]
  %v512 = vld [vmem:[%s2 + $0xf0] sm:$0xf]
  %v529 = vunpack.c.l.b16 %v497
  %v530 = vunpack.c.l.b16 %v498
  %v531 = vunpack.c.l.b16 %v499
  %v532 = vunpack.c.l.b16 %v500
  %v533 = vunpack.c.l.b16 %v501
  %v534 = vunpack.c.l.b16 %v502
  %v535 = vunpack.c.l.b16 %v503
  %v536 = vunpack.c.l.b16 %v504
  %v537 = vunpack.c.l.b16 %v505
  %v538 = vunpack.c.l.b16 %v506
  %v539 = vunpack.c.l.b16 %v507
  %v540 = vunpack.c.l.b16 %v508
  %v541 = vunpack.c.l.b16 %v509
  %v542 = vunpack.c.l.b16 %v510
  %v543 = vunpack.c.l.b16 %v511
  %v544 = vunpack.c.l.b16 %v512
  %v545 = vpack.c.b16 %v530, %v529
  %v546 = vpack.c.b16 %v532, %v531
  %v547 = vpack.c.b16 %v534, %v533
  %v548 = vpack.c.b16 %v536, %v535
  %v549 = vpack.c.b16 %v538, %v537
  %v550 = vpack.c.b16 %v540, %v539
  %v551 = vpack.c.b16 %v542, %v541
  %v552 = vpack.c.b16 %v544, %v543
  %561 = vmatpush.bf16.msra.mxu0 %v552
  %562 = vmatpush.bf16.msra.mxu0 %v551
  %563 = vmatpush.bf16.msra.mxu0 %v550
  %564 = vmatpush.bf16.msra.mxu0 %v549
  %565 = vmatpush.bf16.msra.mxu0 %v548
  %566 = vmatpush.bf16.msra.mxu0 %v547
  %567 = vmatpush.bf16.msra.mxu0 %v546
  %568 = vmatpush.bf16.msra.mxu0 %v545
  %569 = vmatmul.bf16.gmra.mxu0 0
  %v570 = vpop.f32.mrf.mxu0
  %v571 = vadd.f32 0.0, %v570
  %v572 = vpop.f32.mrf.mxu0
  %v573 = vadd.f32 0.0, %v572
  %574 = vdwg.mxu0
  %v575 = vadd.f32 %v495, %v571
  %v576 = vadd.f32 %v496, %v573
  %v577 = vmul.f32 %v575, 0.5
  %v578 = vmul.f32 %v576, 0.5
  %v579 = vtanh.pop %v577
  %v580 = vtanh.pop %v578
  %v581 = vmul.f32 %v579, 0.5
  %v582 = vmul.f32 %v580, 0.5
  %v583 = vadd.f32 %v581, 0.5
  %v584 = vadd.f32 %v582, 0.5
  %v585 = vld [vmem:[%s398 + $0x8] sm:$0xf]
  %v586 = vld [vmem:[%s398 + $0x18] sm:$0xf]
  %v587 = vunpack.c.l.bf16 %v585
  %v588 = vunpack.c.l.bf16 %v586
  %v589 = vld [vmem:[%s2 + $0x8] sm:$0xf]
  %v590 = vld [vmem:[%s2 + $0x18] sm:$0xf]
  %v591 = vld [vmem:[%s2 + $0x28] sm:$0xf]
  %v592 = vld [vmem:[%s2 + $0x38] sm:$0xf]
  %v593 = vld [vmem:[%s2 + $0x48] sm:$0xf]
  %v594 = vld [vmem:[%s2 + $0x58] sm:$0xf]
  %v595 = vld [vmem:[%s2 + $0x68] sm:$0xf]
  %v596 = vld [vmem:[%s2 + $0x78] sm:$0xf]
  %v597 = vld [vmem:[%s2 + $0x88] sm:$0xf]
  %v598 = vld [vmem:[%s2 + $0x98] sm:$0xf]
  %v599 = vld [vmem:[%s2 + $0xa8] sm:$0xf]
  %v600 = vld [vmem:[%s2 + $0xb8] sm:$0xf]
  %v601 = vld [vmem:[%s2 + $0xc8] sm:$0xf]
  %v602 = vld [vmem:[%s2 + $0xd8] sm:$0xf]
  %v603 = vld [vmem:[%s2 + $0xe8] sm:$0xf]
  %v604 = vld [vmem:[%s2 + $0xf8] sm:$0xf]
  %v621 = vunpack.c.l.b16 %v589
  %v622 = vunpack.c.l.b16 %v590
  %v623 = vunpack.c.l.b16 %v591
  %v624 = vunpack.c.l.b16 %v592
  %v625 = vunpack.c.l.b16 %v593
  %v626 = vunpack.c.l.b16 %v594
  %v627 = vunpack.c.l.b16 %v595
  %v628 = vunpack.c.l.b16 %v596
  %v629 = vunpack.c.l.b16 %v597
  %v630 = vunpack.c.l.b16 %v598
  %v631 = vunpack.c.l.b16 %v599
  %v632 = vunpack.c.l.b16 %v600
  %v633 = vunpack.c.l.b16 %v601
  %v634 = vunpack.c.l.b16 %v602
  %v635 = vunpack.c.l.b16 %v603
  %v636 = vunpack.c.l.b16 %v604
  %v637 = vpack.c.b16 %v622, %v621
  %v638 = vpack.c.b16 %v624, %v623
  %v639 = vpack.c.b16 %v626, %v625
  %v640 = vpack.c.b16 %v628, %v627
  %v641 = vpack.c.b16 %v630, %v629
  %v642 = vpack.c.b16 %v632, %v631
  %v643 = vpack.c.b16 %v634, %v633
  %v644 = vpack.c.b16 %v636, %v635
  %653 = vmatpush.bf16.msra.mxu0 %v644
  %654 = vmatpush.bf16.msra.mxu0 %v643
  %655 = vmatpush.bf16.msra.mxu0 %v642
  %656 = vmatpush.bf16.msra.mxu0 %v641
  %657 = vmatpush.bf16.msra.mxu0 %v640
  %658 = vmatpush.bf16.msra.mxu0 %v639
  %659 = vmatpush.bf16.msra.mxu0 %v638
  %660 = vmatpush.bf16.msra.mxu0 %v637
  %661 = vmatmul.bf16.gmra.mxu0 0
  %v662 = vpop.f32.mrf.mxu0
  %v663 = vadd.f32 0.0, %v662
  %v664 = vpop.f32.mrf.mxu0
  %v665 = vadd.f32 0.0, %v664
  %666 = vdwg.mxu0
  %v667 = vadd.f32 %v587, %v663
  %v668 = vadd.f32 %v588, %v665
  %v669 = vtanh.pop %v667
  %v670 = vtanh.pop %v668
  %v671 = vmul.f32 %v583, %v669
  %v672 = vmul.f32 %v584, %v670
  %v673 = vadd.f32 %v491, %v671
  %v674 = vadd.f32 %v492, %v672
  %v675 = vld [vmem:[%s398 + $0xc] sm:$0xf]
  %v676 = vld [vmem:[%s398 + $0x1c] sm:$0xf]
  %v677 = vunpack.c.l.bf16 %v675
  %v678 = vunpack.c.l.bf16 %v676
  %v679 = vld [vmem:[%s2 + $0xc] sm:$0xf]
  %v680 = vld [vmem:[%s2 + $0x1c] sm:$0xf]
  %v681 = vld [vmem:[%s2 + $0x2c] sm:$0xf]
  %v682 = vld [vmem:[%s2 + $0x3c] sm:$0xf]
  %v683 = vld [vmem:[%s2 + $0x4c] sm:$0xf]
  %v684 = vld [vmem:[%s2 + $0x5c] sm:$0xf]
  %v685 = vld [vmem:[%s2 + $0x6c] sm:$0xf]
  %v686 = vld [vmem:[%s2 + $0x7c] sm:$0xf]
  %v687 = vld [vmem:[%s2 + $0x8c] sm:$0xf]
  %v688 = vld [vmem:[%s2 + $0x9c] sm:$0xf]
  %v689 = vld [vmem:[%s2 + $0xac] sm:$0xf]
  %v690 = vld [vmem:[%s2 + $0xbc] sm:$0xf]
  %v691 = vld [vmem:[%s2 + $0xcc] sm:$0xf]
  %v692 = vld [vmem:[%s2 + $0xdc] sm:$0xf]
  %v693 = vld [vmem:[%s2 + $0xec] sm:$0xf]
  %v694 = vld [vmem:[%s2 + $0xfc] sm:$0xf]
  %v711 = vunpack.c.l.b16 %v679
  %v712 = vunpack.c.l.b16 %v680
  %v713 = vunpack.c.l.b16 %v681
  %v714 = vunpack.c.l.b16 %v682
  %v715 = vunpack.c.l.b16 %v683
  %v716 = vunpack.c.l.b16 %v684
  %v717 = vunpack.c.l.b16 %v685
  %v718 = vunpack.c.l.b16 %v686
  %v719 = vunpack.c.l.b16 %v687
  %v720 = vunpack.c.l.b16 %v688
  %v721 = vunpack.c.l.b16 %v689
  %v722 = vunpack.c.l.b16 %v690
  %v723 = vunpack.c.l.b16 %v691
  %v724 = vunpack.c.l.b16 %v692
  %v725 = vunpack.c.l.b16 %v693
  %v726 = vunpack.c.l.b16 %v694
  %v727 = vpack.c.b16 %v712, %v711
  %v728 = vpack.c.b16 %v714, %v713
  %v729 = vpack.c.b16 %v716, %v715
  %v730 = vpack.c.b16 %v718, %v717
  %v731 = vpack.c.b16 %v720, %v719
  %v732 = vpack.c.b16 %v722, %v721
  %v733 = vpack.c.b16 %v724, %v723
  %v734 = vpack.c.b16 %v726, %v725
  %743 = vmatpush.bf16.msra.mxu0 %v734
  %744 = vmatpush.bf16.msra.mxu0 %v733
  %745 = vmatpush.bf16.msra.mxu0 %v732
  %746 = vmatpush.bf16.msra.mxu0 %v731
  %747 = vmatpush.bf16.msra.mxu0 %v730
  %748 = vmatpush.bf16.msra.mxu0 %v729
  %749 = vmatpush.bf16.msra.mxu0 %v728
  %750 = vmatpush.bf16.msra.mxu0 %v727
  %751 = vmatmul.bf16.gmra.mxu0 0
  %v752 = vpop.f32.mrf.mxu0
  %v753 = vadd.f32 0.0, %v752
  %v754 = vpop.f32.mrf.mxu0
  %v755 = vadd.f32 0.0, %v754
  %756 = vdwg.mxu0
  %v757 = vadd.f32 %v677, %v753
  %v758 = vadd.f32 %v678, %v755
  %v759 = vmul.f32 %v757, 0.5
  %v760 = vmul.f32 %v758, 0.5
  %v761 = vtanh.pop %v759
  %v762 = vtanh.pop %v760
  %v763 = vmul.f32 %v761, 0.5
  %v764 = vmul.f32 %v762, 0.5
  %v765 = vadd.f32 %v763, 0.5
  %v766 = vadd.f32 %v764, 0.5
  %v767 = vtanh.pop %v673
  %v768 = vtanh.pop %v674
  %v769 = vmul.f32 %v765, %v767
  %v770 = vmul.f32 %v766, %v768
  %v771 = vpack.c.bf16 %v769, %v769
  %v772 = vpack.c.bf16 %v770, %v770
  %773 = vst [vmem:[#allocation3] sm:$0xf] %v771
  %774 = vst [vmem:[#allocation3 + $0x4] sm:$0xf] %v772
  %s775 = smul.u32 2, 4
  %s776 = smul.addr %s775, 4
  %s777 = scalar_lea.vmem [#allocation2], %s776
  %v778 = vld [vmem:[%s777 + $0x4] sm:$0xf]
  %v779 = vld [vmem:[%s777 + $0x14] sm:$0xf]
  %v780 = vunpack.c.l.bf16 %v778
  %v781 = vunpack.c.l.bf16 %v779
  %v782 = vld [vmem:[%s2 + $0x4] sm:$0xf]
  %v783 = vld [vmem:[%s2 + $0x14] sm:$0xf]
  %v784 = vld [vmem:[%s2 + $0x24] sm:$0xf]
  %v785 = vld [vmem:[%s2 + $0x34] sm:$0xf]
  %v786 = vld [vmem:[%s2 + $0x44] sm:$0xf]
  %v787 = vld [vmem:[%s2 + $0x54] sm:$0xf]
  %v788 = vld [vmem:[%s2 + $0x64] sm:$0xf]
  %v789 = vld [vmem:[%s2 + $0x74] sm:$0xf]
  %v790 = vld [vmem:[%s2 + $0x84] sm:$0xf]
  %v791 = vld [vmem:[%s2 + $0x94] sm:$0xf]
  %v792 = vld [vmem:[%s2 + $0xa4] sm:$0xf]
  %v793 = vld [vmem:[%s2 + $0xb4] sm:$0xf]
  %v794 = vld [vmem:[%s2 + $0xc4] sm:$0xf]
  %v795 = vld [vmem:[%s2 + $0xd4] sm:$0xf]
  %v796 = vld [vmem:[%s2 + $0xe4] sm:$0xf]
  %v797 = vld [vmem:[%s2 + $0xf4] sm:$0xf]
  %v800 = vunpack.c.l.b16 %v771
  %v801 = vunpack.c.l.b16 %v772
  %v802 = vpack.c.b16 %v801, %v800
  %v820 = vunpack.c.l.b16 %v782
  %v821 = vunpack.c.l.b16 %v783
  %v822 = vunpack.c.l.b16 %v784
  %v823 = vunpack.c.l.b16 %v785
  %v824 = vunpack.c.l.b16 %v786
  %v825 = vunpack.c.l.b16 %v787
  %v826 = vunpack.c.l.b16 %v788
  %v827 = vunpack.c.l.b16 %v789
  %v828 = vunpack.c.l.b16 %v790
  %v829 = vunpack.c.l.b16 %v791
  %v830 = vunpack.c.l.b16 %v792
  %v831 = vunpack.c.l.b16 %v793
  %v832 = vunpack.c.l.b16 %v794
  %v833 = vunpack.c.l.b16 %v795
  %v834 = vunpack.c.l.b16 %v796
  %v835 = vunpack.c.l.b16 %v797
  %v836 = vpack.c.b16 %v821, %v820
  %v837 = vpack.c.b16 %v823, %v822
  %v838 = vpack.c.b16 %v825, %v824
  %v839 = vpack.c.b16 %v827, %v826
  %v840 = vpack.c.b16 %v829, %v828
  %v841 = vpack.c.b16 %v831, %v830
  %v842 = vpack.c.b16 %v833, %v832
  %v843 = vpack.c.b16 %v835, %v834
  %852 = vmatpush.bf16.msra.mxu0 %v843
  %853 = vmatpush.bf16.msra.mxu0 %v842
  %854 = vmatpush.bf16.msra.mxu0 %v841
  %855 = vmatpush.bf16.msra.mxu0 %v840
  %856 = vmatpush.bf16.msra.mxu0 %v839
  %857 = vmatpush.bf16.msra.mxu0 %v838
  %858 = vmatpush.bf16.msra.mxu0 %v837
  %859 = vmatpush.bf16.msra.mxu0 %v836
  %860 = vmatmul.bf16.gmra.mxu0 %v802
  %v861 = vpop.f32.mrf.mxu0
  %v862 = vadd.f32 0.0, %v861
  %v863 = vpop.f32.mrf.mxu0
  %v864 = vadd.f32 0.0, %v863
  %865 = vdwg.mxu0
  %v866 = vadd.f32 %v780, %v862
  %v867 = vadd.f32 %v781, %v864
  %v868 = vmul.f32 %v866, 0.5
  %v869 = vmul.f32 %v867, 0.5
  %v870 = vtanh.pop %v868
  %v871 = vtanh.pop %v869
  %v872 = vmul.f32 %v870, 0.5
  %v873 = vmul.f32 %v871, 0.5
  %v874 = vadd.f32 %v872, 0.5
  %v875 = vadd.f32 %v873, 0.5
  %v876 = vmul.f32 %v874, %v673
  %v877 = vmul.f32 %v875, %v674
  %v878 = vld [vmem:[%s777] sm:$0xf]
  %v879 = vld [vmem:[%s777 + $0x10] sm:$0xf]
  %v880 = vunpack.c.l.bf16 %v878
  %v881 = vunpack.c.l.bf16 %v879
  %v882 = vld [vmem:[%s2] sm:$0xf]
  %v883 = vld [vmem:[%s2 + $0x10] sm:$0xf]
  %v884 = vld [vmem:[%s2 + $0x20] sm:$0xf]
  %v885 = vld [vmem:[%s2 + $0x30] sm:$0xf]
  %v886 = vld [vmem:[%s2 + $0x40] sm:$0xf]
  %v887 = vld [vmem:[%s2 + $0x50] sm:$0xf]
  %v888 = vld [vmem:[%s2 + $0x60] sm:$0xf]
  %v889 = vld [vmem:[%s2 + $0x70] sm:$0xf]
  %v890 = vld [vmem:[%s2 + $0x80] sm:$0xf]
  %v891 = vld [vmem:[%s2 + $0x90] sm:$0xf]
  %v892 = vld [vmem:[%s2 + $0xa0] sm:$0xf]
  %v893 = vld [vmem:[%s2 + $0xb0] sm:$0xf]
  %v894 = vld [vmem:[%s2 + $0xc0] sm:$0xf]
  %v895 = vld [vmem:[%s2 + $0xd0] sm:$0xf]
  %v896 = vld [vmem:[%s2 + $0xe0] sm:$0xf]
  %v897 = vld [vmem:[%s2 + $0xf0] sm:$0xf]
  %v914 = vunpack.c.l.b16 %v882
  %v915 = vunpack.c.l.b16 %v883
  %v916 = vunpack.c.l.b16 %v884
  %v917 = vunpack.c.l.b16 %v885
  %v918 = vunpack.c.l.b16 %v886
  %v919 = vunpack.c.l.b16 %v887
  %v920 = vunpack.c.l.b16 %v888
  %v921 = vunpack.c.l.b16 %v889
  %v922 = vunpack.c.l.b16 %v890
  %v923 = vunpack.c.l.b16 %v891
  %v924 = vunpack.c.l.b16 %v892
  %v925 = vunpack.c.l.b16 %v893
  %v926 = vunpack.c.l.b16 %v894
  %v927 = vunpack.c.l.b16 %v895
  %v928 = vunpack.c.l.b16 %v896
  %v929 = vunpack.c.l.b16 %v897
  %v930 = vpack.c.b16 %v915, %v914
  %v931 = vpack.c.b16 %v917, %v916
  %v932 = vpack.c.b16 %v919, %v918
  %v933 = vpack.c.b16 %v921, %v920
  %v934 = vpack.c.b16 %v923, %v922
  %v935 = vpack.c.b16 %v925, %v924
  %v936 = vpack.c.b16 %v927, %v926
  %v937 = vpack.c.b16 %v929, %v928
  %946 = vmatpush.bf16.msra.mxu0 %v937
  %947 = vmatpush.bf16.msra.mxu0 %v936
  %948 = vmatpush.bf16.msra.mxu0 %v935
  %949 = vmatpush.bf16.msra.mxu0 %v934
  %950 = vmatpush.bf16.msra.mxu0 %v933
  %951 = vmatpush.bf16.msra.mxu0 %v932
  %952 = vmatpush.bf16.msra.mxu0 %v931
  %953 = vmatpush.bf16.msra.mxu0 %v930
  %954 = vmatmul.bf16.gmra.mxu0 %v802
  %v955 = vpop.f32.mrf.mxu0
  %v956 = vadd.f32 0.0, %v955
  %v957 = vpop.f32.mrf.mxu0
  %v958 = vadd.f32 0.0, %v957
  %959 = vdwg.mxu0
  %v960 = vadd.f32 %v880, %v956
  %v961 = vadd.f32 %v881, %v958
  %v962 = vmul.f32 %v960, 0.5
  %v963 = vmul.f32 %v961, 0.5
  %v964 = vtanh.pop %v962
  %v965 = vtanh.pop %v963
  %v966 = vmul.f32 %v964, 0.5
  %v967 = vmul.f32 %v965, 0.5
  %v968 = vadd.f32 %v966, 0.5
  %v969 = vadd.f32 %v967, 0.5
  %v970 = vld [vmem:[%s777 + $0x8] sm:$0xf]
  %v971 = vld [vmem:[%s777 + $0x18] sm:$0xf]
  %v972 = vunpack.c.l.bf16 %v970
  %v973 = vunpack.c.l.bf16 %v971
  %v974 = vld [vmem:[%s2 + $0x8] sm:$0xf]
  %v975 = vld [vmem:[%s2 + $0x18] sm:$0xf]
  %v976 = vld [vmem:[%s2 + $0x28] sm:$0xf]
  %v977 = vld [vmem:[%s2 + $0x38] sm:$0xf]
  %v978 = vld [vmem:[%s2 + $0x48] sm:$0xf]
  %v979 = vld [vmem:[%s2 + $0x58] sm:$0xf]
  %v980 = vld [vmem:[%s2 + $0x68] sm:$0xf]
  %v981 = vld [vmem:[%s2 + $0x78] sm:$0xf]
  %v982 = vld [vmem:[%s2 + $0x88] sm:$0xf]
  %v983 = vld [vmem:[%s2 + $0x98] sm:$0xf]
  %v984 = vld [vmem:[%s2 + $0xa8] sm:$0xf]
  %v985 = vld [vmem:[%s2 + $0xb8] sm:$0xf]
  %v986 = vld [vmem:[%s2 + $0xc8] sm:$0xf]
  %v987 = vld [vmem:[%s2 + $0xd8] sm:$0xf]
  %v988 = vld [vmem:[%s2 + $0xe8] sm:$0xf]
  %v989 = vld [vmem:[%s2 + $0xf8] sm:$0xf]
  %v1006 = vunpack.c.l.b16 %v974
  %v1007 = vunpack.c.l.b16 %v975
  %v1008 = vunpack.c.l.b16 %v976
  %v1009 = vunpack.c.l.b16 %v977
  %v1010 = vunpack.c.l.b16 %v978
  %v1011 = vunpack.c.l.b16 %v979
  %v1012 = vunpack.c.l.b16 %v980
  %v1013 = vunpack.c.l.b16 %v981
  %v1014 = vunpack.c.l.b16 %v982
  %v1015 = vunpack.c.l.b16 %v983
  %v1016 = vunpack.c.l.b16 %v984
  %v1017 = vunpack.c.l.b16 %v985
  %v1018 = vunpack.c.l.b16 %v986
  %v1019 = vunpack.c.l.b16 %v987
  %v1020 = vunpack.c.l.b16 %v988
  %v1021 = vunpack.c.l.b16 %v989
  %v1022 = vpack.c.b16 %v1007, %v1006
  %v1023 = vpack.c.b16 %v1009, %v1008
  %v1024 = vpack.c.b16 %v1011, %v1010
  %v1025 = vpack.c.b16 %v1013, %v1012
  %v1026 = vpack.c.b16 %v1015, %v1014
  %v1027 = vpack.c.b16 %v1017, %v1016
  %v1028 = vpack.c.b16 %v1019, %v1018
  %v1029 = vpack.c.b16 %v1021, %v1020
  %1038 = vmatpush.bf16.msra.mxu0 %v1029
  %1039 = vmatpush.bf16.msra.mxu0 %v1028
  %1040 = vmatpush.bf16.msra.mxu0 %v1027
  %1041 = vmatpush.bf16.msra.mxu0 %v1026
  %1042 = vmatpush.bf16.msra.mxu0 %v1025
  %1043 = vmatpush.bf16.msra.mxu0 %v1024
  %1044 = vmatpush.bf16.msra.mxu0 %v1023
  %1045 = vmatpush.bf16.msra.mxu0 %v1022
  %1046 = vmatmul.bf16.gmra.mxu0 %v802
  %v1047 = vpop.f32.mrf.mxu0
  %v1048 = vadd.f32 0.0, %v1047
  %v1049 = vpop.f32.mrf.mxu0
  %v1050 = vadd.f32 0.0, %v1049
  %1051 = vdwg.mxu0
  %v1052 = vadd.f32 %v972, %v1048
  %v1053 = vadd.f32 %v973, %v1050
  %v1054 = vtanh.pop %v1052
  %v1055 = vtanh.pop %v1053
  %v1056 = vmul.f32 %v968, %v1054
  %v1057 = vmul.f32 %v969, %v1055
  %v1058 = vadd.f32 %v876, %v1056
  %v1059 = vadd.f32 %v877, %v1057
  %v1060 = vld [vmem:[%s777 + $0xc] sm:$0xf]
  %v1061 = vld [vmem:[%s777 + $0x1c] sm:$0xf]
  %v1062 = vunpack.c.l.bf16 %v1060
  %v1063 = vunpack.c.l.bf16 %v1061
  %v1064 = vld [vmem:[%s2 + $0xc] sm:$0xf]
  %v1065 = vld [vmem:[%s2 + $0x1c] sm:$0xf]
  %v1066 = vld [vmem:[%s2 + $0x2c] sm:$0xf]
  %v1067 = vld [vmem:[%s2 + $0x3c] sm:$0xf]
  %v1068 = vld [vmem:[%s2 + $0x4c] sm:$0xf]
  %v1069 = vld [vmem:[%s2 + $0x5c] sm:$0xf]
  %v1070 = vld [vmem:[%s2 + $0x6c] sm:$0xf]
  %v1071 = vld [vmem:[%s2 + $0x7c] sm:$0xf]
  %v1072 = vld [vmem:[%s2 + $0x8c] sm:$0xf]
  %v1073 = vld [vmem:[%s2 + $0x9c] sm:$0xf]
  %v1074 = vld [vmem:[%s2 + $0xac] sm:$0xf]
  %v1075 = vld [vmem:[%s2 + $0xbc] sm:$0xf]
  %v1076 = vld [vmem:[%s2 + $0xcc] sm:$0xf]
  %v1077 = vld [vmem:[%s2 + $0xdc] sm:$0xf]
  %v1078 = vld [vmem:[%s2 + $0xec] sm:$0xf]
  %v1079 = vld [vmem:[%s2 + $0xfc] sm:$0xf]
  %v1096 = vunpack.c.l.b16 %v1064
  %v1097 = vunpack.c.l.b16 %v1065
  %v1098 = vunpack.c.l.b16 %v1066
  %v1099 = vunpack.c.l.b16 %v1067
  %v1100 = vunpack.c.l.b16 %v1068
  %v1101 = vunpack.c.l.b16 %v1069
  %v1102 = vunpack.c.l.b16 %v1070
  %v1103 = vunpack.c.l.b16 %v1071
  %v1104 = vunpack.c.l.b16 %v1072
  %v1105 = vunpack.c.l.b16 %v1073
  %v1106 = vunpack.c.l.b16 %v1074
  %v1107 = vunpack.c.l.b16 %v1075
  %v1108 = vunpack.c.l.b16 %v1076
  %v1109 = vunpack.c.l.b16 %v1077
  %v1110 = vunpack.c.l.b16 %v1078
  %v1111 = vunpack.c.l.b16 %v1079
  %v1112 = vpack.c.b16 %v1097, %v1096
  %v1113 = vpack.c.b16 %v1099, %v1098
  %v1114 = vpack.c.b16 %v1101, %v1100
  %v1115 = vpack.c.b16 %v1103, %v1102
  %v1116 = vpack.c.b16 %v1105, %v1104
  %v1117 = vpack.c.b16 %v1107, %v1106
  %v1118 = vpack.c.b16 %v1109, %v1108
  %v1119 = vpack.c.b16 %v1111, %v1110
  %1128 = vmatpush.bf16.msra.mxu0 %v1119
  %1129 = vmatpush.bf16.msra.mxu0 %v1118
  %1130 = vmatpush.bf16.msra.mxu0 %v1117
  %1131 = vmatpush.bf16.msra.mxu0 %v1116
  %1132 = vmatpush.bf16.msra.mxu0 %v1115
  %1133 = vmatpush.bf16.msra.mxu0 %v1114
  %1134 = vmatpush.bf16.msra.mxu0 %v1113
  %1135 = vmatpush.bf16.msra.mxu0 %v1112
  %1136 = vmatmul.bf16.gmra.mxu0 %v802
  %v1137 = vpop.f32.mrf.mxu0
  %v1138 = vadd.f32 0.0, %v1137
  %v1139 = vpop.f32.mrf.mxu0
  %v1140 = vadd.f32 0.0, %v1139
  %1141 = vdwg.mxu0
  %v1142 = vadd.f32 %v1062, %v1138
  %v1143 = vadd.f32 %v1063, %v1140
  %v1144 = vmul.f32 %v1142, 0.5
  %v1145 = vmul.f32 %v1143, 0.5
  %v1146 = vtanh.pop %v1144
  %v1147 = vtanh.pop %v1145
  %v1148 = vmul.f32 %v1146, 0.5
  %v1149 = vmul.f32 %v1147, 0.5
  %v1150 = vadd.f32 %v1148, 0.5
  %v1151 = vadd.f32 %v1149, 0.5
  %v1152 = vtanh.pop %v1058
  %v1153 = vtanh.pop %v1059
  %v1154 = vmul.f32 %v1150, %v1152
  %v1155 = vmul.f32 %v1151, %v1153
  %v1156 = vpack.c.bf16 %v1154, %v1154
  %v1157 = vpack.c.bf16 %v1155, %v1155
  %s1158 = scalar_lea.vmem [#allocation3], 8
  %1159 = vst [vmem:[%s1158] sm:$0xf] %v1156
  %1160 = vst [vmem:[%s1158 + $0x4] sm:$0xf] %v1157
  %s1161 = smul.u32 4, 4
  %s1162 = smul.addr %s1161, 4
  %s1163 = scalar_lea.vmem [#allocation2], %s1162
  %v1164 = vld [vmem:[%s1163 + $0x4] sm:$0xf]
  %v1165 = vld [vmem:[%s1163 + $0x14] sm:$0xf]
  %v1166 = vunpack.c.l.bf16 %v1164
  %v1167 = vunpack.c.l.bf16 %v1165
  %v1168 = vld [vmem:[%s2 + $0x4] sm:$0xf]
  %v1169 = vld [vmem:[%s2 + $0x14] sm:$0xf]
  %v1170 = vld [vmem:[%s2 + $0x24] sm:$0xf]
  %v1171 = vld [vmem:[%s2 + $0x34] sm:$0xf]
  %v1172 = vld [vmem:[%s2 + $0x44] sm:$0xf]
  %v1173 = vld [vmem:[%s2 + $0x54] sm:$0xf]
  %v1174 = vld [vmem:[%s2 + $0x64] sm:$0xf]
  %v1175 = vld [vmem:[%s2 + $0x74] sm:$0xf]
  %v1176 = vld [vmem:[%s2 + $0x84] sm:$0xf]
  %v1177 = vld [vmem:[%s2 + $0x94] sm:$0xf]
  %v1178 = vld [vmem:[%s2 + $0xa4] sm:$0xf]
  %v1179 = vld [vmem:[%s2 + $0xb4] sm:$0xf]
  %v1180 = vld [vmem:[%s2 + $0xc4] sm:$0xf]
  %v1181 = vld [vmem:[%s2 + $0xd4] sm:$0xf]
  %v1182 = vld [vmem:[%s2 + $0xe4] sm:$0xf]
  %v1183 = vld [vmem:[%s2 + $0xf4] sm:$0xf]
  %v1186 = vunpack.c.l.b16 %v1156
  %v1187 = vunpack.c.l.b16 %v1157
  %v1188 = vpack.c.b16 %v1187, %v1186
  %v1206 = vunpack.c.l.b16 %v1168
  %v1207 = vunpack.c.l.b16 %v1169
  %v1208 = vunpack.c.l.b16 %v1170
  %v1209 = vunpack.c.l.b16 %v1171
  %v1210 = vunpack.c.l.b16 %v1172
  %v1211 = vunpack.c.l.b16 %v1173
  %v1212 = vunpack.c.l.b16 %v1174
  %v1213 = vunpack.c.l.b16 %v1175
  %v1214 = vunpack.c.l.b16 %v1176
  %v1215 = vunpack.c.l.b16 %v1177
  %v1216 = vunpack.c.l.b16 %v1178
  %v1217 = vunpack.c.l.b16 %v1179
  %v1218 = vunpack.c.l.b16 %v1180
  %v1219 = vunpack.c.l.b16 %v1181
  %v1220 = vunpack.c.l.b16 %v1182
  %v1221 = vunpack.c.l.b16 %v1183
  %v1222 = vpack.c.b16 %v1207, %v1206
  %v1223 = vpack.c.b16 %v1209, %v1208
  %v1224 = vpack.c.b16 %v1211, %v1210
  %v1225 = vpack.c.b16 %v1213, %v1212
  %v1226 = vpack.c.b16 %v1215, %v1214
  %v1227 = vpack.c.b16 %v1217, %v1216
  %v1228 = vpack.c.b16 %v1219, %v1218
  %v1229 = vpack.c.b16 %v1221, %v1220
  %1238 = vmatpush.bf16.msra.mxu0 %v1229
  %1239 = vmatpush.bf16.msra.mxu0 %v1228
  %1240 = vmatpush.bf16.msra.mxu0 %v1227
  %1241 = vmatpush.bf16.msra.mxu0 %v1226
  %1242 = vmatpush.bf16.msra.mxu0 %v1225
  %1243 = vmatpush.bf16.msra.mxu0 %v1224
  %1244 = vmatpush.bf16.msra.mxu0 %v1223
  %1245 = vmatpush.bf16.msra.mxu0 %v1222
  %1246 = vmatmul.bf16.gmra.mxu0 %v1188
  %v1247 = vpop.f32.mrf.mxu0
  %v1248 = vadd.f32 0.0, %v1247
  %v1249 = vpop.f32.mrf.mxu0
  %v1250 = vadd.f32 0.0, %v1249
  %1251 = vdwg.mxu0
  %v1252 = vadd.f32 %v1166, %v1248
  %v1253 = vadd.f32 %v1167, %v1250
  %v1254 = vmul.f32 %v1252, 0.5
  %v1255 = vmul.f32 %v1253, 0.5
  %v1256 = vtanh.pop %v1254
  %v1257 = vtanh.pop %v1255
  %v1258 = vmul.f32 %v1256, 0.5
  %v1259 = vmul.f32 %v1257, 0.5
  %v1260 = vadd.f32 %v1258, 0.5
  %v1261 = vadd.f32 %v1259, 0.5
  %v1262 = vmul.f32 %v1260, %v1058
  %v1263 = vmul.f32 %v1261, %v1059
  %v1264 = vld [vmem:[%s1163] sm:$0xf]
  %v1265 = vld [vmem:[%s1163 + $0x10] sm:$0xf]
  %v1266 = vunpack.c.l.bf16 %v1264
  %v1267 = vunpack.c.l.bf16 %v1265
  %v1268 = vld [vmem:[%s2] sm:$0xf]
  %v1269 = vld [vmem:[%s2 + $0x10] sm:$0xf]
  %v1270 = vld [vmem:[%s2 + $0x20] sm:$0xf]
  %v1271 = vld [vmem:[%s2 + $0x30] sm:$0xf]
  %v1272 = vld [vmem:[%s2 + $0x40] sm:$0xf]
  %v1273 = vld [vmem:[%s2 + $0x50] sm:$0xf]
  %v1274 = vld [vmem:[%s2 + $0x60] sm:$0xf]
  %v1275 = vld [vmem:[%s2 + $0x70] sm:$0xf]
  %v1276 = vld [vmem:[%s2 + $0x80] sm:$0xf]
  %v1277 = vld [vmem:[%s2 + $0x90] sm:$0xf]
  %v1278 = vld [vmem:[%s2 + $0xa0] sm:$0xf]
  %v1279 = vld [vmem:[%s2 + $0xb0] sm:$0xf]
  %v1280 = vld [vmem:[%s2 + $0xc0] sm:$0xf]
  %v1281 = vld [vmem:[%s2 + $0xd0] sm:$0xf]
  %v1282 = vld [vmem:[%s2 + $0xe0] sm:$0xf]
  %v1283 = vld [vmem:[%s2 + $0xf0] sm:$0xf]
  %v1300 = vunpack.c.l.b16 %v1268
  %v1301 = vunpack.c.l.b16 %v1269
  %v1302 = vunpack.c.l.b16 %v1270
  %v1303 = vunpack.c.l.b16 %v1271
  %v1304 = vunpack.c.l.b16 %v1272
  %v1305 = vunpack.c.l.b16 %v1273
  %v1306 = vunpack.c.l.b16 %v1274
  %v1307 = vunpack.c.l.b16 %v1275
  %v1308 = vunpack.c.l.b16 %v1276
  %v1309 = vunpack.c.l.b16 %v1277
  %v1310 = vunpack.c.l.b16 %v1278
  %v1311 = vunpack.c.l.b16 %v1279
  %v1312 = vunpack.c.l.b16 %v1280
  %v1313 = vunpack.c.l.b16 %v1281
  %v1314 = vunpack.c.l.b16 %v1282
  %v1315 = vunpack.c.l.b16 %v1283
  %v1316 = vpack.c.b16 %v1301, %v1300
  %v1317 = vpack.c.b16 %v1303, %v1302
  %v1318 = vpack.c.b16 %v1305, %v1304
  %v1319 = vpack.c.b16 %v1307, %v1306
  %v1320 = vpack.c.b16 %v1309, %v1308
  %v1321 = vpack.c.b16 %v1311, %v1310
  %v1322 = vpack.c.b16 %v1313, %v1312
  %v1323 = vpack.c.b16 %v1315, %v1314
  %1332 = vmatpush.bf16.msra.mxu0 %v1323
  %1333 = vmatpush.bf16.msra.mxu0 %v1322
  %1334 = vmatpush.bf16.msra.mxu0 %v1321
  %1335 = vmatpush.bf16.msra.mxu0 %v1320
  %1336 = vmatpush.bf16.msra.mxu0 %v1319
  %1337 = vmatpush.bf16.msra.mxu0 %v1318
  %1338 = vmatpush.bf16.msra.mxu0 %v1317
  %1339 = vmatpush.bf16.msra.mxu0 %v1316
  %1340 = vmatmul.bf16.gmra.mxu0 %v1188
  %v1341 = vpop.f32.mrf.mxu0
  %v1342 = vadd.f32 0.0, %v1341
  %v1343 = vpop.f32.mrf.mxu0
  %v1344 = vadd.f32 0.0, %v1343
  %1345 = vdwg.mxu0
  %v1346 = vadd.f32 %v1266, %v1342
  %v1347 = vadd.f32 %v1267, %v1344
  %v1348 = vmul.f32 %v1346, 0.5
  %v1349 = vmul.f32 %v1347, 0.5
  %v1350 = vtanh.pop %v1348
  %v1351 = vtanh.pop %v1349
  %v1352 = vmul.f32 %v1350, 0.5
  %v1353 = vmul.f32 %v1351, 0.5
  %v1354 = vadd.f32 %v1352, 0.5
  %v1355 = vadd.f32 %v1353, 0.5
  %v1356 = vld [vmem:[%s1163 + $0x8] sm:$0xf]
  %v1357 = vld [vmem:[%s1163 + $0x18] sm:$0xf]
  %v1358 = vunpack.c.l.bf16 %v1356
  %v1359 = vunpack.c.l.bf16 %v1357
  %v1360 = vld [vmem:[%s2 + $0x8] sm:$0xf]
  %v1361 = vld [vmem:[%s2 + $0x18] sm:$0xf]
  %v1362 = vld [vmem:[%s2 + $0x28] sm:$0xf]
  %v1363 = vld [vmem:[%s2 + $0x38] sm:$0xf]
  %v1364 = vld [vmem:[%s2 + $0x48] sm:$0xf]
  %v1365 = vld [vmem:[%s2 + $0x58] sm:$0xf]
  %v1366 = vld [vmem:[%s2 + $0x68] sm:$0xf]
  %v1367 = vld [vmem:[%s2 + $0x78] sm:$0xf]
  %v1368 = vld [vmem:[%s2 + $0x88] sm:$0xf]
  %v1369 = vld [vmem:[%s2 + $0x98] sm:$0xf]
  %v1370 = vld [vmem:[%s2 + $0xa8] sm:$0xf]
  %v1371 = vld [vmem:[%s2 + $0xb8] sm:$0xf]
  %v1372 = vld [vmem:[%s2 + $0xc8] sm:$0xf]
  %v1373 = vld [vmem:[%s2 + $0xd8] sm:$0xf]
  %v1374 = vld [vmem:[%s2 + $0xe8] sm:$0xf]
  %v1375 = vld [vmem:[%s2 + $0xf8] sm:$0xf]
  %v1392 = vunpack.c.l.b16 %v1360
  %v1393 = vunpack.c.l.b16 %v1361
  %v1394 = vunpack.c.l.b16 %v1362
  %v1395 = vunpack.c.l.b16 %v1363
  %v1396 = vunpack.c.l.b16 %v1364
  %v1397 = vunpack.c.l.b16 %v1365
  %v1398 = vunpack.c.l.b16 %v1366
  %v1399 = vunpack.c.l.b16 %v1367
  %v1400 = vunpack.c.l.b16 %v1368
  %v1401 = vunpack.c.l.b16 %v1369
  %v1402 = vunpack.c.l.b16 %v1370
  %v1403 = vunpack.c.l.b16 %v1371
  %v1404 = vunpack.c.l.b16 %v1372
  %v1405 = vunpack.c.l.b16 %v1373
  %v1406 = vunpack.c.l.b16 %v1374
  %v1407 = vunpack.c.l.b16 %v1375
  %v1408 = vpack.c.b16 %v1393, %v1392
  %v1409 = vpack.c.b16 %v1395, %v1394
  %v1410 = vpack.c.b16 %v1397, %v1396
  %v1411 = vpack.c.b16 %v1399, %v1398
  %v1412 = vpack.c.b16 %v1401, %v1400
  %v1413 = vpack.c.b16 %v1403, %v1402
  %v1414 = vpack.c.b16 %v1405, %v1404
  %v1415 = vpack.c.b16 %v1407, %v1406
  %1424 = vmatpush.bf16.msra.mxu0 %v1415
  %1425 = vmatpush.bf16.msra.mxu0 %v1414
  %1426 = vmatpush.bf16.msra.mxu0 %v1413
  %1427 = vmatpush.bf16.msra.mxu0 %v1412
  %1428 = vmatpush.bf16.msra.mxu0 %v1411
  %1429 = vmatpush.bf16.msra.mxu0 %v1410
  %1430 = vmatpush.bf16.msra.mxu0 %v1409
  %1431 = vmatpush.bf16.msra.mxu0 %v1408
  %1432 = vmatmul.bf16.gmra.mxu0 %v1188
  %v1433 = vpop.f32.mrf.mxu0
  %v1434 = vadd.f32 0.0, %v1433
  %v1435 = vpop.f32.mrf.mxu0
  %v1436 = vadd.f32 0.0, %v1435
  %1437 = vdwg.mxu0
  %v1438 = vadd.f32 %v1358, %v1434
  %v1439 = vadd.f32 %v1359, %v1436
  %v1440 = vtanh.pop %v1438
  %v1441 = vtanh.pop %v1439
  %v1442 = vmul.f32 %v1354, %v1440
  %v1443 = vmul.f32 %v1355, %v1441
  %v1444 = vadd.f32 %v1262, %v1442
  %v1445 = vadd.f32 %v1263, %v1443
  %v1446 = vld [vmem:[%s1163 + $0xc] sm:$0xf]
  %v1447 = vld [vmem:[%s1163 + $0x1c] sm:$0xf]
  %v1448 = vunpack.c.l.bf16 %v1446
  %v1449 = vunpack.c.l.bf16 %v1447
  %v1450 = vld [vmem:[%s2 + $0xc] sm:$0xf]
  %v1451 = vld [vmem:[%s2 + $0x1c] sm:$0xf]
  %v1452 = vld [vmem:[%s2 + $0x2c] sm:$0xf]
  %v1453 = vld [vmem:[%s2 + $0x3c] sm:$0xf]
  %v1454 = vld [vmem:[%s2 + $0x4c] sm:$0xf]
  %v1455 = vld [vmem:[%s2 + $0x5c] sm:$0xf]
  %v1456 = vld [vmem:[%s2 + $0x6c] sm:$0xf]
  %v1457 = vld [vmem:[%s2 + $0x7c] sm:$0xf]
  %v1458 = vld [vmem:[%s2 + $0x8c] sm:$0xf]
  %v1459 = vld [vmem:[%s2 + $0x9c] sm:$0xf]
  %v1460 = vld [vmem:[%s2 + $0xac] sm:$0xf]
  %v1461 = vld [vmem:[%s2 + $0xbc] sm:$0xf]
  %v1462 = vld [vmem:[%s2 + $0xcc] sm:$0xf]
  %v1463 = vld [vmem:[%s2 + $0xdc] sm:$0xf]
  %v1464 = vld [vmem:[%s2 + $0xec] sm:$0xf]
  %v1465 = vld [vmem:[%s2 + $0xfc] sm:$0xf]
  %v1482 = vunpack.c.l.b16 %v1450
  %v1483 = vunpack.c.l.b16 %v1451
  %v1484 = vunpack.c.l.b16 %v1452
  %v1485 = vunpack.c.l.b16 %v1453
  %v1486 = vunpack.c.l.b16 %v1454
  %v1487 = vunpack.c.l.b16 %v1455
  %v1488 = vunpack.c.l.b16 %v1456
  %v1489 = vunpack.c.l.b16 %v1457
  %v1490 = vunpack.c.l.b16 %v1458
  %v1491 = vunpack.c.l.b16 %v1459
  %v1492 = vunpack.c.l.b16 %v1460
  %v1493 = vunpack.c.l.b16 %v1461
  %v1494 = vunpack.c.l.b16 %v1462
  %v1495 = vunpack.c.l.b16 %v1463
  %v1496 = vunpack.c.l.b16 %v1464
  %v1497 = vunpack.c.l.b16 %v1465
  %v1498 = vpack.c.b16 %v1483, %v1482
  %v1499 = vpack.c.b16 %v1485, %v1484
  %v1500 = vpack.c.b16 %v1487, %v1486
  %v1501 = vpack.c.b16 %v1489, %v1488
  %v1502 = vpack.c.b16 %v1491, %v1490
  %v1503 = vpack.c.b16 %v1493, %v1492
  %v1504 = vpack.c.b16 %v1495, %v1494
  %v1505 = vpack.c.b16 %v1497, %v1496
  %1514 = vmatpush.bf16.msra.mxu0 %v1505
  %1515 = vmatpush.bf16.msra.mxu0 %v1504
  %1516 = vmatpush.bf16.msra.mxu0 %v1503
  %1517 = vmatpush.bf16.msra.mxu0 %v1502
  %1518 = vmatpush.bf16.msra.mxu0 %v1501
  %1519 = vmatpush.bf16.msra.mxu0 %v1500
  %1520 = vmatpush.bf16.msra.mxu0 %v1499
  %1521 = vmatpush.bf16.msra.mxu0 %v1498
  %1522 = vmatmul.bf16.gmra.mxu0 %v1188
  %v1523 = vpop.f32.mrf.mxu0
  %v1524 = vadd.f32 0.0, %v1523
  %v1525 = vpop.f32.mrf.mxu0
  %v1526 = vadd.f32 0.0, %v1525
  %1527 = vdwg.mxu0
  %v1528 = vadd.f32 %v1448, %v1524
  %v1529 = vadd.f32 %v1449, %v1526
  %v1530 = vmul.f32 %v1528, 0.5
  %v1531 = vmul.f32 %v1529, 0.5
  %v1532 = vtanh.pop %v1530
  %v1533 = vtanh.pop %v1531
  %v1534 = vmul.f32 %v1532, 0.5
  %v1535 = vmul.f32 %v1533, 0.5
  %v1536 = vadd.f32 %v1534, 0.5
  %v1537 = vadd.f32 %v1535, 0.5
  %v1538 = vtanh.pop %v1444
  %v1539 = vtanh.pop %v1445
  %v1540 = vmul.f32 %v1536, %v1538
  %v1541 = vmul.f32 %v1537, %v1539
  %v1542 = vpack.c.bf16 %v1540, %v1540
  %v1543 = vpack.c.bf16 %v1541, %v1541
  %s1544 = scalar_lea.vmem [#allocation3], 16
  %1545 = vst [vmem:[%s1544] sm:$0xf] %v1542
  %1546 = vst [vmem:[%s1544 + $0x4] sm:$0xf] %v1543
  %s1547 = smul.u32 6, 4
  %s1548 = smul.addr %s1547, 4
  %s1549 = scalar_lea.vmem [#allocation2], %s1548
  %v1550 = vld [vmem:[%s1549 + $0x4] sm:$0xf]
  %v1551 = vld [vmem:[%s1549 + $0x14] sm:$0xf]
  %v1552 = vunpack.c.l.bf16 %v1550
  %v1553 = vunpack.c.l.bf16 %v1551
  %v1554 = vld [vmem:[%s2 + $0x4] sm:$0xf]
  %v1555 = vld [vmem:[%s2 + $0x14] sm:$0xf]
  %v1556 = vld [vmem:[%s2 + $0x24] sm:$0xf]
  %v1557 = vld [vmem:[%s2 + $0x34] sm:$0xf]
  %v1558 = vld [vmem:[%s2 + $0x44] sm:$0xf]
  %v1559 = vld [vmem:[%s2 + $0x54] sm:$0xf]
  %v1560 = vld [vmem:[%s2 + $0x64] sm:$0xf]
  %v1561 = vld [vmem:[%s2 + $0x74] sm:$0xf]
  %v1562 = vld [vmem:[%s2 + $0x84] sm:$0xf]
  %v1563 = vld [vmem:[%s2 + $0x94] sm:$0xf]
  %v1564 = vld [vmem:[%s2 + $0xa4] sm:$0xf]
  %v1565 = vld [vmem:[%s2 + $0xb4] sm:$0xf]
  %v1566 = vld [vmem:[%s2 + $0xc4] sm:$0xf]
  %v1567 = vld [vmem:[%s2 + $0xd4] sm:$0xf]
  %v1568 = vld [vmem:[%s2 + $0xe4] sm:$0xf]
  %v1569 = vld [vmem:[%s2 + $0xf4] sm:$0xf]
  %v1572 = vunpack.c.l.b16 %v1542
  %v1573 = vunpack.c.l.b16 %v1543
  %v1574 = vpack.c.b16 %v1573, %v1572
  %v1592 = vunpack.c.l.b16 %v1554
  %v1593 = vunpack.c.l.b16 %v1555
  %v1594 = vunpack.c.l.b16 %v1556
  %v1595 = vunpack.c.l.b16 %v1557
  %v1596 = vunpack.c.l.b16 %v1558
  %v1597 = vunpack.c.l.b16 %v1559
  %v1598 = vunpack.c.l.b16 %v1560
  %v1599 = vunpack.c.l.b16 %v1561
  %v1600 = vunpack.c.l.b16 %v1562
  %v1601 = vunpack.c.l.b16 %v1563
  %v1602 = vunpack.c.l.b16 %v1564
  %v1603 = vunpack.c.l.b16 %v1565
  %v1604 = vunpack.c.l.b16 %v1566
  %v1605 = vunpack.c.l.b16 %v1567
  %v1606 = vunpack.c.l.b16 %v1568
  %v1607 = vunpack.c.l.b16 %v1569
  %v1608 = vpack.c.b16 %v1593, %v1592
  %v1609 = vpack.c.b16 %v1595, %v1594
  %v1610 = vpack.c.b16 %v1597, %v1596
  %v1611 = vpack.c.b16 %v1599, %v1598
  %v1612 = vpack.c.b16 %v1601, %v1600
  %v1613 = vpack.c.b16 %v1603, %v1602
  %v1614 = vpack.c.b16 %v1605, %v1604
  %v1615 = vpack.c.b16 %v1607, %v1606
  %1624 = vmatpush.bf16.msra.mxu0 %v1615
  %1625 = vmatpush.bf16.msra.mxu0 %v1614
  %1626 = vmatpush.bf16.msra.mxu0 %v1613
  %1627 = vmatpush.bf16.msra.mxu0 %v1612
  %1628 = vmatpush.bf16.msra.mxu0 %v1611
  %1629 = vmatpush.bf16.msra.mxu0 %v1610
  %1630 = vmatpush.bf16.msra.mxu0 %v1609
  %1631 = vmatpush.bf16.msra.mxu0 %v1608
  %1632 = vmatmul.bf16.gmra.mxu0 %v1574
  %v1633 = vpop.f32.mrf.mxu0
  %v1634 = vadd.f32 0.0, %v1633
  %v1635 = vpop.f32.mrf.mxu0
  %v1636 = vadd.f32 0.0, %v1635
  %1637 = vdwg.mxu0
  %v1638 = vadd.f32 %v1552, %v1634
  %v1639 = vadd.f32 %v1553, %v1636
  %v1640 = vmul.f32 %v1638, 0.5
  %v1641 = vmul.f32 %v1639, 0.5
  %v1642 = vtanh.pop %v1640
  %v1643 = vtanh.pop %v1641
  %v1644 = vmul.f32 %v1642, 0.5
  %v1645 = vmul.f32 %v1643, 0.5
  %v1646 = vadd.f32 %v1644, 0.5
  %v1647 = vadd.f32 %v1645, 0.5
  %v1648 = vmul.f32 %v1646, %v1444
  %v1649 = vmul.f32 %v1647, %v1445
  %v1650 = vld [vmem:[%s1549] sm:$0xf]
  %v1651 = vld [vmem:[%s1549 + $0x10] sm:$0xf]
  %v1652 = vunpack.c.l.bf16 %v1650
  %v1653 = vunpack.c.l.bf16 %v1651
  %v1654 = vld [vmem:[%s2] sm:$0xf]
  %v1655 = vld [vmem:[%s2 + $0x10] sm:$0xf]
  %v1656 = vld [vmem:[%s2 + $0x20] sm:$0xf]
  %v1657 = vld [vmem:[%s2 + $0x30] sm:$0xf]
  %v1658 = vld [vmem:[%s2 + $0x40] sm:$0xf]
  %v1659 = vld [vmem:[%s2 + $0x50] sm:$0xf]
  %v1660 = vld [vmem:[%s2 + $0x60] sm:$0xf]
  %v1661 = vld [vmem:[%s2 + $0x70] sm:$0xf]
  %v1662 = vld [vmem:[%s2 + $0x80] sm:$0xf]
  %v1663 = vld [vmem:[%s2 + $0x90] sm:$0xf]
  %v1664 = vld [vmem:[%s2 + $0xa0] sm:$0xf]
  %v1665 = vld [vmem:[%s2 + $0xb0] sm:$0xf]
  %v1666 = vld [vmem:[%s2 + $0xc0] sm:$0xf]
  %v1667 = vld [vmem:[%s2 + $0xd0] sm:$0xf]
  %v1668 = vld [vmem:[%s2 + $0xe0] sm:$0xf]
  %v1669 = vld [vmem:[%s2 + $0xf0] sm:$0xf]
  %v1686 = vunpack.c.l.b16 %v1654
  %v1687 = vunpack.c.l.b16 %v1655
  %v1688 = vunpack.c.l.b16 %v1656
  %v1689 = vunpack.c.l.b16 %v1657
  %v1690 = vunpack.c.l.b16 %v1658
  %v1691 = vunpack.c.l.b16 %v1659
  %v1692 = vunpack.c.l.b16 %v1660
  %v1693 = vunpack.c.l.b16 %v1661
  %v1694 = vunpack.c.l.b16 %v1662
  %v1695 = vunpack.c.l.b16 %v1663
  %v1696 = vunpack.c.l.b16 %v1664
  %v1697 = vunpack.c.l.b16 %v1665
  %v1698 = vunpack.c.l.b16 %v1666
  %v1699 = vunpack.c.l.b16 %v1667
  %v1700 = vunpack.c.l.b16 %v1668
  %v1701 = vunpack.c.l.b16 %v1669
  %v1702 = vpack.c.b16 %v1687, %v1686
  %v1703 = vpack.c.b16 %v1689, %v1688
  %v1704 = vpack.c.b16 %v1691, %v1690
  %v1705 = vpack.c.b16 %v1693, %v1692
  %v1706 = vpack.c.b16 %v1695, %v1694
  %v1707 = vpack.c.b16 %v1697, %v1696
  %v1708 = vpack.c.b16 %v1699, %v1698
  %v1709 = vpack.c.b16 %v1701, %v1700
  %1718 = vmatpush.bf16.msra.mxu0 %v1709
  %1719 = vmatpush.bf16.msra.mxu0 %v1708
  %1720 = vmatpush.bf16.msra.mxu0 %v1707
  %1721 = vmatpush.bf16.msra.mxu0 %v1706
  %1722 = vmatpush.bf16.msra.mxu0 %v1705
  %1723 = vmatpush.bf16.msra.mxu0 %v1704
  %1724 = vmatpush.bf16.msra.mxu0 %v1703
  %1725 = vmatpush.bf16.msra.mxu0 %v1702
  %1726 = vmatmul.bf16.gmra.mxu0 %v1574
  %v1727 = vpop.f32.mrf.mxu0
  %v1728 = vadd.f32 0.0, %v1727
  %v1729 = vpop.f32.mrf.mxu0
  %v1730 = vadd.f32 0.0, %v1729
  %1731 = vdwg.mxu0
  %v1732 = vadd.f32 %v1652, %v1728
  %v1733 = vadd.f32 %v1653, %v1730
  %v1734 = vmul.f32 %v1732, 0.5
  %v1735 = vmul.f32 %v1733, 0.5
  %v1736 = vtanh.pop %v1734
  %v1737 = vtanh.pop %v1735
  %v1738 = vmul.f32 %v1736, 0.5
  %v1739 = vmul.f32 %v1737, 0.5
  %v1740 = vadd.f32 %v1738, 0.5
  %v1741 = vadd.f32 %v1739, 0.5
  %v1742 = vld [vmem:[%s1549 + $0x8] sm:$0xf]
  %v1743 = vld [vmem:[%s1549 + $0x18] sm:$0xf]
  %v1744 = vunpack.c.l.bf16 %v1742
  %v1745 = vunpack.c.l.bf16 %v1743
  %v1746 = vld [vmem:[%s2 + $0x8] sm:$0xf]
  %v1747 = vld [vmem:[%s2 + $0x18] sm:$0xf]
  %v1748 = vld [vmem:[%s2 + $0x28] sm:$0xf]
  %v1749 = vld [vmem:[%s2 + $0x38] sm:$0xf]
  %v1750 = vld [vmem:[%s2 + $0x48] sm:$0xf]
  %v1751 = vld [vmem:[%s2 + $0x58] sm:$0xf]
  %v1752 = vld [vmem:[%s2 + $0x68] sm:$0xf]
  %v1753 = vld [vmem:[%s2 + $0x78] sm:$0xf]
  %v1754 = vld [vmem:[%s2 + $0x88] sm:$0xf]
  %v1755 = vld [vmem:[%s2 + $0x98] sm:$0xf]
  %v1756 = vld [vmem:[%s2 + $0xa8] sm:$0xf]
  %v1757 = vld [vmem:[%s2 + $0xb8] sm:$0xf]
  %v1758 = vld [vmem:[%s2 + $0xc8] sm:$0xf]
  %v1759 = vld [vmem:[%s2 + $0xd8] sm:$0xf]
  %v1760 = vld [vmem:[%s2 + $0xe8] sm:$0xf]
  %v1761 = vld [vmem:[%s2 + $0xf8] sm:$0xf]
  %v1778 = vunpack.c.l.b16 %v1746
  %v1779 = vunpack.c.l.b16 %v1747
  %v1780 = vunpack.c.l.b16 %v1748
  %v1781 = vunpack.c.l.b16 %v1749
  %v1782 = vunpack.c.l.b16 %v1750
  %v1783 = vunpack.c.l.b16 %v1751
  %v1784 = vunpack.c.l.b16 %v1752
  %v1785 = vunpack.c.l.b16 %v1753
  %v1786 = vunpack.c.l.b16 %v1754
  %v1787 = vunpack.c.l.b16 %v1755
  %v1788 = vunpack.c.l.b16 %v1756
  %v1789 = vunpack.c.l.b16 %v1757
  %v1790 = vunpack.c.l.b16 %v1758
  %v1791 = vunpack.c.l.b16 %v1759
  %v1792 = vunpack.c.l.b16 %v1760
  %v1793 = vunpack.c.l.b16 %v1761
  %v1794 = vpack.c.b16 %v1779, %v1778
  %v1795 = vpack.c.b16 %v1781, %v1780
  %v1796 = vpack.c.b16 %v1783, %v1782
  %v1797 = vpack.c.b16 %v1785, %v1784
  %v1798 = vpack.c.b16 %v1787, %v1786
  %v1799 = vpack.c.b16 %v1789, %v1788
  %v1800 = vpack.c.b16 %v1791, %v1790
  %v1801 = vpack.c.b16 %v1793, %v1792
  %1810 = vmatpush.bf16.msra.mxu0 %v1801
  %1811 = vmatpush.bf16.msra.mxu0 %v1800
  %1812 = vmatpush.bf16.msra.mxu0 %v1799
  %1813 = vmatpush.bf16.msra.mxu0 %v1798
  %1814 = vmatpush.bf16.msra.mxu0 %v1797
  %1815 = vmatpush.bf16.msra.mxu0 %v1796
  %1816 = vmatpush.bf16.msra.mxu0 %v1795
  %1817 = vmatpush.bf16.msra.mxu0 %v1794
  %1818 = vmatmul.bf16.gmra.mxu0 %v1574
  %v1819 = vpop.f32.mrf.mxu0
  %v1820 = vadd.f32 0.0, %v1819
  %v1821 = vpop.f32.mrf.mxu0
  %v1822 = vadd.f32 0.0, %v1821
  %1823 = vdwg.mxu0
  %v1824 = vadd.f32 %v1744, %v1820
  %v1825 = vadd.f32 %v1745, %v1822
  %v1826 = vtanh.pop %v1824
  %v1827 = vtanh.pop %v1825
  %v1828 = vmul.f32 %v1740, %v1826
  %v1829 = vmul.f32 %v1741, %v1827
  %v1830 = vadd.f32 %v1648, %v1828
  %v1831 = vadd.f32 %v1649, %v1829
  %v1832 = vld [vmem:[%s1549 + $0xc] sm:$0xf]
  %v1833 = vld [vmem:[%s1549 + $0x1c] sm:$0xf]
  %v1834 = vunpack.c.l.bf16 %v1832
  %v1835 = vunpack.c.l.bf16 %v1833
  %v1836 = vld [vmem:[%s2 + $0xc] sm:$0xf]
  %v1837 = vld [vmem:[%s2 + $0x1c] sm:$0xf]
  %v1838 = vld [vmem:[%s2 + $0x2c] sm:$0xf]
  %v1839 = vld [vmem:[%s2 + $0x3c] sm:$0xf]
  %v1840 = vld [vmem:[%s2 + $0x4c] sm:$0xf]
  %v1841 = vld [vmem:[%s2 + $0x5c] sm:$0xf]
  %v1842 = vld [vmem:[%s2 + $0x6c] sm:$0xf]
  %v1843 = vld [vmem:[%s2 + $0x7c] sm:$0xf]
  %v1844 = vld [vmem:[%s2 + $0x8c] sm:$0xf]
  %v1845 = vld [vmem:[%s2 + $0x9c] sm:$0xf]
  %v1846 = vld [vmem:[%s2 + $0xac] sm:$0xf]
  %v1847 = vld [vmem:[%s2 + $0xbc] sm:$0xf]
  %v1848 = vld [vmem:[%s2 + $0xcc] sm:$0xf]
  %v1849 = vld [vmem:[%s2 + $0xdc] sm:$0xf]
  %v1850 = vld [vmem:[%s2 + $0xec] sm:$0xf]
  %v1851 = vld [vmem:[%s2 + $0xfc] sm:$0xf]
  %v1868 = vunpack.c.l.b16 %v1836
  %v1869 = vunpack.c.l.b16 %v1837
  %v1870 = vunpack.c.l.b16 %v1838
  %v1871 = vunpack.c.l.b16 %v1839
  %v1872 = vunpack.c.l.b16 %v1840
  %v1873 = vunpack.c.l.b16 %v1841
  %v1874 = vunpack.c.l.b16 %v1842
  %v1875 = vunpack.c.l.b16 %v1843
  %v1876 = vunpack.c.l.b16 %v1844
  %v1877 = vunpack.c.l.b16 %v1845
  %v1878 = vunpack.c.l.b16 %v1846
  %v1879 = vunpack.c.l.b16 %v1847
  %v1880 = vunpack.c.l.b16 %v1848
  %v1881 = vunpack.c.l.b16 %v1849
  %v1882 = vunpack.c.l.b16 %v1850
  %v1883 = vunpack.c.l.b16 %v1851
  %v1884 = vpack.c.b16 %v1869, %v1868
  %v1885 = vpack.c.b16 %v1871, %v1870
  %v1886 = vpack.c.b16 %v1873, %v1872
  %v1887 = vpack.c.b16 %v1875, %v1874
  %v1888 = vpack.c.b16 %v1877, %v1876
  %v1889 = vpack.c.b16 %v1879, %v1878
  %v1890 = vpack.c.b16 %v1881, %v1880
  %v1891 = vpack.c.b16 %v1883, %v1882
  %1900 = vmatpush.bf16.msra.mxu0 %v1891
  %1901 = vmatpush.bf16.msra.mxu0 %v1890
  %1902 = vmatpush.bf16.msra.mxu0 %v1889
  %1903 = vmatpush.bf16.msra.mxu0 %v1888
  %1904 = vmatpush.bf16.msra.mxu0 %v1887
  %1905 = vmatpush.bf16.msra.mxu0 %v1886
  %1906 = vmatpush.bf16.msra.mxu0 %v1885
  %1907 = vmatpush.bf16.msra.mxu0 %v1884
  %1908 = vmatmul.bf16.gmra.mxu0 %v1574
  %v1909 = vpop.f32.mrf.mxu0
  %v1910 = vadd.f32 0.0, %v1909
  %v1911 = vpop.f32.mrf.mxu0
  %v1912 = vadd.f32 0.0, %v1911
  %1913 = vdwg.mxu0
  %v1914 = vadd.f32 %v1834, %v1910
  %v1915 = vadd.f32 %v1835, %v1912
  %v1916 = vmul.f32 %v1914, 0.5
  %v1917 = vmul.f32 %v1915, 0.5
  %v1918 = vtanh.pop %v1916
  %v1919 = vtanh.pop %v1917
  %v1920 = vmul.f32 %v1918, 0.5
  %v1921 = vmul.f32 %v1919, 0.5
  %v1922 = vadd.f32 %v1920, 0.5
  %v1923 = vadd.f32 %v1921, 0.5
  %v1924 = vtanh.pop %v1830
  %v1925 = vtanh.pop %v1831
  %v1926 = vmul.f32 %v1922, %v1924
  %v1927 = vmul.f32 %v1923, %v1925
  %v1928 = vpack.c.bf16 %v1926, %v1926
  %v1929 = vpack.c.bf16 %v1927, %v1927
  %s1930 = scalar_lea.vmem [#allocation3], 24
  %1931 = vst [vmem:[%s1930] sm:$0xf] %v1928
  %1932 = vst [vmem:[%s1930 + $0x4] sm:$0xf] %v1929
  %s1933 = smul.u32 8, 4
  %s1934 = smul.addr %s1933, 4
  %s1935 = scalar_lea.vmem [#allocation2], %s1934
  %v1936 = vld [vmem:[%s1935 + $0x4] sm:$0xf]
  %v1937 = vld [vmem:[%s1935 + $0x14] sm:$0xf]
  %v1938 = vunpack.c.l.bf16 %v1936
  %v1939 = vunpack.c.l.bf16 %v1937
  %v1940 = vld [vmem:[%s2 + $0x4] sm:$0xf]
  %v1941 = vld [vmem:[%s2 + $0x14] sm:$0xf]
  %v1942 = vld [vmem:[%s2 + $0x24] sm:$0xf]
  %v1943 = vld [vmem:[%s2 + $0x34] sm:$0xf]
  %v1944 = vld [vmem:[%s2 + $0x44] sm:$0xf]
  %v1945 = vld [vmem:[%s2 + $0x54] sm:$0xf]
  %v1946 = vld [vmem:[%s2 + $0x64] sm:$0xf]
  %v1947 = vld [vmem:[%s2 + $0x74] sm:$0xf]
  %v1948 = vld [vmem:[%s2 + $0x84] sm:$0xf]
  %v1949 = vld [vmem:[%s2 + $0x94] sm:$0xf]
  %v1950 = vld [vmem:[%s2 + $0xa4] sm:$0xf]
  %v1951 = vld [vmem:[%s2 + $0xb4] sm:$0xf]
  %v1952 = vld [vmem:[%s2 + $0xc4] sm:$0xf]
  %v1953 = vld [vmem:[%s2 + $0xd4] sm:$0xf]
  %v1954 = vld [vmem:[%s2 + $0xe4] sm:$0xf]
  %v1955 = vld [vmem:[%s2 + $0xf4] sm:$0xf]
  %v1958 = vunpack.c.l.b16 %v1928
  %v1959 = vunpack.c.l.b16 %v1929
  %v1960 = vpack.c.b16 %v1959, %v1958
  %v1978 = vunpack.c.l.b16 %v1940
  %v1979 = vunpack.c.l.b16 %v1941
  %v1980 = vunpack.c.l.b16 %v1942
  %v1981 = vunpack.c.l.b16 %v1943
  %v1982 = vunpack.c.l.b16 %v1944
  %v1983 = vunpack.c.l.b16 %v1945
  %v1984 = vunpack.c.l.b16 %v1946
  %v1985 = vunpack.c.l.b16 %v1947
  %v1986 = vunpack.c.l.b16 %v1948
  %v1987 = vunpack.c.l.b16 %v1949
  %v1988 = vunpack.c.l.b16 %v1950
  %v1989 = vunpack.c.l.b16 %v1951
  %v1990 = vunpack.c.l.b16 %v1952
  %v1991 = vunpack.c.l.b16 %v1953
  %v1992 = vunpack.c.l.b16 %v1954
  %v1993 = vunpack.c.l.b16 %v1955
  %v1994 = vpack.c.b16 %v1979, %v1978
  %v1995 = vpack.c.b16 %v1981, %v1980
  %v1996 = vpack.c.b16 %v1983, %v1982
  %v1997 = vpack.c.b16 %v1985, %v1984
  %v1998 = vpack.c.b16 %v1987, %v1986
  %v1999 = vpack.c.b16 %v1989, %v1988
  %v2000 = vpack.c.b16 %v1991, %v1990
  %v2001 = vpack.c.b16 %v1993, %v1992
  %2010 = vmatpush.bf16.msra.mxu0 %v2001
  %2011 = vmatpush.bf16.msra.mxu0 %v2000
  %2012 = vmatpush.bf16.msra.mxu0 %v1999
  %2013 = vmatpush.bf16.msra.mxu0 %v1998
  %2014 = vmatpush.bf16.msra.mxu0 %v1997
  %2015 = vmatpush.bf16.msra.mxu0 %v1996
  %2016 = vmatpush.bf16.msra.mxu0 %v1995
  %2017 = vmatpush.bf16.msra.mxu0 %v1994
  %2018 = vmatmul.bf16.gmra.mxu0 %v1960
  %v2019 = vpop.f32.mrf.mxu0
  %v2020 = vadd.f32 0.0, %v2019
  %v2021 = vpop.f32.mrf.mxu0
  %v2022 = vadd.f32 0.0, %v2021
  %2023 = vdwg.mxu0
  %v2024 = vadd.f32 %v1938, %v2020
  %v2025 = vadd.f32 %v1939, %v2022
  %v2026 = vmul.f32 %v2024, 0.5
  %v2027 = vmul.f32 %v2025, 0.5
  %v2028 = vtanh.pop %v2026
  %v2029 = vtanh.pop %v2027
  %v2030 = vmul.f32 %v2028, 0.5
  %v2031 = vmul.f32 %v2029, 0.5
  %v2032 = vadd.f32 %v2030, 0.5
  %v2033 = vadd.f32 %v2031, 0.5
  %v2034 = vmul.f32 %v2032, %v1830
  %v2035 = vmul.f32 %v2033, %v1831
  %v2036 = vld [vmem:[%s1935] sm:$0xf]
  %v2037 = vld [vmem:[%s1935 + $0x10] sm:$0xf]
  %v2038 = vunpack.c.l.bf16 %v2036
  %v2039 = vunpack.c.l.bf16 %v2037
  %v2040 = vld [vmem:[%s2] sm:$0xf]
  %v2041 = vld [vmem:[%s2 + $0x10] sm:$0xf]
  %v2042 = vld [vmem:[%s2 + $0x20] sm:$0xf]
  %v2043 = vld [vmem:[%s2 + $0x30] sm:$0xf]
  %v2044 = vld [vmem:[%s2 + $0x40] sm:$0xf]
  %v2045 = vld [vmem:[%s2 + $0x50] sm:$0xf]
  %v2046 = vld [vmem:[%s2 + $0x60] sm:$0xf]
  %v2047 = vld [vmem:[%s2 + $0x70] sm:$0xf]
  %v2048 = vld [vmem:[%s2 + $0x80] sm:$0xf]
  %v2049 = vld [vmem:[%s2 + $0x90] sm:$0xf]
  %v2050 = vld [vmem:[%s2 + $0xa0] sm:$0xf]
  %v2051 = vld [vmem:[%s2 + $0xb0] sm:$0xf]
  %v2052 = vld [vmem:[%s2 + $0xc0] sm:$0xf]
  %v2053 = vld [vmem:[%s2 + $0xd0] sm:$0xf]
  %v2054 = vld [vmem:[%s2 + $0xe0] sm:$0xf]
  %v2055 = vld [vmem:[%s2 + $0xf0] sm:$0xf]
  %v2072 = vunpack.c.l.b16 %v2040
  %v2073 = vunpack.c.l.b16 %v2041
  %v2074 = vunpack.c.l.b16 %v2042
  %v2075 = vunpack.c.l.b16 %v2043
  %v2076 = vunpack.c.l.b16 %v2044
  %v2077 = vunpack.c.l.b16 %v2045
  %v2078 = vunpack.c.l.b16 %v2046
  %v2079 = vunpack.c.l.b16 %v2047
  %v2080 = vunpack.c.l.b16 %v2048
  %v2081 = vunpack.c.l.b16 %v2049
  %v2082 = vunpack.c.l.b16 %v2050
  %v2083 = vunpack.c.l.b16 %v2051
  %v2084 = vunpack.c.l.b16 %v2052
  %v2085 = vunpack.c.l.b16 %v2053
  %v2086 = vunpack.c.l.b16 %v2054
  %v2087 = vunpack.c.l.b16 %v2055
  %v2088 = vpack.c.b16 %v2073, %v2072
  %v2089 = vpack.c.b16 %v2075, %v2074
  %v2090 = vpack.c.b16 %v2077, %v2076
  %v2091 = vpack.c.b16 %v2079, %v2078
  %v2092 = vpack.c.b16 %v2081, %v2080
  %v2093 = vpack.c.b16 %v2083, %v2082
  %v2094 = vpack.c.b16 %v2085, %v2084
  %v2095 = vpack.c.b16 %v2087, %v2086
  %2104 = vmatpush.bf16.msra.mxu0 %v2095
  %2105 = vmatpush.bf16.msra.mxu0 %v2094
  %2106 = vmatpush.bf16.msra.mxu0 %v2093
  %2107 = vmatpush.bf16.msra.mxu0 %v2092
  %2108 = vmatpush.bf16.msra.mxu0 %v2091
  %2109 = vmatpush.bf16.msra.mxu0 %v2090
  %2110 = vmatpush.bf16.msra.mxu0 %v2089
  %2111 = vmatpush.bf16.msra.mxu0 %v2088
  %2112 = vmatmul.bf16.gmra.mxu0 %v1960
  %v2113 = vpop.f32.mrf.mxu0
  %v2114 = vadd.f32 0.0, %v2113
  %v2115 = vpop.f32.mrf.mxu0
  %v2116 = vadd.f32 0.0, %v2115
  %2117 = vdwg.mxu0
  %v2118 = vadd.f32 %v2038, %v2114
  %v2119 = vadd.f32 %v2039, %v2116
  %v2120 = vmul.f32 %v2118, 0.5
  %v2121 = vmul.f32 %v2119, 0.5
  %v2122 = vtanh.pop %v2120
  %v2123 = vtanh.pop %v2121
  %v2124 = vmul.f32 %v2122, 0.5
  %v2125 = vmul.f32 %v2123, 0.5
  %v2126 = vadd.f32 %v2124, 0.5
  %v2127 = vadd.f32 %v2125, 0.5
  %v2128 = vld [vmem:[%s1935 + $0x8] sm:$0xf]
  %v2129 = vld [vmem:[%s1935 + $0x18] sm:$0xf]
  %v2130 = vunpack.c.l.bf16 %v2128
  %v2131 = vunpack.c.l.bf16 %v2129
  %v2132 = vld [vmem:[%s2 + $0x8] sm:$0xf]
  %v2133 = vld [vmem:[%s2 + $0x18] sm:$0xf]
  %v2134 = vld [vmem:[%s2 + $0x28] sm:$0xf]
  %v2135 = vld [vmem:[%s2 + $0x38] sm:$0xf]
  %v2136 = vld [vmem:[%s2 + $0x48] sm:$0xf]
  %v2137 = vld [vmem:[%s2 + $0x58] sm:$0xf]
  %v2138 = vld [vmem:[%s2 + $0x68] sm:$0xf]
  %v2139 = vld [vmem:[%s2 + $0x78] sm:$0xf]
  %v2140 = vld [vmem:[%s2 + $0x88] sm:$0xf]
  %v2141 = vld [vmem:[%s2 + $0x98] sm:$0xf]
  %v2142 = vld [vmem:[%s2 + $0xa8] sm:$0xf]
  %v2143 = vld [vmem:[%s2 + $0xb8] sm:$0xf]
  %v2144 = vld [vmem:[%s2 + $0xc8] sm:$0xf]
  %v2145 = vld [vmem:[%s2 + $0xd8] sm:$0xf]
  %v2146 = vld [vmem:[%s2 + $0xe8] sm:$0xf]
  %v2147 = vld [vmem:[%s2 + $0xf8] sm:$0xf]
  %v2164 = vunpack.c.l.b16 %v2132
  %v2165 = vunpack.c.l.b16 %v2133
  %v2166 = vunpack.c.l.b16 %v2134
  %v2167 = vunpack.c.l.b16 %v2135
  %v2168 = vunpack.c.l.b16 %v2136
  %v2169 = vunpack.c.l.b16 %v2137
  %v2170 = vunpack.c.l.b16 %v2138
  %v2171 = vunpack.c.l.b16 %v2139
  %v2172 = vunpack.c.l.b16 %v2140
  %v2173 = vunpack.c.l.b16 %v2141
  %v2174 = vunpack.c.l.b16 %v2142
  %v2175 = vunpack.c.l.b16 %v2143
  %v2176 = vunpack.c.l.b16 %v2144
  %v2177 = vunpack.c.l.b16 %v2145
  %v2178 = vunpack.c.l.b16 %v2146
  %v2179 = vunpack.c.l.b16 %v2147
  %v2180 = vpack.c.b16 %v2165, %v2164
  %v2181 = vpack.c.b16 %v2167, %v2166
  %v2182 = vpack.c.b16 %v2169, %v2168
  %v2183 = vpack.c.b16 %v2171, %v2170
  %v2184 = vpack.c.b16 %v2173, %v2172
  %v2185 = vpack.c.b16 %v2175, %v2174
  %v2186 = vpack.c.b16 %v2177, %v2176
  %v2187 = vpack.c.b16 %v2179, %v2178
  %2196 = vmatpush.bf16.msra.mxu0 %v2187
  %2197 = vmatpush.bf16.msra.mxu0 %v2186
  %2198 = vmatpush.bf16.msra.mxu0 %v2185
  %2199 = vmatpush.bf16.msra.mxu0 %v2184
  %2200 = vmatpush.bf16.msra.mxu0 %v2183
  %2201 = vmatpush.bf16.msra.mxu0 %v2182
  %2202 = vmatpush.bf16.msra.mxu0 %v2181
  %2203 = vmatpush.bf16.msra.mxu0 %v2180
  %2204 = vmatmul.bf16.gmra.mxu0 %v1960
  %v2205 = vpop.f32.mrf.mxu0
  %v2206 = vadd.f32 0.0, %v2205
  %v2207 = vpop.f32.mrf.mxu0
  %v2208 = vadd.f32 0.0, %v2207
  %2209 = vdwg.mxu0
  %v2210 = vadd.f32 %v2130, %v2206
  %v2211 = vadd.f32 %v2131, %v2208
  %v2212 = vtanh.pop %v2210
  %v2213 = vtanh.pop %v2211
  %v2214 = vmul.f32 %v2126, %v2212
  %v2215 = vmul.f32 %v2127, %v2213
  %v2216 = vadd.f32 %v2034, %v2214
  %v2217 = vadd.f32 %v2035, %v2215
  %v2218 = vld [vmem:[%s1935 + $0xc] sm:$0xf]
  %v2219 = vld [vmem:[%s1935 + $0x1c] sm:$0xf]
  %v2220 = vunpack.c.l.bf16 %v2218
  %v2221 = vunpack.c.l.bf16 %v2219
  %v2222 = vld [vmem:[%s2 + $0xc] sm:$0xf]
  %v2223 = vld [vmem:[%s2 + $0x1c] sm:$0xf]
  %v2224 = vld [vmem:[%s2 + $0x2c] sm:$0xf]
  %v2225 = vld [vmem:[%s2 + $0x3c] sm:$0xf]
  %v2226 = vld [vmem:[%s2 + $0x4c] sm:$0xf]
  %v2227 = vld [vmem:[%s2 + $0x5c] sm:$0xf]
  %v2228 = vld [vmem:[%s2 + $0x6c] sm:$0xf]
  %v2229 = vld [vmem:[%s2 + $0x7c] sm:$0xf]
  %v2230 = vld [vmem:[%s2 + $0x8c] sm:$0xf]
  %v2231 = vld [vmem:[%s2 + $0x9c] sm:$0xf]
  %v2232 = vld [vmem:[%s2 + $0xac] sm:$0xf]
  %v2233 = vld [vmem:[%s2 + $0xbc] sm:$0xf]
  %v2234 = vld [vmem:[%s2 + $0xcc] sm:$0xf]
  %v2235 = vld [vmem:[%s2 + $0xdc] sm:$0xf]
  %v2236 = vld [vmem:[%s2 + $0xec] sm:$0xf]
  %v2237 = vld [vmem:[%s2 + $0xfc] sm:$0xf]
  %v2254 = vunpack.c.l.b16 %v2222
  %v2255 = vunpack.c.l.b16 %v2223
  %v2256 = vunpack.c.l.b16 %v2224
  %v2257 = vunpack.c.l.b16 %v2225
  %v2258 = vunpack.c.l.b16 %v2226
  %v2259 = vunpack.c.l.b16 %v2227
  %v2260 = vunpack.c.l.b16 %v2228
  %v2261 = vunpack.c.l.b16 %v2229
  %v2262 = vunpack.c.l.b16 %v2230
  %v2263 = vunpack.c.l.b16 %v2231
  %v2264 = vunpack.c.l.b16 %v2232
  %v2265 = vunpack.c.l.b16 %v2233
  %v2266 = vunpack.c.l.b16 %v2234
  %v2267 = vunpack.c.l.b16 %v2235
  %v2268 = vunpack.c.l.b16 %v2236
  %v2269 = vunpack.c.l.b16 %v2237
  %v2270 = vpack.c.b16 %v2255, %v2254
  %v2271 = vpack.c.b16 %v2257, %v2256
  %v2272 = vpack.c.b16 %v2259, %v2258
  %v2273 = vpack.c.b16 %v2261, %v2260
  %v2274 = vpack.c.b16 %v2263, %v2262
  %v2275 = vpack.c.b16 %v2265, %v2264
  %v2276 = vpack.c.b16 %v2267, %v2266
  %v2277 = vpack.c.b16 %v2269, %v2268
  %2286 = vmatpush.bf16.msra.mxu0 %v2277
  %2287 = vmatpush.bf16.msra.mxu0 %v2276
  %2288 = vmatpush.bf16.msra.mxu0 %v2275
  %2289 = vmatpush.bf16.msra.mxu0 %v2274
  %2290 = vmatpush.bf16.msra.mxu0 %v2273
  %2291 = vmatpush.bf16.msra.mxu0 %v2272
  %2292 = vmatpush.bf16.msra.mxu0 %v2271
  %2293 = vmatpush.bf16.msra.mxu0 %v2270
  %2294 = vmatmul.bf16.gmra.mxu0 %v1960
  %v2295 = vpop.f32.mrf.mxu0
  %v2296 = vadd.f32 0.0, %v2295
  %v2297 = vpop.f32.mrf.mxu0
  %v2298 = vadd.f32 0.0, %v2297
  %2299 = vdwg.mxu0
  %v2300 = vadd.f32 %v2220, %v2296
  %v2301 = vadd.f32 %v2221, %v2298
  %v2302 = vmul.f32 %v2300, 0.5
  %v2303 = vmul.f32 %v2301, 0.5
  %v2304 = vtanh.pop %v2302
  %v2305 = vtanh.pop %v2303
  %v2306 = vmul.f32 %v2304, 0.5
  %v2307 = vmul.f32 %v2305, 0.5
  %v2308 = vadd.f32 %v2306, 0.5
  %v2309 = vadd.f32 %v2307, 0.5
  %v2310 = vtanh.pop %v2216
  %v2311 = vtanh.pop %v2217
  %v2312 = vmul.f32 %v2308, %v2310
  %v2313 = vmul.f32 %v2309, %v2311
  %v2314 = vpack.c.bf16 %v2312, %v2312
  %v2315 = vpack.c.bf16 %v2313, %v2313
  %s2316 = scalar_lea.vmem [#allocation3], 32
  %2317 = vst [vmem:[%s2316] sm:$0xf] %v2314
  %2318 = vst [vmem:[%s2316 + $0x4] sm:$0xf] %v2315
  %s2319 = smul.u32 10, 4
  %s2320 = smul.addr %s2319, 4
  %s2321 = scalar_lea.vmem [#allocation2], %s2320
  %v2322 = vld [vmem:[%s2321 + $0x4] sm:$0xf]
  %v2323 = vld [vmem:[%s2321 + $0x14] sm:$0xf]
  %v2324 = vunpack.c.l.bf16 %v2322
  %v2325 = vunpack.c.l.bf16 %v2323
  %v2326 = vld [vmem:[%s2 + $0x4] sm:$0xf]
  %v2327 = vld [vmem:[%s2 + $0x14] sm:$0xf]
  %v2328 = vld [vmem:[%s2 + $0x24] sm:$0xf]
  %v2329 = vld [vmem:[%s2 + $0x34] sm:$0xf]
  %v2330 = vld [vmem:[%s2 + $0x44] sm:$0xf]
  %v2331 = vld [vmem:[%s2 + $0x54] sm:$0xf]
  %v2332 = vld [vmem:[%s2 + $0x64] sm:$0xf]
  %v2333 = vld [vmem:[%s2 + $0x74] sm:$0xf]
  %v2334 = vld [vmem:[%s2 + $0x84] sm:$0xf]
  %v2335 = vld [vmem:[%s2 + $0x94] sm:$0xf]
  %v2336 = vld [vmem:[%s2 + $0xa4] sm:$0xf]
  %v2337 = vld [vmem:[%s2 + $0xb4] sm:$0xf]
  %v2338 = vld [vmem:[%s2 + $0xc4] sm:$0xf]
  %v2339 = vld [vmem:[%s2 + $0xd4] sm:$0xf]
  %v2340 = vld [vmem:[%s2 + $0xe4] sm:$0xf]
  %v2341 = vld [vmem:[%s2 + $0xf4] sm:$0xf]
  %v2344 = vunpack.c.l.b16 %v2314
  %v2345 = vunpack.c.l.b16 %v2315
  %v2346 = vpack.c.b16 %v2345, %v2344
  %v2364 = vunpack.c.l.b16 %v2326
  %v2365 = vunpack.c.l.b16 %v2327
  %v2366 = vunpack.c.l.b16 %v2328
  %v2367 = vunpack.c.l.b16 %v2329
  %v2368 = vunpack.c.l.b16 %v2330
  %v2369 = vunpack.c.l.b16 %v2331
  %v2370 = vunpack.c.l.b16 %v2332
  %v2371 = vunpack.c.l.b16 %v2333
  %v2372 = vunpack.c.l.b16 %v2334
  %v2373 = vunpack.c.l.b16 %v2335
  %v2374 = vunpack.c.l.b16 %v2336
  %v2375 = vunpack.c.l.b16 %v2337
  %v2376 = vunpack.c.l.b16 %v2338
  %v2377 = vunpack.c.l.b16 %v2339
  %v2378 = vunpack.c.l.b16 %v2340
  %v2379 = vunpack.c.l.b16 %v2341
  %v2380 = vpack.c.b16 %v2365, %v2364
  %v2381 = vpack.c.b16 %v2367, %v2366
  %v2382 = vpack.c.b16 %v2369, %v2368
  %v2383 = vpack.c.b16 %v2371, %v2370
  %v2384 = vpack.c.b16 %v2373, %v2372
  %v2385 = vpack.c.b16 %v2375, %v2374
  %v2386 = vpack.c.b16 %v2377, %v2376
  %v2387 = vpack.c.b16 %v2379, %v2378
  %2396 = vmatpush.bf16.msra.mxu0 %v2387
  %2397 = vmatpush.bf16.msra.mxu0 %v2386
  %2398 = vmatpush.bf16.msra.mxu0 %v2385
  %2399 = vmatpush.bf16.msra.mxu0 %v2384
  %2400 = vmatpush.bf16.msra.mxu0 %v2383
  %2401 = vmatpush.bf16.msra.mxu0 %v2382
  %2402 = vmatpush.bf16.msra.mxu0 %v2381
  %2403 = vmatpush.bf16.msra.mxu0 %v2380
  %2404 = vmatmul.bf16.gmra.mxu0 %v2346
  %v2405 = vpop.f32.mrf.mxu0
  %v2406 = vadd.f32 0.0, %v2405
  %v2407 = vpop.f32.mrf.mxu0
  %v2408 = vadd.f32 0.0, %v2407
  %2409 = vdwg.mxu0
  %v2410 = vadd.f32 %v2324, %v2406
  %v2411 = vadd.f32 %v2325, %v2408
  %v2412 = vmul.f32 %v2410, 0.5
  %v2413 = vmul.f32 %v2411, 0.5
  %v2414 = vtanh.pop %v2412
  %v2415 = vtanh.pop %v2413
  %v2416 = vmul.f32 %v2414, 0.5
  %v2417 = vmul.f32 %v2415, 0.5
  %v2418 = vadd.f32 %v2416, 0.5
  %v2419 = vadd.f32 %v2417, 0.5
  %v2420 = vmul.f32 %v2418, %v2216
  %v2421 = vmul.f32 %v2419, %v2217
  %v2422 = vld [vmem:[%s2321] sm:$0xf]
  %v2423 = vld [vmem:[%s2321 + $0x10] sm:$0xf]
  %v2424 = vunpack.c.l.bf16 %v2422
  %v2425 = vunpack.c.l.bf16 %v2423
  %v2426 = vld [vmem:[%s2] sm:$0xf]
  %v2427 = vld [vmem:[%s2 + $0x10] sm:$0xf]
  %v2428 = vld [vmem:[%s2 + $0x20] sm:$0xf]
  %v2429 = vld [vmem:[%s2 + $0x30] sm:$0xf]
  %v2430 = vld [vmem:[%s2 + $0x40] sm:$0xf]
  %v2431 = vld [vmem:[%s2 + $0x50] sm:$0xf]
  %v2432 = vld [vmem:[%s2 + $0x60] sm:$0xf]
  %v2433 = vld [vmem:[%s2 + $0x70] sm:$0xf]
  %v2434 = vld [vmem:[%s2 + $0x80] sm:$0xf]
  %v2435 = vld [vmem:[%s2 + $0x90] sm:$0xf]
  %v2436 = vld [vmem:[%s2 + $0xa0] sm:$0xf]
  %v2437 = vld [vmem:[%s2 + $0xb0] sm:$0xf]
  %v2438 = vld [vmem:[%s2 + $0xc0] sm:$0xf]
  %v2439 = vld [vmem:[%s2 + $0xd0] sm:$0xf]
  %v2440 = vld [vmem:[%s2 + $0xe0] sm:$0xf]
  %v2441 = vld [vmem:[%s2 + $0xf0] sm:$0xf]
  %v2458 = vunpack.c.l.b16 %v2426
  %v2459 = vunpack.c.l.b16 %v2427
  %v2460 = vunpack.c.l.b16 %v2428
  %v2461 = vunpack.c.l.b16 %v2429
  %v2462 = vunpack.c.l.b16 %v2430
  %v2463 = vunpack.c.l.b16 %v2431
  %v2464 = vunpack.c.l.b16 %v2432
  %v2465 = vunpack.c.l.b16 %v2433
  %v2466 = vunpack.c.l.b16 %v2434
  %v2467 = vunpack.c.l.b16 %v2435
  %v2468 = vunpack.c.l.b16 %v2436
  %v2469 = vunpack.c.l.b16 %v2437
  %v2470 = vunpack.c.l.b16 %v2438
  %v2471 = vunpack.c.l.b16 %v2439
  %v2472 = vunpack.c.l.b16 %v2440
  %v2473 = vunpack.c.l.b16 %v2441
  %v2474 = vpack.c.b16 %v2459, %v2458
  %v2475 = vpack.c.b16 %v2461, %v2460
  %v2476 = vpack.c.b16 %v2463, %v2462
  %v2477 = vpack.c.b16 %v2465, %v2464
  %v2478 = vpack.c.b16 %v2467, %v2466
  %v2479 = vpack.c.b16 %v2469, %v2468
  %v2480 = vpack.c.b16 %v2471, %v2470
  %v2481 = vpack.c.b16 %v2473, %v2472
  %2490 = vmatpush.bf16.msra.mxu0 %v2481
  %2491 = vmatpush.bf16.msra.mxu0 %v2480
  %2492 = vmatpush.bf16.msra.mxu0 %v2479
  %2493 = vmatpush.bf16.msra.mxu0 %v2478
  %2494 = vmatpush.bf16.msra.mxu0 %v2477
  %2495 = vmatpush.bf16.msra.mxu0 %v2476
  %2496 = vmatpush.bf16.msra.mxu0 %v2475
  %2497 = vmatpush.bf16.msra.mxu0 %v2474
  %2498 = vmatmul.bf16.gmra.mxu0 %v2346
  %v2499 = vpop.f32.mrf.mxu0
  %v2500 = vadd.f32 0.0, %v2499
  %v2501 = vpop.f32.mrf.mxu0
  %v2502 = vadd.f32 0.0, %v2501
  %2503 = vdwg.mxu0
  %v2504 = vadd.f32 %v2424, %v2500
  %v2505 = vadd.f32 %v2425, %v2502
  %v2506 = vmul.f32 %v2504, 0.5
  %v2507 = vmul.f32 %v2505, 0.5
  %v2508 = vtanh.pop %v2506
  %v2509 = vtanh.pop %v2507
  %v2510 = vmul.f32 %v2508, 0.5
  %v2511 = vmul.f32 %v2509, 0.5
  %v2512 = vadd.f32 %v2510, 0.5
  %v2513 = vadd.f32 %v2511, 0.5
  %v2514 = vld [vmem:[%s2321 + $0x8] sm:$0xf]
  %v2515 = vld [vmem:[%s2321 + $0x18] sm:$0xf]
  %v2516 = vunpack.c.l.bf16 %v2514
  %v2517 = vunpack.c.l.bf16 %v2515
  %v2518 = vld [vmem:[%s2 + $0x8] sm:$0xf]
  %v2519 = vld [vmem:[%s2 + $0x18] sm:$0xf]
  %v2520 = vld [vmem:[%s2 + $0x28] sm:$0xf]
  %v2521 = vld [vmem:[%s2 + $0x38] sm:$0xf]
  %v2522 = vld [vmem:[%s2 + $0x48] sm:$0xf]
  %v2523 = vld [vmem:[%s2 + $0x58] sm:$0xf]
  %v2524 = vld [vmem:[%s2 + $0x68] sm:$0xf]
  %v2525 = vld [vmem:[%s2 + $0x78] sm:$0xf]
  %v2526 = vld [vmem:[%s2 + $0x88] sm:$0xf]
  %v2527 = vld [vmem:[%s2 + $0x98] sm:$0xf]
  %v2528 = vld [vmem:[%s2 + $0xa8] sm:$0xf]
  %v2529 = vld [vmem:[%s2 + $0xb8] sm:$0xf]
  %v2530 = vld [vmem:[%s2 + $0xc8] sm:$0xf]
  %v2531 = vld [vmem:[%s2 + $0xd8] sm:$0xf]
  %v2532 = vld [vmem:[%s2 + $0xe8] sm:$0xf]
  %v2533 = vld [vmem:[%s2 + $0xf8] sm:$0xf]
  %v2550 = vunpack.c.l.b16 %v2518
  %v2551 = vunpack.c.l.b16 %v2519
  %v2552 = vunpack.c.l.b16 %v2520
  %v2553 = vunpack.c.l.b16 %v2521
  %v2554 = vunpack.c.l.b16 %v2522
  %v2555 = vunpack.c.l.b16 %v2523
  %v2556 = vunpack.c.l.b16 %v2524
  %v2557 = vunpack.c.l.b16 %v2525
  %v2558 = vunpack.c.l.b16 %v2526
  %v2559 = vunpack.c.l.b16 %v2527
  %v2560 = vunpack.c.l.b16 %v2528
  %v2561 = vunpack.c.l.b16 %v2529
  %v2562 = vunpack.c.l.b16 %v2530
  %v2563 = vunpack.c.l.b16 %v2531
  %v2564 = vunpack.c.l.b16 %v2532
  %v2565 = vunpack.c.l.b16 %v2533
  %v2566 = vpack.c.b16 %v2551, %v2550
  %v2567 = vpack.c.b16 %v2553, %v2552
  %v2568 = vpack.c.b16 %v2555, %v2554
  %v2569 = vpack.c.b16 %v2557, %v2556
  %v2570 = vpack.c.b16 %v2559, %v2558
  %v2571 = vpack.c.b16 %v2561, %v2560
  %v2572 = vpack.c.b16 %v2563, %v2562
  %v2573 = vpack.c.b16 %v2565, %v2564
  %2582 = vmatpush.bf16.msra.mxu0 %v2573
  %2583 = vmatpush.bf16.msra.mxu0 %v2572
  %2584 = vmatpush.bf16.msra.mxu0 %v2571
  %2585 = vmatpush.bf16.msra.mxu0 %v2570
  %2586 = vmatpush.bf16.msra.mxu0 %v2569
  %2587 = vmatpush.bf16.msra.mxu0 %v2568
  %2588 = vmatpush.bf16.msra.mxu0 %v2567
  %2589 = vmatpush.bf16.msra.mxu0 %v2566
  %2590 = vmatmul.bf16.gmra.mxu0 %v2346
  %v2591 = vpop.f32.mrf.mxu0
  %v2592 = vadd.f32 0.0, %v2591
  %v2593 = vpop.f32.mrf.mxu0
  %v2594 = vadd.f32 0.0, %v2593
  %2595 = vdwg.mxu0
  %v2596 = vadd.f32 %v2516, %v2592
  %v2597 = vadd.f32 %v2517, %v2594
  %v2598 = vtanh.pop %v2596
  %v2599 = vtanh.pop %v2597
  %v2600 = vmul.f32 %v2512, %v2598
  %v2601 = vmul.f32 %v2513, %v2599
  %v2602 = vadd.f32 %v2420, %v2600
  %v2603 = vadd.f32 %v2421, %v2601
  %v2604 = vld [vmem:[%s2321 + $0xc] sm:$0xf]
  %v2605 = vld [vmem:[%s2321 + $0x1c] sm:$0xf]
  %v2606 = vunpack.c.l.bf16 %v2604
  %v2607 = vunpack.c.l.bf16 %v2605
  %v2608 = vld [vmem:[%s2 + $0xc] sm:$0xf]
  %v2609 = vld [vmem:[%s2 + $0x1c] sm:$0xf]
  %v2610 = vld [vmem:[%s2 + $0x2c] sm:$0xf]
  %v2611 = vld [vmem:[%s2 + $0x3c] sm:$0xf]
  %v2612 = vld [vmem:[%s2 + $0x4c] sm:$0xf]
  %v2613 = vld [vmem:[%s2 + $0x5c] sm:$0xf]
  %v2614 = vld [vmem:[%s2 + $0x6c] sm:$0xf]
  %v2615 = vld [vmem:[%s2 + $0x7c] sm:$0xf]
  %v2616 = vld [vmem:[%s2 + $0x8c] sm:$0xf]
  %v2617 = vld [vmem:[%s2 + $0x9c] sm:$0xf]
  %v2618 = vld [vmem:[%s2 + $0xac] sm:$0xf]
  %v2619 = vld [vmem:[%s2 + $0xbc] sm:$0xf]
  %v2620 = vld [vmem:[%s2 + $0xcc] sm:$0xf]
  %v2621 = vld [vmem:[%s2 + $0xdc] sm:$0xf]
  %v2622 = vld [vmem:[%s2 + $0xec] sm:$0xf]
  %v2623 = vld [vmem:[%s2 + $0xfc] sm:$0xf]
  %v2640 = vunpack.c.l.b16 %v2608
  %v2641 = vunpack.c.l.b16 %v2609
  %v2642 = vunpack.c.l.b16 %v2610
  %v2643 = vunpack.c.l.b16 %v2611
  %v2644 = vunpack.c.l.b16 %v2612
  %v2645 = vunpack.c.l.b16 %v2613
  %v2646 = vunpack.c.l.b16 %v2614
  %v2647 = vunpack.c.l.b16 %v2615
  %v2648 = vunpack.c.l.b16 %v2616
  %v2649 = vunpack.c.l.b16 %v2617
  %v2650 = vunpack.c.l.b16 %v2618
  %v2651 = vunpack.c.l.b16 %v2619
  %v2652 = vunpack.c.l.b16 %v2620
  %v2653 = vunpack.c.l.b16 %v2621
  %v2654 = vunpack.c.l.b16 %v2622
  %v2655 = vunpack.c.l.b16 %v2623
  %v2656 = vpack.c.b16 %v2641, %v2640
  %v2657 = vpack.c.b16 %v2643, %v2642
  %v2658 = vpack.c.b16 %v2645, %v2644
  %v2659 = vpack.c.b16 %v2647, %v2646
  %v2660 = vpack.c.b16 %v2649, %v2648
  %v2661 = vpack.c.b16 %v2651, %v2650
  %v2662 = vpack.c.b16 %v2653, %v2652
  %v2663 = vpack.c.b16 %v2655, %v2654
  %2672 = vmatpush.bf16.msra.mxu0 %v2663
  %2673 = vmatpush.bf16.msra.mxu0 %v2662
  %2674 = vmatpush.bf16.msra.mxu0 %v2661
  %2675 = vmatpush.bf16.msra.mxu0 %v2660
  %2676 = vmatpush.bf16.msra.mxu0 %v2659
  %2677 = vmatpush.bf16.msra.mxu0 %v2658
  %2678 = vmatpush.bf16.msra.mxu0 %v2657
  %2679 = vmatpush.bf16.msra.mxu0 %v2656
  %2680 = vmatmul.bf16.gmra.mxu0 %v2346
  %v2681 = vpop.f32.mrf.mxu0
  %v2682 = vadd.f32 0.0, %v2681
  %v2683 = vpop.f32.mrf.mxu0
  %v2684 = vadd.f32 0.0, %v2683
  %2685 = vdwg.mxu0
  %v2686 = vadd.f32 %v2606, %v2682
  %v2687 = vadd.f32 %v2607, %v2684
  %v2688 = vmul.f32 %v2686, 0.5
  %v2689 = vmul.f32 %v2687, 0.5
  %v2690 = vtanh.pop %v2688
  %v2691 = vtanh.pop %v2689
  %v2692 = vmul.f32 %v2690, 0.5
  %v2693 = vmul.f32 %v2691, 0.5
  %v2694 = vadd.f32 %v2692, 0.5
  %v2695 = vadd.f32 %v2693, 0.5
  %v2696 = vtanh.pop %v2602
  %v2697 = vtanh.pop %v2603
  %v2698 = vmul.f32 %v2694, %v2696
  %v2699 = vmul.f32 %v2695, %v2697
  %v2700 = vpack.c.bf16 %v2698, %v2698
  %v2701 = vpack.c.bf16 %v2699, %v2699
  %s2702 = scalar_lea.vmem [#allocation3], 40
  %2703 = vst [vmem:[%s2702] sm:$0xf] %v2700
  %2704 = vst [vmem:[%s2702 + $0x4] sm:$0xf] %v2701
  %s2705 = smul.u32 12, 4
  %s2706 = smul.addr %s2705, 4
  %s2707 = scalar_lea.vmem [#allocation2], %s2706
  %v2708 = vld [vmem:[%s2707 + $0x4] sm:$0xf]
  %v2709 = vld [vmem:[%s2707 + $0x14] sm:$0xf]
  %v2710 = vunpack.c.l.bf16 %v2708
  %v2711 = vunpack.c.l.bf16 %v2709
  %v2712 = vld [vmem:[%s2 + $0x4] sm:$0xf]
  %v2713 = vld [vmem:[%s2 + $0x14] sm:$0xf]
  %v2714 = vld [vmem:[%s2 + $0x24] sm:$0xf]
  %v2715 = vld [vmem:[%s2 + $0x34] sm:$0xf]
  %v2716 = vld [vmem:[%s2 + $0x44] sm:$0xf]
  %v2717 = vld [vmem:[%s2 + $0x54] sm:$0xf]
  %v2718 = vld [vmem:[%s2 + $0x64] sm:$0xf]
  %v2719 = vld [vmem:[%s2 + $0x74] sm:$0xf]
  %v2720 = vld [vmem:[%s2 + $0x84] sm:$0xf]
  %v2721 = vld [vmem:[%s2 + $0x94] sm:$0xf]
  %v2722 = vld [vmem:[%s2 + $0xa4] sm:$0xf]
  %v2723 = vld [vmem:[%s2 + $0xb4] sm:$0xf]
  %v2724 = vld [vmem:[%s2 + $0xc4] sm:$0xf]
  %v2725 = vld [vmem:[%s2 + $0xd4] sm:$0xf]
  %v2726 = vld [vmem:[%s2 + $0xe4] sm:$0xf]
  %v2727 = vld [vmem:[%s2 + $0xf4] sm:$0xf]
  %v2730 = vunpack.c.l.b16 %v2700
  %v2731 = vunpack.c.l.b16 %v2701
  %v2732 = vpack.c.b16 %v2731, %v2730
  %v2750 = vunpack.c.l.b16 %v2712
  %v2751 = vunpack.c.l.b16 %v2713
  %v2752 = vunpack.c.l.b16 %v2714
  %v2753 = vunpack.c.l.b16 %v2715
  %v2754 = vunpack.c.l.b16 %v2716
  %v2755 = vunpack.c.l.b16 %v2717
  %v2756 = vunpack.c.l.b16 %v2718
  %v2757 = vunpack.c.l.b16 %v2719
  %v2758 = vunpack.c.l.b16 %v2720
  %v2759 = vunpack.c.l.b16 %v2721
  %v2760 = vunpack.c.l.b16 %v2722
  %v2761 = vunpack.c.l.b16 %v2723
  %v2762 = vunpack.c.l.b16 %v2724
  %v2763 = vunpack.c.l.b16 %v2725
  %v2764 = vunpack.c.l.b16 %v2726
  %v2765 = vunpack.c.l.b16 %v2727
  %v2766 = vpack.c.b16 %v2751, %v2750
  %v2767 = vpack.c.b16 %v2753, %v2752
  %v2768 = vpack.c.b16 %v2755, %v2754
  %v2769 = vpack.c.b16 %v2757, %v2756
  %v2770 = vpack.c.b16 %v2759, %v2758
  %v2771 = vpack.c.b16 %v2761, %v2760
  %v2772 = vpack.c.b16 %v2763, %v2762
  %v2773 = vpack.c.b16 %v2765, %v2764
  %2782 = vmatpush.bf16.msra.mxu0 %v2773
  %2783 = vmatpush.bf16.msra.mxu0 %v2772
  %2784 = vmatpush.bf16.msra.mxu0 %v2771
  %2785 = vmatpush.bf16.msra.mxu0 %v2770
  %2786 = vmatpush.bf16.msra.mxu0 %v2769
  %2787 = vmatpush.bf16.msra.mxu0 %v2768
  %2788 = vmatpush.bf16.msra.mxu0 %v2767
  %2789 = vmatpush.bf16.msra.mxu0 %v2766
  %2790 = vmatmul.bf16.gmra.mxu0 %v2732
  %v2791 = vpop.f32.mrf.mxu0
  %v2792 = vadd.f32 0.0, %v2791
  %v2793 = vpop.f32.mrf.mxu0
  %v2794 = vadd.f32 0.0, %v2793
  %2795 = vdwg.mxu0
  %v2796 = vadd.f32 %v2710, %v2792
  %v2797 = vadd.f32 %v2711, %v2794
  %v2798 = vmul.f32 %v2796, 0.5
  %v2799 = vmul.f32 %v2797, 0.5
  %v2800 = vtanh.pop %v2798
  %v2801 = vtanh.pop %v2799
  %v2802 = vmul.f32 %v2800, 0.5
  %v2803 = vmul.f32 %v2801, 0.5
  %v2804 = vadd.f32 %v2802, 0.5
  %v2805 = vadd.f32 %v2803, 0.5
  %v2806 = vmul.f32 %v2804, %v2602
  %v2807 = vmul.f32 %v2805, %v2603
  %v2808 = vld [vmem:[%s2707] sm:$0xf]
  %v2809 = vld [vmem:[%s2707 + $0x10] sm:$0xf]
  %v2810 = vunpack.c.l.bf16 %v2808
  %v2811 = vunpack.c.l.bf16 %v2809
  %v2812 = vld [vmem:[%s2] sm:$0xf]
  %v2813 = vld [vmem:[%s2 + $0x10] sm:$0xf]
  %v2814 = vld [vmem:[%s2 + $0x20] sm:$0xf]
  %v2815 = vld [vmem:[%s2 + $0x30] sm:$0xf]
  %v2816 = vld [vmem:[%s2 + $0x40] sm:$0xf]
  %v2817 = vld [vmem:[%s2 + $0x50] sm:$0xf]
  %v2818 = vld [vmem:[%s2 + $0x60] sm:$0xf]
  %v2819 = vld [vmem:[%s2 + $0x70] sm:$0xf]
  %v2820 = vld [vmem:[%s2 + $0x80] sm:$0xf]
  %v2821 = vld [vmem:[%s2 + $0x90] sm:$0xf]
  %v2822 = vld [vmem:[%s2 + $0xa0] sm:$0xf]
  %v2823 = vld [vmem:[%s2 + $0xb0] sm:$0xf]
  %v2824 = vld [vmem:[%s2 + $0xc0] sm:$0xf]
  %v2825 = vld [vmem:[%s2 + $0xd0] sm:$0xf]
  %v2826 = vld [vmem:[%s2 + $0xe0] sm:$0xf]
  %v2827 = vld [vmem:[%s2 + $0xf0] sm:$0xf]
  %v2844 = vunpack.c.l.b16 %v2812
  %v2845 = vunpack.c.l.b16 %v2813
  %v2846 = vunpack.c.l.b16 %v2814
  %v2847 = vunpack.c.l.b16 %v2815
  %v2848 = vunpack.c.l.b16 %v2816
  %v2849 = vunpack.c.l.b16 %v2817
  %v2850 = vunpack.c.l.b16 %v2818
  %v2851 = vunpack.c.l.b16 %v2819
  %v2852 = vunpack.c.l.b16 %v2820
  %v2853 = vunpack.c.l.b16 %v2821
  %v2854 = vunpack.c.l.b16 %v2822
  %v2855 = vunpack.c.l.b16 %v2823
  %v2856 = vunpack.c.l.b16 %v2824
  %v2857 = vunpack.c.l.b16 %v2825
  %v2858 = vunpack.c.l.b16 %v2826
  %v2859 = vunpack.c.l.b16 %v2827
  %v2860 = vpack.c.b16 %v2845, %v2844
  %v2861 = vpack.c.b16 %v2847, %v2846
  %v2862 = vpack.c.b16 %v2849, %v2848
  %v2863 = vpack.c.b16 %v2851, %v2850
  %v2864 = vpack.c.b16 %v2853, %v2852
  %v2865 = vpack.c.b16 %v2855, %v2854
  %v2866 = vpack.c.b16 %v2857, %v2856
  %v2867 = vpack.c.b16 %v2859, %v2858
  %2876 = vmatpush.bf16.msra.mxu0 %v2867
  %2877 = vmatpush.bf16.msra.mxu0 %v2866
  %2878 = vmatpush.bf16.msra.mxu0 %v2865
  %2879 = vmatpush.bf16.msra.mxu0 %v2864
  %2880 = vmatpush.bf16.msra.mxu0 %v2863
  %2881 = vmatpush.bf16.msra.mxu0 %v2862
  %2882 = vmatpush.bf16.msra.mxu0 %v2861
  %2883 = vmatpush.bf16.msra.mxu0 %v2860
  %2884 = vmatmul.bf16.gmra.mxu0 %v2732
  %v2885 = vpop.f32.mrf.mxu0
  %v2886 = vadd.f32 0.0, %v2885
  %v2887 = vpop.f32.mrf.mxu0
  %v2888 = vadd.f32 0.0, %v2887
  %2889 = vdwg.mxu0
  %v2890 = vadd.f32 %v2810, %v2886
  %v2891 = vadd.f32 %v2811, %v2888
  %v2892 = vmul.f32 %v2890, 0.5
  %v2893 = vmul.f32 %v2891, 0.5
  %v2894 = vtanh.pop %v2892
  %v2895 = vtanh.pop %v2893
  %v2896 = vmul.f32 %v2894, 0.5
  %v2897 = vmul.f32 %v2895, 0.5
  %v2898 = vadd.f32 %v2896, 0.5
  %v2899 = vadd.f32 %v2897, 0.5
  %v2900 = vld [vmem:[%s2707 + $0x8] sm:$0xf]
  %v2901 = vld [vmem:[%s2707 + $0x18] sm:$0xf]
  %v2902 = vunpack.c.l.bf16 %v2900
  %v2903 = vunpack.c.l.bf16 %v2901
  %v2904 = vld [vmem:[%s2 + $0x8] sm:$0xf]
  %v2905 = vld [vmem:[%s2 + $0x18] sm:$0xf]
  %v2906 = vld [vmem:[%s2 + $0x28] sm:$0xf]
  %v2907 = vld [vmem:[%s2 + $0x38] sm:$0xf]
  %v2908 = vld [vmem:[%s2 + $0x48] sm:$0xf]
  %v2909 = vld [vmem:[%s2 + $0x58] sm:$0xf]
  %v2910 = vld [vmem:[%s2 + $0x68] sm:$0xf]
  %v2911 = vld [vmem:[%s2 + $0x78] sm:$0xf]
  %v2912 = vld [vmem:[%s2 + $0x88] sm:$0xf]
  %v2913 = vld [vmem:[%s2 + $0x98] sm:$0xf]
  %v2914 = vld [vmem:[%s2 + $0xa8] sm:$0xf]
  %v2915 = vld [vmem:[%s2 + $0xb8] sm:$0xf]
  %v2916 = vld [vmem:[%s2 + $0xc8] sm:$0xf]
  %v2917 = vld [vmem:[%s2 + $0xd8] sm:$0xf]
  %v2918 = vld [vmem:[%s2 + $0xe8] sm:$0xf]
  %v2919 = vld [vmem:[%s2 + $0xf8] sm:$0xf]
  %v2936 = vunpack.c.l.b16 %v2904
  %v2937 = vunpack.c.l.b16 %v2905
  %v2938 = vunpack.c.l.b16 %v2906
  %v2939 = vunpack.c.l.b16 %v2907
  %v2940 = vunpack.c.l.b16 %v2908
  %v2941 = vunpack.c.l.b16 %v2909
  %v2942 = vunpack.c.l.b16 %v2910
  %v2943 = vunpack.c.l.b16 %v2911
  %v2944 = vunpack.c.l.b16 %v2912
  %v2945 = vunpack.c.l.b16 %v2913
  %v2946 = vunpack.c.l.b16 %v2914
  %v2947 = vunpack.c.l.b16 %v2915
  %v2948 = vunpack.c.l.b16 %v2916
  %v2949 = vunpack.c.l.b16 %v2917
  %v2950 = vunpack.c.l.b16 %v2918
  %v2951 = vunpack.c.l.b16 %v2919
  %v2952 = vpack.c.b16 %v2937, %v2936
  %v2953 = vpack.c.b16 %v2939, %v2938
  %v2954 = vpack.c.b16 %v2941, %v2940
  %v2955 = vpack.c.b16 %v2943, %v2942
  %v2956 = vpack.c.b16 %v2945, %v2944
  %v2957 = vpack.c.b16 %v2947, %v2946
  %v2958 = vpack.c.b16 %v2949, %v2948
  %v2959 = vpack.c.b16 %v2951, %v2950
  %2968 = vmatpush.bf16.msra.mxu0 %v2959
  %2969 = vmatpush.bf16.msra.mxu0 %v2958
  %2970 = vmatpush.bf16.msra.mxu0 %v2957
  %2971 = vmatpush.bf16.msra.mxu0 %v2956
  %2972 = vmatpush.bf16.msra.mxu0 %v2955
  %2973 = vmatpush.bf16.msra.mxu0 %v2954
  %2974 = vmatpush.bf16.msra.mxu0 %v2953
  %2975 = vmatpush.bf16.msra.mxu0 %v2952
  %2976 = vmatmul.bf16.gmra.mxu0 %v2732
  %v2977 = vpop.f32.mrf.mxu0
  %v2978 = vadd.f32 0.0, %v2977
  %v2979 = vpop.f32.mrf.mxu0
  %v2980 = vadd.f32 0.0, %v2979
  %2981 = vdwg.mxu0
  %v2982 = vadd.f32 %v2902, %v2978
  %v2983 = vadd.f32 %v2903, %v2980
  %v2984 = vtanh.pop %v2982
  %v2985 = vtanh.pop %v2983
  %v2986 = vmul.f32 %v2898, %v2984
  %v2987 = vmul.f32 %v2899, %v2985
  %v2988 = vadd.f32 %v2806, %v2986
  %v2989 = vadd.f32 %v2807, %v2987
  %v2990 = vld [vmem:[%s2707 + $0xc] sm:$0xf]
  %v2991 = vld [vmem:[%s2707 + $0x1c] sm:$0xf]
  %v2992 = vunpack.c.l.bf16 %v2990
  %v2993 = vunpack.c.l.bf16 %v2991
  %v2994 = vld [vmem:[%s2 + $0xc] sm:$0xf]
  %v2995 = vld [vmem:[%s2 + $0x1c] sm:$0xf]
  %v2996 = vld [vmem:[%s2 + $0x2c] sm:$0xf]
  %v2997 = vld [vmem:[%s2 + $0x3c] sm:$0xf]
  %v2998 = vld [vmem:[%s2 + $0x4c] sm:$0xf]
  %v2999 = vld [vmem:[%s2 + $0x5c] sm:$0xf]
  %v3000 = vld [vmem:[%s2 + $0x6c] sm:$0xf]
  %v3001 = vld [vmem:[%s2 + $0x7c] sm:$0xf]
  %v3002 = vld [vmem:[%s2 + $0x8c] sm:$0xf]
  %v3003 = vld [vmem:[%s2 + $0x9c] sm:$0xf]
  %v3004 = vld [vmem:[%s2 + $0xac] sm:$0xf]
  %v3005 = vld [vmem:[%s2 + $0xbc] sm:$0xf]
  %v3006 = vld [vmem:[%s2 + $0xcc] sm:$0xf]
  %v3007 = vld [vmem:[%s2 + $0xdc] sm:$0xf]
  %v3008 = vld [vmem:[%s2 + $0xec] sm:$0xf]
  %v3009 = vld [vmem:[%s2 + $0xfc] sm:$0xf]
  %v3026 = vunpack.c.l.b16 %v2994
  %v3027 = vunpack.c.l.b16 %v2995
  %v3028 = vunpack.c.l.b16 %v2996
  %v3029 = vunpack.c.l.b16 %v2997
  %v3030 = vunpack.c.l.b16 %v2998
  %v3031 = vunpack.c.l.b16 %v2999
  %v3032 = vunpack.c.l.b16 %v3000
  %v3033 = vunpack.c.l.b16 %v3001
  %v3034 = vunpack.c.l.b16 %v3002
  %v3035 = vunpack.c.l.b16 %v3003
  %v3036 = vunpack.c.l.b16 %v3004
  %v3037 = vunpack.c.l.b16 %v3005
  %v3038 = vunpack.c.l.b16 %v3006
  %v3039 = vunpack.c.l.b16 %v3007
  %v3040 = vunpack.c.l.b16 %v3008
  %v3041 = vunpack.c.l.b16 %v3009
  %v3042 = vpack.c.b16 %v3027, %v3026
  %v3043 = vpack.c.b16 %v3029, %v3028
  %v3044 = vpack.c.b16 %v3031, %v3030
  %v3045 = vpack.c.b16 %v3033, %v3032
  %v3046 = vpack.c.b16 %v3035, %v3034
  %v3047 = vpack.c.b16 %v3037, %v3036
  %v3048 = vpack.c.b16 %v3039, %v3038
  %v3049 = vpack.c.b16 %v3041, %v3040
  %3058 = vmatpush.bf16.msra.mxu0 %v3049
  %3059 = vmatpush.bf16.msra.mxu0 %v3048
  %3060 = vmatpush.bf16.msra.mxu0 %v3047
  %3061 = vmatpush.bf16.msra.mxu0 %v3046
  %3062 = vmatpush.bf16.msra.mxu0 %v3045
  %3063 = vmatpush.bf16.msra.mxu0 %v3044
  %3064 = vmatpush.bf16.msra.mxu0 %v3043
  %3065 = vmatpush.bf16.msra.mxu0 %v3042
  %3066 = vmatmul.bf16.gmra.mxu0 %v2732
  %v3067 = vpop.f32.mrf.mxu0
  %v3068 = vadd.f32 0.0, %v3067
  %v3069 = vpop.f32.mrf.mxu0
  %v3070 = vadd.f32 0.0, %v3069
  %3071 = vdwg.mxu0
  %v3072 = vadd.f32 %v2992, %v3068
  %v3073 = vadd.f32 %v2993, %v3070
  %v3074 = vmul.f32 %v3072, 0.5
  %v3075 = vmul.f32 %v3073, 0.5
  %v3076 = vtanh.pop %v3074
  %v3077 = vtanh.pop %v3075
  %v3078 = vmul.f32 %v3076, 0.5
  %v3079 = vmul.f32 %v3077, 0.5
  %v3080 = vadd.f32 %v3078, 0.5
  %v3081 = vadd.f32 %v3079, 0.5
  %v3082 = vtanh.pop %v2988
  %v3083 = vtanh.pop %v2989
  %v3084 = vmul.f32 %v3080, %v3082
  %v3085 = vmul.f32 %v3081, %v3083
  %v3086 = vpack.c.bf16 %v3084, %v3084
  %v3087 = vpack.c.bf16 %v3085, %v3085
  %s3088 = scalar_lea.vmem [#allocation3], 48
  %3089 = vst [vmem:[%s3088] sm:$0xf] %v3086
  %3090 = vst [vmem:[%s3088 + $0x4] sm:$0xf] %v3087
  %s3091 = smul.u32 14, 4
  %s3092 = smul.addr %s3091, 4
  %s3093 = scalar_lea.vmem [#allocation2], %s3092
  %v3094 = vld [vmem:[%s3093 + $0x4] sm:$0xf]
  %v3095 = vld [vmem:[%s3093 + $0x14] sm:$0xf]
  %v3096 = vunpack.c.l.bf16 %v3094
  %v3097 = vunpack.c.l.bf16 %v3095
  %v3098 = vld [vmem:[%s2 + $0x4] sm:$0xf]
  %v3099 = vld [vmem:[%s2 + $0x14] sm:$0xf]
  %v3100 = vld [vmem:[%s2 + $0x24] sm:$0xf]
  %v3101 = vld [vmem:[%s2 + $0x34] sm:$0xf]
  %v3102 = vld [vmem:[%s2 + $0x44] sm:$0xf]
  %v3103 = vld [vmem:[%s2 + $0x54] sm:$0xf]
  %v3104 = vld [vmem:[%s2 + $0x64] sm:$0xf]
  %v3105 = vld [vmem:[%s2 + $0x74] sm:$0xf]
  %v3106 = vld [vmem:[%s2 + $0x84] sm:$0xf]
  %v3107 = vld [vmem:[%s2 + $0x94] sm:$0xf]
  %v3108 = vld [vmem:[%s2 + $0xa4] sm:$0xf]
  %v3109 = vld [vmem:[%s2 + $0xb4] sm:$0xf]
  %v3110 = vld [vmem:[%s2 + $0xc4] sm:$0xf]
  %v3111 = vld [vmem:[%s2 + $0xd4] sm:$0xf]
  %v3112 = vld [vmem:[%s2 + $0xe4] sm:$0xf]
  %v3113 = vld [vmem:[%s2 + $0xf4] sm:$0xf]
  %v3116 = vunpack.c.l.b16 %v3086
  %v3117 = vunpack.c.l.b16 %v3087
  %v3118 = vpack.c.b16 %v3117, %v3116
  %v3136 = vunpack.c.l.b16 %v3098
  %v3137 = vunpack.c.l.b16 %v3099
  %v3138 = vunpack.c.l.b16 %v3100
  %v3139 = vunpack.c.l.b16 %v3101
  %v3140 = vunpack.c.l.b16 %v3102
  %v3141 = vunpack.c.l.b16 %v3103
  %v3142 = vunpack.c.l.b16 %v3104
  %v3143 = vunpack.c.l.b16 %v3105
  %v3144 = vunpack.c.l.b16 %v3106
  %v3145 = vunpack.c.l.b16 %v3107
  %v3146 = vunpack.c.l.b16 %v3108
  %v3147 = vunpack.c.l.b16 %v3109
  %v3148 = vunpack.c.l.b16 %v3110
  %v3149 = vunpack.c.l.b16 %v3111
  %v3150 = vunpack.c.l.b16 %v3112
  %v3151 = vunpack.c.l.b16 %v3113
  %v3152 = vpack.c.b16 %v3137, %v3136
  %v3153 = vpack.c.b16 %v3139, %v3138
  %v3154 = vpack.c.b16 %v3141, %v3140
  %v3155 = vpack.c.b16 %v3143, %v3142
  %v3156 = vpack.c.b16 %v3145, %v3144
  %v3157 = vpack.c.b16 %v3147, %v3146
  %v3158 = vpack.c.b16 %v3149, %v3148
  %v3159 = vpack.c.b16 %v3151, %v3150
  %3168 = vmatpush.bf16.msra.mxu0 %v3159
  %3169 = vmatpush.bf16.msra.mxu0 %v3158
  %3170 = vmatpush.bf16.msra.mxu0 %v3157
  %3171 = vmatpush.bf16.msra.mxu0 %v3156
  %3172 = vmatpush.bf16.msra.mxu0 %v3155
  %3173 = vmatpush.bf16.msra.mxu0 %v3154
  %3174 = vmatpush.bf16.msra.mxu0 %v3153
  %3175 = vmatpush.bf16.msra.mxu0 %v3152
  %3176 = vmatmul.bf16.gmra.mxu0 %v3118
  %v3177 = vpop.f32.mrf.mxu0
  %v3178 = vadd.f32 0.0, %v3177
  %v3179 = vpop.f32.mrf.mxu0
  %v3180 = vadd.f32 0.0, %v3179
  %3181 = vdwg.mxu0
  %v3182 = vadd.f32 %v3096, %v3178
  %v3183 = vadd.f32 %v3097, %v3180
  %v3184 = vmul.f32 %v3182, 0.5
  %v3185 = vmul.f32 %v3183, 0.5
  %v3186 = vtanh.pop %v3184
  %v3187 = vtanh.pop %v3185
  %v3188 = vmul.f32 %v3186, 0.5
  %v3189 = vmul.f32 %v3187, 0.5
  %v3190 = vadd.f32 %v3188, 0.5
  %v3191 = vadd.f32 %v3189, 0.5
  %v3192 = vmul.f32 %v3190, %v2988
  %v3193 = vmul.f32 %v3191, %v2989
  %v3194 = vld [vmem:[%s3093] sm:$0xf]
  %v3195 = vld [vmem:[%s3093 + $0x10] sm:$0xf]
  %v3196 = vunpack.c.l.bf16 %v3194
  %v3197 = vunpack.c.l.bf16 %v3195
  %v3198 = vld [vmem:[%s2] sm:$0xf]
  %v3199 = vld [vmem:[%s2 + $0x10] sm:$0xf]
  %v3200 = vld [vmem:[%s2 + $0x20] sm:$0xf]
  %v3201 = vld [vmem:[%s2 + $0x30] sm:$0xf]
  %v3202 = vld [vmem:[%s2 + $0x40] sm:$0xf]
  %v3203 = vld [vmem:[%s2 + $0x50] sm:$0xf]
  %v3204 = vld [vmem:[%s2 + $0x60] sm:$0xf]
  %v3205 = vld [vmem:[%s2 + $0x70] sm:$0xf]
  %v3206 = vld [vmem:[%s2 + $0x80] sm:$0xf]
  %v3207 = vld [vmem:[%s2 + $0x90] sm:$0xf]
  %v3208 = vld [vmem:[%s2 + $0xa0] sm:$0xf]
  %v3209 = vld [vmem:[%s2 + $0xb0] sm:$0xf]
  %v3210 = vld [vmem:[%s2 + $0xc0] sm:$0xf]
  %v3211 = vld [vmem:[%s2 + $0xd0] sm:$0xf]
  %v3212 = vld [vmem:[%s2 + $0xe0] sm:$0xf]
  %v3213 = vld [vmem:[%s2 + $0xf0] sm:$0xf]
  %v3230 = vunpack.c.l.b16 %v3198
  %v3231 = vunpack.c.l.b16 %v3199
  %v3232 = vunpack.c.l.b16 %v3200
  %v3233 = vunpack.c.l.b16 %v3201
  %v3234 = vunpack.c.l.b16 %v3202
  %v3235 = vunpack.c.l.b16 %v3203
  %v3236 = vunpack.c.l.b16 %v3204
  %v3237 = vunpack.c.l.b16 %v3205
  %v3238 = vunpack.c.l.b16 %v3206
  %v3239 = vunpack.c.l.b16 %v3207
  %v3240 = vunpack.c.l.b16 %v3208
  %v3241 = vunpack.c.l.b16 %v3209
  %v3242 = vunpack.c.l.b16 %v3210
  %v3243 = vunpack.c.l.b16 %v3211
  %v3244 = vunpack.c.l.b16 %v3212
  %v3245 = vunpack.c.l.b16 %v3213
  %v3246 = vpack.c.b16 %v3231, %v3230
  %v3247 = vpack.c.b16 %v3233, %v3232
  %v3248 = vpack.c.b16 %v3235, %v3234
  %v3249 = vpack.c.b16 %v3237, %v3236
  %v3250 = vpack.c.b16 %v3239, %v3238
  %v3251 = vpack.c.b16 %v3241, %v3240
  %v3252 = vpack.c.b16 %v3243, %v3242
  %v3253 = vpack.c.b16 %v3245, %v3244
  %3262 = vmatpush.bf16.msra.mxu0 %v3253
  %3263 = vmatpush.bf16.msra.mxu0 %v3252
  %3264 = vmatpush.bf16.msra.mxu0 %v3251
  %3265 = vmatpush.bf16.msra.mxu0 %v3250
  %3266 = vmatpush.bf16.msra.mxu0 %v3249
  %3267 = vmatpush.bf16.msra.mxu0 %v3248
  %3268 = vmatpush.bf16.msra.mxu0 %v3247
  %3269 = vmatpush.bf16.msra.mxu0 %v3246
  %3270 = vmatmul.bf16.gmra.mxu0 %v3118
  %v3271 = vpop.f32.mrf.mxu0
  %v3272 = vadd.f32 0.0, %v3271
  %v3273 = vpop.f32.mrf.mxu0
  %v3274 = vadd.f32 0.0, %v3273
  %3275 = vdwg.mxu0
  %v3276 = vadd.f32 %v3196, %v3272
  %v3277 = vadd.f32 %v3197, %v3274
  %v3278 = vmul.f32 %v3276, 0.5
  %v3279 = vmul.f32 %v3277, 0.5
  %v3280 = vtanh.pop %v3278
  %v3281 = vtanh.pop %v3279
  %v3282 = vmul.f32 %v3280, 0.5
  %v3283 = vmul.f32 %v3281, 0.5
  %v3284 = vadd.f32 %v3282, 0.5
  %v3285 = vadd.f32 %v3283, 0.5
  %v3286 = vld [vmem:[%s3093 + $0x8] sm:$0xf]
  %v3287 = vld [vmem:[%s3093 + $0x18] sm:$0xf]
  %v3288 = vunpack.c.l.bf16 %v3286
  %v3289 = vunpack.c.l.bf16 %v3287
  %v3290 = vld [vmem:[%s2 + $0x8] sm:$0xf]
  %v3291 = vld [vmem:[%s2 + $0x18] sm:$0xf]
  %v3292 = vld [vmem:[%s2 + $0x28] sm:$0xf]
  %v3293 = vld [vmem:[%s2 + $0x38] sm:$0xf]
  %v3294 = vld [vmem:[%s2 + $0x48] sm:$0xf]
  %v3295 = vld [vmem:[%s2 + $0x58] sm:$0xf]
  %v3296 = vld [vmem:[%s2 + $0x68] sm:$0xf]
  %v3297 = vld [vmem:[%s2 + $0x78] sm:$0xf]
  %v3298 = vld [vmem:[%s2 + $0x88] sm:$0xf]
  %v3299 = vld [vmem:[%s2 + $0x98] sm:$0xf]
  %v3300 = vld [vmem:[%s2 + $0xa8] sm:$0xf]
  %v3301 = vld [vmem:[%s2 + $0xb8] sm:$0xf]
  %v3302 = vld [vmem:[%s2 + $0xc8] sm:$0xf]
  %v3303 = vld [vmem:[%s2 + $0xd8] sm:$0xf]
  %v3304 = vld [vmem:[%s2 + $0xe8] sm:$0xf]
  %v3305 = vld [vmem:[%s2 + $0xf8] sm:$0xf]
  %v3322 = vunpack.c.l.b16 %v3290
  %v3323 = vunpack.c.l.b16 %v3291
  %v3324 = vunpack.c.l.b16 %v3292
  %v3325 = vunpack.c.l.b16 %v3293
  %v3326 = vunpack.c.l.b16 %v3294
  %v3327 = vunpack.c.l.b16 %v3295
  %v3328 = vunpack.c.l.b16 %v3296
  %v3329 = vunpack.c.l.b16 %v3297
  %v3330 = vunpack.c.l.b16 %v3298
  %v3331 = vunpack.c.l.b16 %v3299
  %v3332 = vunpack.c.l.b16 %v3300
  %v3333 = vunpack.c.l.b16 %v3301
  %v3334 = vunpack.c.l.b16 %v3302
  %v3335 = vunpack.c.l.b16 %v3303
  %v3336 = vunpack.c.l.b16 %v3304
  %v3337 = vunpack.c.l.b16 %v3305
  %v3338 = vpack.c.b16 %v3323, %v3322
  %v3339 = vpack.c.b16 %v3325, %v3324
  %v3340 = vpack.c.b16 %v3327, %v3326
  %v3341 = vpack.c.b16 %v3329, %v3328
  %v3342 = vpack.c.b16 %v3331, %v3330
  %v3343 = vpack.c.b16 %v3333, %v3332
  %v3344 = vpack.c.b16 %v3335, %v3334
  %v3345 = vpack.c.b16 %v3337, %v3336
  %3354 = vmatpush.bf16.msra.mxu0 %v3345
  %3355 = vmatpush.bf16.msra.mxu0 %v3344
  %3356 = vmatpush.bf16.msra.mxu0 %v3343
  %3357 = vmatpush.bf16.msra.mxu0 %v3342
  %3358 = vmatpush.bf16.msra.mxu0 %v3341
  %3359 = vmatpush.bf16.msra.mxu0 %v3340
  %3360 = vmatpush.bf16.msra.mxu0 %v3339
  %3361 = vmatpush.bf16.msra.mxu0 %v3338
  %3362 = vmatmul.bf16.gmra.mxu0 %v3118
  %v3363 = vpop.f32.mrf.mxu0
  %v3364 = vadd.f32 0.0, %v3363
  %v3365 = vpop.f32.mrf.mxu0
  %v3366 = vadd.f32 0.0, %v3365
  %3367 = vdwg.mxu0
  %v3368 = vadd.f32 %v3288, %v3364
  %v3369 = vadd.f32 %v3289, %v3366
  %v3370 = vtanh.pop %v3368
  %v3371 = vtanh.pop %v3369
  %v3372 = vmul.f32 %v3284, %v3370
  %v3373 = vmul.f32 %v3285, %v3371
  %v3374 = vadd.f32 %v3192, %v3372
  %v3375 = vadd.f32 %v3193, %v3373
  %v3376 = vld [vmem:[%s3093 + $0xc] sm:$0xf]
  %v3377 = vld [vmem:[%s3093 + $0x1c] sm:$0xf]
  %v3378 = vunpack.c.l.bf16 %v3376
  %v3379 = vunpack.c.l.bf16 %v3377
  %v3380 = vld [vmem:[%s2 + $0xc] sm:$0xf]
  %v3381 = vld [vmem:[%s2 + $0x1c] sm:$0xf]
  %v3382 = vld [vmem:[%s2 + $0x2c] sm:$0xf]
  %v3383 = vld [vmem:[%s2 + $0x3c] sm:$0xf]
  %v3384 = vld [vmem:[%s2 + $0x4c] sm:$0xf]
  %v3385 = vld [vmem:[%s2 + $0x5c] sm:$0xf]
  %v3386 = vld [vmem:[%s2 + $0x6c] sm:$0xf]
  %v3387 = vld [vmem:[%s2 + $0x7c] sm:$0xf]
  %v3388 = vld [vmem:[%s2 + $0x8c] sm:$0xf]
  %v3389 = vld [vmem:[%s2 + $0x9c] sm:$0xf]
  %v3390 = vld [vmem:[%s2 + $0xac] sm:$0xf]
  %v3391 = vld [vmem:[%s2 + $0xbc] sm:$0xf]
  %v3392 = vld [vmem:[%s2 + $0xcc] sm:$0xf]
  %v3393 = vld [vmem:[%s2 + $0xdc] sm:$0xf]
  %v3394 = vld [vmem:[%s2 + $0xec] sm:$0xf]
  %v3395 = vld [vmem:[%s2 + $0xfc] sm:$0xf]
  %v3412 = vunpack.c.l.b16 %v3380
  %v3413 = vunpack.c.l.b16 %v3381
  %v3414 = vunpack.c.l.b16 %v3382
  %v3415 = vunpack.c.l.b16 %v3383
  %v3416 = vunpack.c.l.b16 %v3384
  %v3417 = vunpack.c.l.b16 %v3385
  %v3418 = vunpack.c.l.b16 %v3386
  %v3419 = vunpack.c.l.b16 %v3387
  %v3420 = vunpack.c.l.b16 %v3388
  %v3421 = vunpack.c.l.b16 %v3389
  %v3422 = vunpack.c.l.b16 %v3390
  %v3423 = vunpack.c.l.b16 %v3391
  %v3424 = vunpack.c.l.b16 %v3392
  %v3425 = vunpack.c.l.b16 %v3393
  %v3426 = vunpack.c.l.b16 %v3394
  %v3427 = vunpack.c.l.b16 %v3395
  %v3428 = vpack.c.b16 %v3413, %v3412
  %v3429 = vpack.c.b16 %v3415, %v3414
  %v3430 = vpack.c.b16 %v3417, %v3416
  %v3431 = vpack.c.b16 %v3419, %v3418
  %v3432 = vpack.c.b16 %v3421, %v3420
  %v3433 = vpack.c.b16 %v3423, %v3422
  %v3434 = vpack.c.b16 %v3425, %v3424
  %v3435 = vpack.c.b16 %v3427, %v3426
  %3444 = vmatpush.bf16.msra.mxu0 %v3435
  %3445 = vmatpush.bf16.msra.mxu0 %v3434
  %3446 = vmatpush.bf16.msra.mxu0 %v3433
  %3447 = vmatpush.bf16.msra.mxu0 %v3432
  %3448 = vmatpush.bf16.msra.mxu0 %v3431
  %3449 = vmatpush.bf16.msra.mxu0 %v3430
  %3450 = vmatpush.bf16.msra.mxu0 %v3429
  %3451 = vmatpush.bf16.msra.mxu0 %v3428
  %3452 = vmatmul.bf16.gmra.mxu0 %v3118
  %v3453 = vpop.f32.mrf.mxu0
  %v3454 = vadd.f32 0.0, %v3453
  %v3455 = vpop.f32.mrf.mxu0
  %v3456 = vadd.f32 0.0, %v3455
  %3457 = vdwg.mxu0
  %v3458 = vadd.f32 %v3378, %v3454
  %v3459 = vadd.f32 %v3379, %v3456
  %v3460 = vmul.f32 %v3458, 0.5
  %v3461 = vmul.f32 %v3459, 0.5
  %v3462 = vtanh.pop %v3460
  %v3463 = vtanh.pop %v3461
  %v3464 = vmul.f32 %v3462, 0.5
  %v3465 = vmul.f32 %v3463, 0.5
  %v3466 = vadd.f32 %v3464, 0.5
  %v3467 = vadd.f32 %v3465, 0.5
  %v3468 = vtanh.pop %v3374
  %v3469 = vtanh.pop %v3375
  %v3470 = vmul.f32 %v3466, %v3468
  %v3471 = vmul.f32 %v3467, %v3469
  %v3472 = vpack.c.bf16 %v3470, %v3470
  %v3473 = vpack.c.bf16 %v3471, %v3471
  %s3474 = scalar_lea.vmem [#allocation3], 56
  %3475 = vst [vmem:[%s3474] sm:$0xf] %v3472
  %3476 = vst [vmem:[%s3474 + $0x4] sm:$0xf] %v3473
  %v3477 = vld [vmem:[#allocation3] sm:$0xf]
  %v3478 = vld [vmem:[#allocation3 + $0x4] sm:$0xf]
  %v3479 = vld [vmem:[%s4] sm:$0xf]
  %v3480 = vld [vmem:[%s4 + $0x4] sm:$0xf]
  %v3481 = vld [vmem:[%s4 + $0x8] sm:$0xf]
  %v3482 = vld [vmem:[%s4 + $0xc] sm:$0xf]
  %v3483 = vld [vmem:[%s4 + $0x10] sm:$0xf]
  %v3484 = vld [vmem:[%s4 + $0x14] sm:$0xf]
  %v3485 = vld [vmem:[%s4 + $0x18] sm:$0xf]
  %v3486 = vld [vmem:[%s4 + $0x1c] sm:$0xf]
  %v3487 = vld [vmem:[%s4 + $0x20] sm:$0xf]
  %v3488 = vld [vmem:[%s4 + $0x24] sm:$0xf]
  %v3489 = vld [vmem:[%s4 + $0x28] sm:$0xf]
  %v3490 = vld [vmem:[%s4 + $0x2c] sm:$0xf]
  %v3491 = vld [vmem:[%s4 + $0x30] sm:$0xf]
  %v3492 = vld [vmem:[%s4 + $0x34] sm:$0xf]
  %v3493 = vld [vmem:[%s4 + $0x38] sm:$0xf]
  %v3494 = vld [vmem:[%s4 + $0x3c] sm:$0xf]
  %v3497 = vunpack.c.l.b16 %v3477
  %v3498 = vunpack.c.l.b16 %v3478
  %v3499 = vpack.c.b16 %v3498, %v3497
  %v3517 = vunpack.c.l.b16 %v3479
  %v3518 = vunpack.c.l.b16 %v3480
  %v3519 = vunpack.c.l.b16 %v3481
  %v3520 = vunpack.c.l.b16 %v3482
  %v3521 = vunpack.c.l.b16 %v3483
  %v3522 = vunpack.c.l.b16 %v3484
  %v3523 = vunpack.c.l.b16 %v3485
  %v3524 = vunpack.c.l.b16 %v3486
  %v3525 = vunpack.c.l.b16 %v3487
  %v3526 = vunpack.c.l.b16 %v3488
  %v3527 = vunpack.c.l.b16 %v3489
  %v3528 = vunpack.c.l.b16 %v3490
  %v3529 = vunpack.c.l.b16 %v3491
  %v3530 = vunpack.c.l.b16 %v3492
  %v3531 = vunpack.c.l.b16 %v3493
  %v3532 = vunpack.c.l.b16 %v3494
  %v3533 = vpack.c.b16 %v3518, %v3517
  %v3534 = vpack.c.b16 %v3520, %v3519
  %v3535 = vpack.c.b16 %v3522, %v3521
  %v3536 = vpack.c.b16 %v3524, %v3523
  %v3537 = vpack.c.b16 %v3526, %v3525
  %v3538 = vpack.c.b16 %v3528, %v3527
  %v3539 = vpack.c.b16 %v3530, %v3529
  %v3540 = vpack.c.b16 %v3532, %v3531
  %3549 = vmatpush.bf16.msra.mxu0 %v3540
  %3550 = vmatpush.bf16.msra.mxu0 %v3539
  %3551 = vmatpush.bf16.msra.mxu0 %v3538
  %3552 = vmatpush.bf16.msra.mxu0 %v3537
  %3553 = vmatpush.bf16.msra.mxu0 %v3536
  %3554 = vmatpush.bf16.msra.mxu0 %v3535
  %3555 = vmatpush.bf16.msra.mxu0 %v3534
  %3556 = vmatpush.bf16.msra.mxu0 %v3533
  %3557 = vmatmul.bf16.gmra.mxu0 %v3499
  %v3558 = vpop.f32.mrf.mxu0
  %v3559 = vadd.f32 0.0, %v3558
  %v3560 = vpop.f32.mrf.mxu0
  %v3561 = vadd.f32 0.0, %v3560
  %3562 = vdwg.mxu0
  %3563 = vst [vmem:[#allocation4] sm:$0xff] %v3559
  %3564 = vst [vmem:[#allocation4 + $0x8] sm:$0xff] %v3561
  %v3565 = vld [vmem:[#allocation3 + $0x8] sm:$0xf]
  %v3566 = vld [vmem:[#allocation3 + $0xc] sm:$0xf]
  %v3567 = vld [vmem:[%s4] sm:$0xf]
  %v3568 = vld [vmem:[%s4 + $0x4] sm:$0xf]
  %v3569 = vld [vmem:[%s4 + $0x8] sm:$0xf]
  %v3570 = vld [vmem:[%s4 + $0xc] sm:$0xf]
  %v3571 = vld [vmem:[%s4 + $0x10] sm:$0xf]
  %v3572 = vld [vmem:[%s4 + $0x14] sm:$0xf]
  %v3573 = vld [vmem:[%s4 + $0x18] sm:$0xf]
  %v3574 = vld [vmem:[%s4 + $0x1c] sm:$0xf]
  %v3575 = vld [vmem:[%s4 + $0x20] sm:$0xf]
  %v3576 = vld [vmem:[%s4 + $0x24] sm:$0xf]
  %v3577 = vld [vmem:[%s4 + $0x28] sm:$0xf]
  %v3578 = vld [vmem:[%s4 + $0x2c] sm:$0xf]
  %v3579 = vld [vmem:[%s4 + $0x30] sm:$0xf]
  %v3580 = vld [vmem:[%s4 + $0x34] sm:$0xf]
  %v3581 = vld [vmem:[%s4 + $0x38] sm:$0xf]
  %v3582 = vld [vmem:[%s4 + $0x3c] sm:$0xf]
  %v3585 = vunpack.c.l.b16 %v3565
  %v3586 = vunpack.c.l.b16 %v3566
  %v3587 = vpack.c.b16 %v3586, %v3585
  %v3605 = vunpack.c.l.b16 %v3567
  %v3606 = vunpack.c.l.b16 %v3568
  %v3607 = vunpack.c.l.b16 %v3569
  %v3608 = vunpack.c.l.b16 %v3570
  %v3609 = vunpack.c.l.b16 %v3571
  %v3610 = vunpack.c.l.b16 %v3572
  %v3611 = vunpack.c.l.b16 %v3573
  %v3612 = vunpack.c.l.b16 %v3574
  %v3613 = vunpack.c.l.b16 %v3575
  %v3614 = vunpack.c.l.b16 %v3576
  %v3615 = vunpack.c.l.b16 %v3577
  %v3616 = vunpack.c.l.b16 %v3578
  %v3617 = vunpack.c.l.b16 %v3579
  %v3618 = vunpack.c.l.b16 %v3580
  %v3619 = vunpack.c.l.b16 %v3581
  %v3620 = vunpack.c.l.b16 %v3582
  %v3621 = vpack.c.b16 %v3606, %v3605
  %v3622 = vpack.c.b16 %v3608, %v3607
  %v3623 = vpack.c.b16 %v3610, %v3609
  %v3624 = vpack.c.b16 %v3612, %v3611
  %v3625 = vpack.c.b16 %v3614, %v3613
  %v3626 = vpack.c.b16 %v3616, %v3615
  %v3627 = vpack.c.b16 %v3618, %v3617
  %v3628 = vpack.c.b16 %v3620, %v3619
  %3637 = vmatpush.bf16.msra.mxu0 %v3628
  %3638 = vmatpush.bf16.msra.mxu0 %v3627
  %3639 = vmatpush.bf16.msra.mxu0 %v3626
  %3640 = vmatpush.bf16.msra.mxu0 %v3625
  %3641 = vmatpush.bf16.msra.mxu0 %v3624
  %3642 = vmatpush.bf16.msra.mxu0 %v3623
  %3643 = vmatpush.bf16.msra.mxu0 %v3622
  %3644 = vmatpush.bf16.msra.mxu0 %v3621
  %3645 = vmatmul.bf16.gmra.mxu0 %v3587
  %v3646 = vpop.f32.mrf.mxu0
  %v3647 = vadd.f32 0.0, %v3646
  %v3648 = vpop.f32.mrf.mxu0
  %v3649 = vadd.f32 0.0, %v3648
  %3650 = vdwg.mxu0
  %3651 = vst [vmem:[#allocation4 + $0x10] sm:$0xff] %v3647
  %3652 = vst [vmem:[#allocation4 + $0x18] sm:$0xff] %v3649
  %v3653 = vmax.f32 %v3559, %v3647
  %v3654 = vmax.f32 %v3561, %v3649
  %v3655 = vld [vmem:[#allocation3 + $0x10] sm:$0xf]
  %v3656 = vld [vmem:[#allocation3 + $0x14] sm:$0xf]
  %v3657 = vld [vmem:[%s4] sm:$0xf]
  %v3658 = vld [vmem:[%s4 + $0x4] sm:$0xf]
  %v3659 = vld [vmem:[%s4 + $0x8] sm:$0xf]
  %v3660 = vld [vmem:[%s4 + $0xc] sm:$0xf]
  %v3661 = vld [vmem:[%s4 + $0x10] sm:$0xf]
  %v3662 = vld [vmem:[%s4 + $0x14] sm:$0xf]
  %v3663 = vld [vmem:[%s4 + $0x18] sm:$0xf]
  %v3664 = vld [vmem:[%s4 + $0x1c] sm:$0xf]
  %v3665 = vld [vmem:[%s4 + $0x20] sm:$0xf]
  %v3666 = vld [vmem:[%s4 + $0x24] sm:$0xf]
  %v3667 = vld [vmem:[%s4 + $0x28] sm:$0xf]
  %v3668 = vld [vmem:[%s4 + $0x2c] sm:$0xf]
  %v3669 = vld [vmem:[%s4 + $0x30] sm:$0xf]
  %v3670 = vld [vmem:[%s4 + $0x34] sm:$0xf]
  %v3671 = vld [vmem:[%s4 + $0x38] sm:$0xf]
  %v3672 = vld [vmem:[%s4 + $0x3c] sm:$0xf]
  %v3675 = vunpack.c.l.b16 %v3655
  %v3676 = vunpack.c.l.b16 %v3656
  %v3677 = vpack.c.b16 %v3676, %v3675
  %v3695 = vunpack.c.l.b16 %v3657
  %v3696 = vunpack.c.l.b16 %v3658
  %v3697 = vunpack.c.l.b16 %v3659
  %v3698 = vunpack.c.l.b16 %v3660
  %v3699 = vunpack.c.l.b16 %v3661
  %v3700 = vunpack.c.l.b16 %v3662
  %v3701 = vunpack.c.l.b16 %v3663
  %v3702 = vunpack.c.l.b16 %v3664
  %v3703 = vunpack.c.l.b16 %v3665
  %v3704 = vunpack.c.l.b16 %v3666
  %v3705 = vunpack.c.l.b16 %v3667
  %v3706 = vunpack.c.l.b16 %v3668
  %v3707 = vunpack.c.l.b16 %v3669
  %v3708 = vunpack.c.l.b16 %v3670
  %v3709 = vunpack.c.l.b16 %v3671
  %v3710 = vunpack.c.l.b16 %v3672
  %v3711 = vpack.c.b16 %v3696, %v3695
  %v3712 = vpack.c.b16 %v3698, %v3697
  %v3713 = vpack.c.b16 %v3700, %v3699
  %v3714 = vpack.c.b16 %v3702, %v3701
  %v3715 = vpack.c.b16 %v3704, %v3703
  %v3716 = vpack.c.b16 %v3706, %v3705
  %v3717 = vpack.c.b16 %v3708, %v3707
  %v3718 = vpack.c.b16 %v3710, %v3709
  %3727 = vmatpush.bf16.msra.mxu0 %v3718
  %3728 = vmatpush.bf16.msra.mxu0 %v3717
  %3729 = vmatpush.bf16.msra.mxu0 %v3716
  %3730 = vmatpush.bf16.msra.mxu0 %v3715
  %3731 = vmatpush.bf16.msra.mxu0 %v3714
  %3732 = vmatpush.bf16.msra.mxu0 %v3713
  %3733 = vmatpush.bf16.msra.mxu0 %v3712
  %3734 = vmatpush.bf16.msra.mxu0 %v3711
  %3735 = vmatmul.bf16.gmra.mxu0 %v3677
  %v3736 = vpop.f32.mrf.mxu0
  %v3737 = vadd.f32 0.0, %v3736
  %v3738 = vpop.f32.mrf.mxu0
  %v3739 = vadd.f32 0.0, %v3738
  %3740 = vdwg.mxu0
  %3741 = vst [vmem:[#allocation4 + $0x20] sm:$0xff] %v3737
  %3742 = vst [vmem:[#allocation4 + $0x28] sm:$0xff] %v3739
  %v3743 = vmax.f32 %v3653, %v3737
  %v3744 = vmax.f32 %v3654, %v3739
  %v3745 = vld [vmem:[#allocation3 + $0x18] sm:$0xf]
  %v3746 = vld [vmem:[#allocation3 + $0x1c] sm:$0xf]
  %v3747 = vld [vmem:[%s4] sm:$0xf]
  %v3748 = vld [vmem:[%s4 + $0x4] sm:$0xf]
  %v3749 = vld [vmem:[%s4 + $0x8] sm:$0xf]
  %v3750 = vld [vmem:[%s4 + $0xc] sm:$0xf]
  %v3751 = vld [vmem:[%s4 + $0x10] sm:$0xf]
  %v3752 = vld [vmem:[%s4 + $0x14] sm:$0xf]
  %v3753 = vld [vmem:[%s4 + $0x18] sm:$0xf]
  %v3754 = vld [vmem:[%s4 + $0x1c] sm:$0xf]
  %v3755 = vld [vmem:[%s4 + $0x20] sm:$0xf]
  %v3756 = vld [vmem:[%s4 + $0x24] sm:$0xf]
  %v3757 = vld [vmem:[%s4 + $0x28] sm:$0xf]
  %v3758 = vld [vmem:[%s4 + $0x2c] sm:$0xf]
  %v3759 = vld [vmem:[%s4 + $0x30] sm:$0xf]
  %v3760 = vld [vmem:[%s4 + $0x34] sm:$0xf]
  %v3761 = vld [vmem:[%s4 + $0x38] sm:$0xf]
  %v3762 = vld [vmem:[%s4 + $0x3c] sm:$0xf]
  %v3765 = vunpack.c.l.b16 %v3745
  %v3766 = vunpack.c.l.b16 %v3746
  %v3767 = vpack.c.b16 %v3766, %v3765
  %v3785 = vunpack.c.l.b16 %v3747
  %v3786 = vunpack.c.l.b16 %v3748
  %v3787 = vunpack.c.l.b16 %v3749
  %v3788 = vunpack.c.l.b16 %v3750
  %v3789 = vunpack.c.l.b16 %v3751
  %v3790 = vunpack.c.l.b16 %v3752
  %v3791 = vunpack.c.l.b16 %v3753
  %v3792 = vunpack.c.l.b16 %v3754
  %v3793 = vunpack.c.l.b16 %v3755
  %v3794 = vunpack.c.l.b16 %v3756
  %v3795 = vunpack.c.l.b16 %v3757
  %v3796 = vunpack.c.l.b16 %v3758
  %v3797 = vunpack.c.l.b16 %v3759
  %v3798 = vunpack.c.l.b16 %v3760
  %v3799 = vunpack.c.l.b16 %v3761
  %v3800 = vunpack.c.l.b16 %v3762
  %v3801 = vpack.c.b16 %v3786, %v3785
  %v3802 = vpack.c.b16 %v3788, %v3787
  %v3803 = vpack.c.b16 %v3790, %v3789
  %v3804 = vpack.c.b16 %v3792, %v3791
  %v3805 = vpack.c.b16 %v3794, %v3793
  %v3806 = vpack.c.b16 %v3796, %v3795
  %v3807 = vpack.c.b16 %v3798, %v3797
  %v3808 = vpack.c.b16 %v3800, %v3799
  %3817 = vmatpush.bf16.msra.mxu0 %v3808
  %3818 = vmatpush.bf16.msra.mxu0 %v3807
  %3819 = vmatpush.bf16.msra.mxu0 %v3806
  %3820 = vmatpush.bf16.msra.mxu0 %v3805
  %3821 = vmatpush.bf16.msra.mxu0 %v3804
  %3822 = vmatpush.bf16.msra.mxu0 %v3803
  %3823 = vmatpush.bf16.msra.mxu0 %v3802
  %3824 = vmatpush.bf16.msra.mxu0 %v3801
  %3825 = vmatmul.bf16.gmra.mxu0 %v3767
  %v3826 = vpop.f32.mrf.mxu0
  %v3827 = vadd.f32 0.0, %v3826
  %v3828 = vpop.f32.mrf.mxu0
  %v3829 = vadd.f32 0.0, %v3828
  %3830 = vdwg.mxu0
  %3831 = vst [vmem:[#allocation4 + $0x30] sm:$0xff] %v3827
  %3832 = vst [vmem:[#allocation4 + $0x38] sm:$0xff] %v3829
  %v3833 = vmax.f32 %v3743, %v3827
  %v3834 = vmax.f32 %v3744, %v3829
  %v3835 = vld [vmem:[#allocation3 + $0x20] sm:$0xf]
  %v3836 = vld [vmem:[#allocation3 + $0x24] sm:$0xf]
  %v3837 = vld [vmem:[%s4] sm:$0xf]
  %v3838 = vld [vmem:[%s4 + $0x4] sm:$0xf]
  %v3839 = vld [vmem:[%s4 + $0x8] sm:$0xf]
  %v3840 = vld [vmem:[%s4 + $0xc] sm:$0xf]
  %v3841 = vld [vmem:[%s4 + $0x10] sm:$0xf]
  %v3842 = vld [vmem:[%s4 + $0x14] sm:$0xf]
  %v3843 = vld [vmem:[%s4 + $0x18] sm:$0xf]
  %v3844 = vld [vmem:[%s4 + $0x1c] sm:$0xf]
  %v3845 = vld [vmem:[%s4 + $0x20] sm:$0xf]
  %v3846 = vld [vmem:[%s4 + $0x24] sm:$0xf]
  %v3847 = vld [vmem:[%s4 + $0x28] sm:$0xf]
  %v3848 = vld [vmem:[%s4 + $0x2c] sm:$0xf]
  %v3849 = vld [vmem:[%s4 + $0x30] sm:$0xf]
  %v3850 = vld [vmem:[%s4 + $0x34] sm:$0xf]
  %v3851 = vld [vmem:[%s4 + $0x38] sm:$0xf]
  %v3852 = vld [vmem:[%s4 + $0x3c] sm:$0xf]
  %v3855 = vunpack.c.l.b16 %v3835
  %v3856 = vunpack.c.l.b16 %v3836
  %v3857 = vpack.c.b16 %v3856, %v3855
  %v3875 = vunpack.c.l.b16 %v3837
  %v3876 = vunpack.c.l.b16 %v3838
  %v3877 = vunpack.c.l.b16 %v3839
  %v3878 = vunpack.c.l.b16 %v3840
  %v3879 = vunpack.c.l.b16 %v3841
  %v3880 = vunpack.c.l.b16 %v3842
  %v3881 = vunpack.c.l.b16 %v3843
  %v3882 = vunpack.c.l.b16 %v3844
  %v3883 = vunpack.c.l.b16 %v3845
  %v3884 = vunpack.c.l.b16 %v3846
  %v3885 = vunpack.c.l.b16 %v3847
  %v3886 = vunpack.c.l.b16 %v3848
  %v3887 = vunpack.c.l.b16 %v3849
  %v3888 = vunpack.c.l.b16 %v3850
  %v3889 = vunpack.c.l.b16 %v3851
  %v3890 = vunpack.c.l.b16 %v3852
  %v3891 = vpack.c.b16 %v3876, %v3875
  %v3892 = vpack.c.b16 %v3878, %v3877
  %v3893 = vpack.c.b16 %v3880, %v3879
  %v3894 = vpack.c.b16 %v3882, %v3881
  %v3895 = vpack.c.b16 %v3884, %v3883
  %v3896 = vpack.c.b16 %v3886, %v3885
  %v3897 = vpack.c.b16 %v3888, %v3887
  %v3898 = vpack.c.b16 %v3890, %v3889
  %3907 = vmatpush.bf16.msra.mxu0 %v3898
  %3908 = vmatpush.bf16.msra.mxu0 %v3897
  %3909 = vmatpush.bf16.msra.mxu0 %v3896
  %3910 = vmatpush.bf16.msra.mxu0 %v3895
  %3911 = vmatpush.bf16.msra.mxu0 %v3894
  %3912 = vmatpush.bf16.msra.mxu0 %v3893
  %3913 = vmatpush.bf16.msra.mxu0 %v3892
  %3914 = vmatpush.bf16.msra.mxu0 %v3891
  %3915 = vmatmul.bf16.gmra.mxu0 %v3857
  %v3916 = vpop.f32.mrf.mxu0
  %v3917 = vadd.f32 0.0, %v3916
  %v3918 = vpop.f32.mrf.mxu0
  %v3919 = vadd.f32 0.0, %v3918
  %3920 = vdwg.mxu0
  %3921 = vst [vmem:[#allocation4 + $0x40] sm:$0xff] %v3917
  %3922 = vst [vmem:[#allocation4 + $0x48] sm:$0xff] %v3919
  %v3923 = vmax.f32 %v3833, %v3917
  %v3924 = vmax.f32 %v3834, %v3919
  %v3925 = vld [vmem:[#allocation3 + $0x28] sm:$0xf]
  %v3926 = vld [vmem:[#allocation3 + $0x2c] sm:$0xf]
  %v3927 = vld [vmem:[%s4] sm:$0xf]
  %v3928 = vld [vmem:[%s4 + $0x4] sm:$0xf]
  %v3929 = vld [vmem:[%s4 + $0x8] sm:$0xf]
  %v3930 = vld [vmem:[%s4 + $0xc] sm:$0xf]
  %v3931 = vld [vmem:[%s4 + $0x10] sm:$0xf]
  %v3932 = vld [vmem:[%s4 + $0x14] sm:$0xf]
  %v3933 = vld [vmem:[%s4 + $0x18] sm:$0xf]
  %v3934 = vld [vmem:[%s4 + $0x1c] sm:$0xf]
  %v3935 = vld [vmem:[%s4 + $0x20] sm:$0xf]
  %v3936 = vld [vmem:[%s4 + $0x24] sm:$0xf]
  %v3937 = vld [vmem:[%s4 + $0x28] sm:$0xf]
  %v3938 = vld [vmem:[%s4 + $0x2c] sm:$0xf]
  %v3939 = vld [vmem:[%s4 + $0x30] sm:$0xf]
  %v3940 = vld [vmem:[%s4 + $0x34] sm:$0xf]
  %v3941 = vld [vmem:[%s4 + $0x38] sm:$0xf]
  %v3942 = vld [vmem:[%s4 + $0x3c] sm:$0xf]
  %v3945 = vunpack.c.l.b16 %v3925
  %v3946 = vunpack.c.l.b16 %v3926
  %v3947 = vpack.c.b16 %v3946, %v3945
  %v3965 = vunpack.c.l.b16 %v3927
  %v3966 = vunpack.c.l.b16 %v3928
  %v3967 = vunpack.c.l.b16 %v3929
  %v3968 = vunpack.c.l.b16 %v3930
  %v3969 = vunpack.c.l.b16 %v3931
  %v3970 = vunpack.c.l.b16 %v3932
  %v3971 = vunpack.c.l.b16 %v3933
  %v3972 = vunpack.c.l.b16 %v3934
  %v3973 = vunpack.c.l.b16 %v3935
  %v3974 = vunpack.c.l.b16 %v3936
  %v3975 = vunpack.c.l.b16 %v3937
  %v3976 = vunpack.c.l.b16 %v3938
  %v3977 = vunpack.c.l.b16 %v3939
  %v3978 = vunpack.c.l.b16 %v3940
  %v3979 = vunpack.c.l.b16 %v3941
  %v3980 = vunpack.c.l.b16 %v3942
  %v3981 = vpack.c.b16 %v3966, %v3965
  %v3982 = vpack.c.b16 %v3968, %v3967
  %v3983 = vpack.c.b16 %v3970, %v3969
  %v3984 = vpack.c.b16 %v3972, %v3971
  %v3985 = vpack.c.b16 %v3974, %v3973
  %v3986 = vpack.c.b16 %v3976, %v3975
  %v3987 = vpack.c.b16 %v3978, %v3977
  %v3988 = vpack.c.b16 %v3980, %v3979
  %3997 = vmatpush.bf16.msra.mxu0 %v3988
  %3998 = vmatpush.bf16.msra.mxu0 %v3987
  %3999 = vmatpush.bf16.msra.mxu0 %v3986
  %4000 = vmatpush.bf16.msra.mxu0 %v3985
  %4001 = vmatpush.bf16.msra.mxu0 %v3984
  %4002 = vmatpush.bf16.msra.mxu0 %v3983
  %4003 = vmatpush.bf16.msra.mxu0 %v3982
  %4004 = vmatpush.bf16.msra.mxu0 %v3981
  %4005 = vmatmul.bf16.gmra.mxu0 %v3947
  %v4006 = vpop.f32.mrf.mxu0
  %v4007 = vadd.f32 0.0, %v4006
  %v4008 = vpop.f32.mrf.mxu0
  %v4009 = vadd.f32 0.0, %v4008
  %4010 = vdwg.mxu0
  %4011 = vst [vmem:[#allocation4 + $0x50] sm:$0xff] %v4007
  %4012 = vst [vmem:[#allocation4 + $0x58] sm:$0xff] %v4009
  %v4013 = vmax.f32 %v3923, %v4007
  %v4014 = vmax.f32 %v3924, %v4009
  %v4015 = vld [vmem:[#allocation3 + $0x30] sm:$0xf]
  %v4016 = vld [vmem:[#allocation3 + $0x34] sm:$0xf]
  %v4017 = vld [vmem:[%s4] sm:$0xf]
  %v4018 = vld [vmem:[%s4 + $0x4] sm:$0xf]
  %v4019 = vld [vmem:[%s4 + $0x8] sm:$0xf]
  %v4020 = vld [vmem:[%s4 + $0xc] sm:$0xf]
  %v4021 = vld [vmem:[%s4 + $0x10] sm:$0xf]
  %v4022 = vld [vmem:[%s4 + $0x14] sm:$0xf]
  %v4023 = vld [vmem:[%s4 + $0x18] sm:$0xf]
  %v4024 = vld [vmem:[%s4 + $0x1c] sm:$0xf]
  %v4025 = vld [vmem:[%s4 + $0x20] sm:$0xf]
  %v4026 = vld [vmem:[%s4 + $0x24] sm:$0xf]
  %v4027 = vld [vmem:[%s4 + $0x28] sm:$0xf]
  %v4028 = vld [vmem:[%s4 + $0x2c] sm:$0xf]
  %v4029 = vld [vmem:[%s4 + $0x30] sm:$0xf]
  %v4030 = vld [vmem:[%s4 + $0x34] sm:$0xf]
  %v4031 = vld [vmem:[%s4 + $0x38] sm:$0xf]
  %v4032 = vld [vmem:[%s4 + $0x3c] sm:$0xf]
  %v4035 = vunpack.c.l.b16 %v4015
  %v4036 = vunpack.c.l.b16 %v4016
  %v4037 = vpack.c.b16 %v4036, %v4035
  %v4055 = vunpack.c.l.b16 %v4017
  %v4056 = vunpack.c.l.b16 %v4018
  %v4057 = vunpack.c.l.b16 %v4019
  %v4058 = vunpack.c.l.b16 %v4020
  %v4059 = vunpack.c.l.b16 %v4021
  %v4060 = vunpack.c.l.b16 %v4022
  %v4061 = vunpack.c.l.b16 %v4023
  %v4062 = vunpack.c.l.b16 %v4024
  %v4063 = vunpack.c.l.b16 %v4025
  %v4064 = vunpack.c.l.b16 %v4026
  %v4065 = vunpack.c.l.b16 %v4027
  %v4066 = vunpack.c.l.b16 %v4028
  %v4067 = vunpack.c.l.b16 %v4029
  %v4068 = vunpack.c.l.b16 %v4030
  %v4069 = vunpack.c.l.b16 %v4031
  %v4070 = vunpack.c.l.b16 %v4032
  %v4071 = vpack.c.b16 %v4056, %v4055
  %v4072 = vpack.c.b16 %v4058, %v4057
  %v4073 = vpack.c.b16 %v4060, %v4059
  %v4074 = vpack.c.b16 %v4062, %v4061
  %v4075 = vpack.c.b16 %v4064, %v4063
  %v4076 = vpack.c.b16 %v4066, %v4065
  %v4077 = vpack.c.b16 %v4068, %v4067
  %v4078 = vpack.c.b16 %v4070, %v4069
  %4087 = vmatpush.bf16.msra.mxu0 %v4078
  %4088 = vmatpush.bf16.msra.mxu0 %v4077
  %4089 = vmatpush.bf16.msra.mxu0 %v4076
  %4090 = vmatpush.bf16.msra.mxu0 %v4075
  %4091 = vmatpush.bf16.msra.mxu0 %v4074
  %4092 = vmatpush.bf16.msra.mxu0 %v4073
  %4093 = vmatpush.bf16.msra.mxu0 %v4072
  %4094 = vmatpush.bf16.msra.mxu0 %v4071
  %4095 = vmatmul.bf16.gmra.mxu0 %v4037
  %v4096 = vpop.f32.mrf.mxu0
  %v4097 = vadd.f32 0.0, %v4096
  %v4098 = vpop.f32.mrf.mxu0
  %v4099 = vadd.f32 0.0, %v4098
  %4100 = vdwg.mxu0
  %4101 = vst [vmem:[#allocation4 + $0x60] sm:$0xff] %v4097
  %4102 = vst [vmem:[#allocation4 + $0x68] sm:$0xff] %v4099
  %v4103 = vmax.f32 %v4013, %v4097
  %v4104 = vmax.f32 %v4014, %v4099
  %v4105 = vld [vmem:[#allocation3 + $0x38] sm:$0xf]
  %v4106 = vld [vmem:[#allocation3 + $0x3c] sm:$0xf]
  %v4107 = vld [vmem:[%s4] sm:$0xf]
  %v4108 = vld [vmem:[%s4 + $0x4] sm:$0xf]
  %v4109 = vld [vmem:[%s4 + $0x8] sm:$0xf]
  %v4110 = vld [vmem:[%s4 + $0xc] sm:$0xf]
  %v4111 = vld [vmem:[%s4 + $0x10] sm:$0xf]
  %v4112 = vld [vmem:[%s4 + $0x14] sm:$0xf]
  %v4113 = vld [vmem:[%s4 + $0x18] sm:$0xf]
  %v4114 = vld [vmem:[%s4 + $0x1c] sm:$0xf]
  %v4115 = vld [vmem:[%s4 + $0x20] sm:$0xf]
  %v4116 = vld [vmem:[%s4 + $0x24] sm:$0xf]
  %v4117 = vld [vmem:[%s4 + $0x28] sm:$0xf]
  %v4118 = vld [vmem:[%s4 + $0x2c] sm:$0xf]
  %v4119 = vld [vmem:[%s4 + $0x30] sm:$0xf]
  %v4120 = vld [vmem:[%s4 + $0x34] sm:$0xf]
  %v4121 = vld [vmem:[%s4 + $0x38] sm:$0xf]
  %v4122 = vld [vmem:[%s4 + $0x3c] sm:$0xf]
  %v4125 = vunpack.c.l.b16 %v4105
  %v4126 = vunpack.c.l.b16 %v4106
  %v4127 = vpack.c.b16 %v4126, %v4125
  %v4145 = vunpack.c.l.b16 %v4107
  %v4146 = vunpack.c.l.b16 %v4108
  %v4147 = vunpack.c.l.b16 %v4109
  %v4148 = vunpack.c.l.b16 %v4110
  %v4149 = vunpack.c.l.b16 %v4111
  %v4150 = vunpack.c.l.b16 %v4112
  %v4151 = vunpack.c.l.b16 %v4113
  %v4152 = vunpack.c.l.b16 %v4114
  %v4153 = vunpack.c.l.b16 %v4115
  %v4154 = vunpack.c.l.b16 %v4116
  %v4155 = vunpack.c.l.b16 %v4117
  %v4156 = vunpack.c.l.b16 %v4118
  %v4157 = vunpack.c.l.b16 %v4119
  %v4158 = vunpack.c.l.b16 %v4120
  %v4159 = vunpack.c.l.b16 %v4121
  %v4160 = vunpack.c.l.b16 %v4122
  %v4161 = vpack.c.b16 %v4146, %v4145
  %v4162 = vpack.c.b16 %v4148, %v4147
  %v4163 = vpack.c.b16 %v4150, %v4149
  %v4164 = vpack.c.b16 %v4152, %v4151
  %v4165 = vpack.c.b16 %v4154, %v4153
  %v4166 = vpack.c.b16 %v4156, %v4155
  %v4167 = vpack.c.b16 %v4158, %v4157
  %v4168 = vpack.c.b16 %v4160, %v4159
  %4177 = vmatpush.bf16.msra.mxu0 %v4168
  %4178 = vmatpush.bf16.msra.mxu0 %v4167
  %4179 = vmatpush.bf16.msra.mxu0 %v4166
  %4180 = vmatpush.bf16.msra.mxu0 %v4165
  %4181 = vmatpush.bf16.msra.mxu0 %v4164
  %4182 = vmatpush.bf16.msra.mxu0 %v4163
  %4183 = vmatpush.bf16.msra.mxu0 %v4162
  %4184 = vmatpush.bf16.msra.mxu0 %v4161
  %4185 = vmatmul.bf16.gmra.mxu0 %v4127
  %v4186 = vpop.f32.mrf.mxu0
  %v4187 = vadd.f32 0.0, %v4186
  %v4188 = vpop.f32.mrf.mxu0
  %v4189 = vadd.f32 0.0, %v4188
  %4190 = vdwg.mxu0
  %4191 = vst [vmem:[#allocation4 + $0x70] sm:$0xff] %v4187
  %4192 = vst [vmem:[#allocation4 + $0x78] sm:$0xff] %v4189
  %v4193 = vmax.f32 %v4103, %v4187
  %v4194 = vmax.f32 %v4104, %v4189
  %v4195 = vld [vmem:[#allocation4] sm:$0xff]
  %v4196 = vld [vmem:[#allocation4 + $0x8] sm:$0xff]
  %v4197 = vsub.f32 %v4195, %v4193
  %v4198 = vsub.f32 %v4196, %v4194
  %v4199 = vmul.f32 %v4197, 1.442695
  %v4200 = vpow.pop %v4199
  %v4201 = vmul.f32 %v4198, 1.442695
  %v4202 = vpow.pop %v4201
  %v4203 = vadd.f32 %v4200, 0.0
  %v4204 = vadd.f32 %v4202, 0.0
  %4206 = vset.pattern.permute.xlu0 0
  %4207 = vperm.xlu0 %4206, %v4195
  %v4208 = vpop.permute.xlu0 %4207
  %4211 = vset.pattern.permute.xlu0 0
  %4212 = vperm.xlu0 %4211, %v4196
  %v4213 = vpop.permute.xlu0 %4212
  %v4215 = vmul.f32 %v4200, %v4208
  %v4216 = vmul.f32 %v4202, %v4213
  %v4217 = vadd.f32 %v4215, 0.0
  %v4218 = vadd.f32 %v4216, 0.0
  %v4219 = vld [vmem:[#allocation4 + $0x10] sm:$0xff]
  %v4220 = vld [vmem:[#allocation4 + $0x18] sm:$0xff]
  %v4221 = vsub.f32 %v4219, %v4193
  %v4222 = vsub.f32 %v4220, %v4194
  %v4223 = vmul.f32 %v4221, 1.442695
  %v4224 = vpow.pop %v4223
  %v4225 = vmul.f32 %v4222, 1.442695
  %v4226 = vpow.pop %v4225
  %v4227 = vadd.f32 %v4203, %v4224
  %v4228 = vadd.f32 %v4204, %v4226
  %4230 = vset.pattern.permute.xlu0 0
  %4231 = vperm.xlu0 %4230, %v4219
  %v4232 = vpop.permute.xlu0 %4231
  %4235 = vset.pattern.permute.xlu0 0
  %4236 = vperm.xlu0 %4235, %v4220
  %v4237 = vpop.permute.xlu0 %4236
  %v4239 = vmul.f32 %v4224, %v4232
  %v4240 = vmul.f32 %v4226, %v4237
  %v4241 = vadd.f32 %v4217, %v4239
  %v4242 = vadd.f32 %v4218, %v4240
  %v4243 = vld [vmem:[#allocation4 + $0x20] sm:$0xff]
  %v4244 = vld [vmem:[#allocation4 + $0x28] sm:$0xff]
  %v4245 = vsub.f32 %v4243, %v4193
  %v4246 = vsub.f32 %v4244, %v4194
  %v4247 = vmul.f32 %v4245, 1.442695
  %v4248 = vpow.pop %v4247
  %v4249 = vmul.f32 %v4246, 1.442695
  %v4250 = vpow.pop %v4249
  %v4251 = vadd.f32 %v4227, %v4248
  %v4252 = vadd.f32 %v4228, %v4250
  %4254 = vset.pattern.permute.xlu0 0
  %4255 = vperm.xlu0 %4254, %v4243
  %v4256 = vpop.permute.xlu0 %4255
  %4259 = vset.pattern.permute.xlu0 0
  %4260 = vperm.xlu0 %4259, %v4244
  %v4261 = vpop.permute.xlu0 %4260
  %v4263 = vmul.f32 %v4248, %v4256
  %v4264 = vmul.f32 %v4250, %v4261
  %v4265 = vadd.f32 %v4241, %v4263
  %v4266 = vadd.f32 %v4242, %v4264
  %v4267 = vld [vmem:[#allocation4 + $0x30] sm:$0xff]
  %v4268 = vld [vmem:[#allocation4 + $0x38] sm:$0xff]
  %v4269 = vsub.f32 %v4267, %v4193
  %v4270 = vsub.f32 %v4268, %v4194
  %v4271 = vmul.f32 %v4269, 1.442695
  %v4272 = vpow.pop %v4271
  %v4273 = vmul.f32 %v4270, 1.442695
  %v4274 = vpow.pop %v4273
  %v4275 = vadd.f32 %v4251, %v4272
  %v4276 = vadd.f32 %v4252, %v4274
  %4278 = vset.pattern.permute.xlu0 0
  %4279 = vperm.xlu0 %4278, %v4267
  %v4280 = vpop.permute.xlu0 %4279
  %4283 = vset.pattern.permute.xlu0 0
  %4284 = vperm.xlu0 %4283, %v4268
  %v4285 = vpop.permute.xlu0 %4284
  %v4287 = vmul.f32 %v4272, %v4280
  %v4288 = vmul.f32 %v4274, %v4285
  %v4289 = vadd.f32 %v4265, %v4287
  %v4290 = vadd.f32 %v4266, %v4288
  %v4291 = vld [vmem:[#allocation4 + $0x40] sm:$0xff]
  %v4292 = vld [vmem:[#allocation4 + $0x48] sm:$0xff]
  %v4293 = vsub.f32 %v4291, %v4193
  %v4294 = vsub.f32 %v4292, %v4194
  %v4295 = vmul.f32 %v4293, 1.442695
  %v4296 = vpow.pop %v4295
  %v4297 = vmul.f32 %v4294, 1.442695
  %v4298 = vpow.pop %v4297
  %v4299 = vadd.f32 %v4275, %v4296
  %v4300 = vadd.f32 %v4276, %v4298
  %4302 = vset.pattern.permute.xlu0 0
  %4303 = vperm.xlu0 %4302, %v4291
  %v4304 = vpop.permute.xlu0 %4303
  %4307 = vset.pattern.permute.xlu0 0
  %4308 = vperm.xlu0 %4307, %v4292
  %v4309 = vpop.permute.xlu0 %4308
  %v4311 = vmul.f32 %v4296, %v4304
  %v4312 = vmul.f32 %v4298, %v4309
  %v4313 = vadd.f32 %v4289, %v4311
  %v4314 = vadd.f32 %v4290, %v4312
  %v4315 = vld [vmem:[#allocation4 + $0x50] sm:$0xff]
  %v4316 = vld [vmem:[#allocation4 + $0x58] sm:$0xff]
  %v4317 = vsub.f32 %v4315, %v4193
  %v4318 = vsub.f32 %v4316, %v4194
  %v4319 = vmul.f32 %v4317, 1.442695
  %v4320 = vpow.pop %v4319
  %v4321 = vmul.f32 %v4318, 1.442695
  %v4322 = vpow.pop %v4321
  %v4323 = vadd.f32 %v4299, %v4320
  %v4324 = vadd.f32 %v4300, %v4322
  %4326 = vset.pattern.permute.xlu0 0
  %4327 = vperm.xlu0 %4326, %v4315
  %v4328 = vpop.permute.xlu0 %4327
  %4331 = vset.pattern.permute.xlu0 0
  %4332 = vperm.xlu0 %4331, %v4316
  %v4333 = vpop.permute.xlu0 %4332
  %v4335 = vmul.f32 %v4320, %v4328
  %v4336 = vmul.f32 %v4322, %v4333
  %v4337 = vadd.f32 %v4313, %v4335
  %v4338 = vadd.f32 %v4314, %v4336
  %v4339 = vld [vmem:[#allocation4 + $0x60] sm:$0xff]
  %v4340 = vld [vmem:[#allocation4 + $0x68] sm:$0xff]
  %v4341 = vsub.f32 %v4339, %v4193
  %v4342 = vsub.f32 %v4340, %v4194
  %v4343 = vmul.f32 %v4341, 1.442695
  %v4344 = vpow.pop %v4343
  %v4345 = vmul.f32 %v4342, 1.442695
  %v4346 = vpow.pop %v4345
  %v4347 = vadd.f32 %v4323, %v4344
  %v4348 = vadd.f32 %v4324, %v4346
  %4350 = vset.pattern.permute.xlu0 0
  %4351 = vperm.xlu0 %4350, %v4339
  %v4352 = vpop.permute.xlu0 %4351
  %4355 = vset.pattern.permute.xlu0 0
  %4356 = vperm.xlu0 %4355, %v4340
  %v4357 = vpop.permute.xlu0 %4356
  %v4359 = vmul.f32 %v4344, %v4352
  %v4360 = vmul.f32 %v4346, %v4357
  %v4361 = vadd.f32 %v4337, %v4359
  %v4362 = vadd.f32 %v4338, %v4360
  %v4363 = vld [vmem:[#allocation4 + $0x70] sm:$0xff]
  %v4364 = vld [vmem:[#allocation4 + $0x78] sm:$0xff]
  %v4365 = vsub.f32 %v4363, %v4193
  %v4366 = vsub.f32 %v4364, %v4194
  %v4367 = vmul.f32 %v4365, 1.442695
  %v4368 = vpow.pop %v4367
  %v4369 = vmul.f32 %v4366, 1.442695
  %v4370 = vpow.pop %v4369
  %v4371 = vadd.f32 %v4347, %v4368
  %v4372 = vadd.f32 %v4348, %v4370
  %4374 = vset.pattern.permute.xlu0 0
  %4375 = vperm.xlu0 %4374, %v4363
  %v4376 = vpop.permute.xlu0 %4375
  %4379 = vset.pattern.permute.xlu0 0
  %4380 = vperm.xlu0 %4379, %v4364
  %v4381 = vpop.permute.xlu0 %4380
  %v4383 = vmul.f32 %v4368, %v4376
  %v4384 = vmul.f32 %v4370, %v4381
  %v4385 = vadd.f32 %v4361, %v4383
  %v4386 = vadd.f32 %v4362, %v4384
  %v4387 = vrcp.pop %v4371
  %v4388 = vrcp.pop %v4372
  %v4389 = vmul.f32 %v4385, %v4387
  %v4390 = vmul.f32 %v4386, %v4388
  %v4391 = vmul.f32 %v4389, 0.125
  %v4392 = vmul.f32 %v4390, 0.125
  %4393 = vst [vmem:[%s5] sm:$0xff] %v4391
  %4394 = vst [vmem:[%s5 + $0x8] sm:$0xff] %v4392
  // Predicated region
  $region22: #{hyperedge_embedding.1} parent=0 // pred_check
    _
  $region23: #{hyperedge_embedding.1} parent=0 // pred_check_branch
    %4396 = sbr.rel (0) target = $region25
  $region24: #{hyperedge_embedding.1} parent=0 // pred_region
    _
  $region25: #{hyperedge_embedding.1} parent=0 // pred_fallthru
    _
  // Predicated region
  $region26: #{hyperedge_embedding.1} parent=0 // pred_check
    _
  $region27: #{hyperedge_embedding.1} parent=0 // pred_check_branch
    %4398 = sbr.rel (0) target = $region29
  $region28: #{hyperedge_embedding.1} parent=0 // pred_region
    _
  $region29: #{hyperedge_embedding.1} parent=0 // pred_fallthru
    _

</llo_original>
